<compile_context>
chip_gen: v7x
topology: tpu7x:2x2x1
jax: 0.10.0
libtpu: 0.0.40
codegen_flags: <defaults>
</compile_context>

<pallas_src>
import functools

import jax
import jax.numpy as jnp
from jax.experimental import pallas as pl
from jax.experimental.pallas import tpu as pltpu


BN_EPS = 0.8          # nn.BatchNorm1d(out_feat, 0.8) -> eps = 0.8 (not momentum)
LEAKY_SLOPE = 0.2
_VMEM_BUDGET = 12 << 20   # conservative vs. v5e's 16 MiB scoped-VMEM default


def _leaky_relu(x):
    # slope < 1  =>  max(x, slope*x) == LeakyReLU(x)
    return jnp.maximum(x, LEAKY_SLOPE * x)


def _bn_leaky(x, gamma, beta):
    """Training-mode BN (batch mean, biased variance, eps=0.8) folded into a
    single scale/shift, fused with LeakyReLU.  Two-pass variance avoids the
    E[x^2]-E[x]^2 cancellation issue.  x is f32 (B, F)."""
    inv_n = 1.0 / x.shape[0]
    mu = jnp.sum(x, axis=0, keepdims=True) * inv_n
    xc = x - mu
    var = jnp.sum(xc * xc, axis=0, keepdims=True) * inv_n
    scale = gamma * jax.lax.rsqrt(var + BN_EPS)
    return _leaky_relu(xc * scale + beta)


# ---------------------------------------------------------------------------
# Fused kernel: all four Linear layers + BN + LeakyReLU + tanh, one launch.
# Requires the full batch resident (BatchNorm statistics) and w4 in VMEM.
# ---------------------------------------------------------------------------
def fused_kernel(
    x_ref,                              # (B, cond+latent) bf16
    w1_ref, b1_ref,                     # (d_in, 128) bf16, (1, 128) f32
    w2_ref, b2_ref, g2_ref, be2_ref,    # (128, 256) bf16, (1, 256) f32 x3
    w3_ref, b3_ref, g3_ref, be3_ref,    # (256, 512) bf16, (1, 512) f32 x3
    w4_ref, b4_ref,                     # (512, P_pad) bf16, (1, P_pad) f32
    o_ref,                              # out: (B, P_pad) out_dtype
):
    h = jnp.dot(x_ref[...], w1_ref[...],
                preferred_element_type=jnp.float32) + b1_ref[...]
    h = _leaky_relu(h)

    h = jnp.dot(h.astype(jnp.bfloat16), w2_ref[...],
                preferred_element_type=jnp.float32) + b2_ref[...]
    h = _bn_leaky(h, g2_ref[...], be2_ref[...])

    h = jnp.dot(h.astype(jnp.bfloat16), w3_ref[...],
                preferred_element_type=jnp.float32) + b3_ref[...]
    h = _bn_leaky(h, g3_ref[...], be3_ref[...])

    out = jnp.dot(h.astype(jnp.bfloat16), w4_ref[...],
                  preferred_element_type=jnp.float32) + b4_ref[...]
    o_ref[...] = jnp.tanh(out).astype(o_ref.dtype)


# ---------------------------------------------------------------------------
# Fallback stage 1: trunk — blocks 1..3 only (full batch, BN statistics).
# ---------------------------------------------------------------------------
def trunk_kernel(
    x_ref,
    w1_ref, b1_ref,
    w2_ref, b2_ref, g2_ref, be2_ref,
    w3_ref, b3_ref, g3_ref, be3_ref,
    h3_ref,                             # out: (B, 512) bf16
):
    h = jnp.dot(x_ref[...], w1_ref[...],
                preferred_element_type=jnp.float32) + b1_ref[...]
    h = _leaky_relu(h)

    h = jnp.dot(h.astype(jnp.bfloat16), w2_ref[...],
                preferred_element_type=jnp.float32) + b2_ref[...]
    h = _bn_leaky(h, g2_ref[...], be2_ref[...])

    h = jnp.dot(h.astype(jnp.bfloat16), w3_ref[...],
                preferred_element_type=jnp.float32) + b3_ref[...]
    h = _bn_leaky(h, g3_ref[...], be3_ref[...])

    h3_ref[...] = h.astype(h3_ref.dtype)


# ---------------------------------------------------------------------------
# Fallback stage 2: head — Linear(512 -> P_pad) + tanh.  h3 stays VMEM
# resident; w4 is streamed exactly once (grid over the N axis only).
# ---------------------------------------------------------------------------
def head_kernel(h3_ref, w4_ref, b4_ref, o_ref):
    acc = jnp.dot(h3_ref[...], w4_ref[...],
                  preferred_element_type=jnp.float32) + b4_ref[...]
    o_ref[...] = jnp.tanh(acc).astype(o_ref.dtype)


def _full_spec(shape):
    nd = len(shape)
    # default-arg capture avoids the late-binding closure bug
    return pl.BlockSpec(shape, lambda i, _nd=nd: (0,) * _nd)


def _round_up(x, m):
    return ((x + m - 1) // m) * m


@functools.partial(jax.jit, static_argnames=("img_shape", "out_dtype"))
def generator_forward(z, conds, params, img_shape, out_dtype=jnp.bfloat16):
    """params layout (weights transposed vs. PyTorch, i.e. (in, out)):
         w1 (cond+latent, 128) bf16, b1 (1, 128) f32
         w2 (128, 256) bf16, b2/g2/be2 (1, 256) f32
         w3 (256, 512) bf16, b3/g3/be3 (1, 512) f32
         w4 (512, P_pad) bf16 (pre-padded to mult. of 128), b4 (1, P_pad) f32
    """
    B = z.shape[0]
    # concat once + cast once here (input order is cat(conds, z), like PyTorch)
    x = jnp.concatenate([conds, z], axis=-1).astype(jnp.bfloat16)
    d_in = x.shape[1]

    P = 1
    for s in img_shape:
        P *= int(s)
    P_pad = params["w4"].shape[1]           # pre-padded in init_params
    out_itemsize = jnp.dtype(out_dtype).itemsize

    trunk_args = (
        x,
        params["w1"], params["b1"],
        params["w2"], params["b2"], params["g2"], params["be2"],
        params["w3"], params["b3"], params["g3"], params["be3"],
    )
    w_bytes = sum(int(a.size) * a.dtype.itemsize for a in trunk_args[1:])
    w4_bytes = int(params["w4"].size) * 2 + int(params["b4"].size) * 4

    # ----- choose fused vs. two-stage via a conservative VMEM estimate ------
    fused_est = (2 * (w_bytes + w4_bytes)            # double-buffered weights
                 + 2 * B * d_in * 2                  # input tile
                 + 4 * B * (256 + 512 + P_pad)       # f32 live intermediates
                 + 2 * B * P_pad * out_itemsize)     # output tile

    if fused_est <= _VMEM_BUDGET:
        # ------------------- single fused pallas_call -----------------------
        args = trunk_args + (params["w4"], params["b4"])
        cost = pl.CostEstimate(
            flops=2 * B * (d_in * 128 + 128 * 256 + 256 * 512 + 512 * P_pad),
            transcendentals=B * P_pad + 256 + 512,       # tanh + BN rsqrt
            bytes_accessed=B * d_in * 2 + w_bytes + w4_bytes
                           + B * P_pad * out_itemsize,
        )
        flat = pl.pallas_call(
            fused_kernel,
            grid=(1,),
            in_specs=[_full_spec(a.shape) for a in args],
            out_specs=pl.BlockSpec((B, P_pad), lambda i: (0, 0)),
            out_shape=jax.ShapeDtypeStruct((B, P_pad), out_dtype),
            compiler_params=pltpu.CompilerParams(
                dimension_semantics=("arbitrary",)),
            cost_estimate=cost,
        )(*args)
    else:
        # ------------------- two-stage fallback (large img_shape) -----------
        trunk_cost = pl.CostEstimate(
            flops=2 * B * (d_in * 128 + 128 * 256 + 256 * 512),
            transcendentals=256 + 512,
            bytes_accessed=B * d_in * 2 + w_bytes + B * 512 * 2,
        )
        h3 = pl.pallas_call(
            trunk_kernel,
            grid=(1,),
            in_specs=[_full_spec(a.shape) for a in trunk_args],
            out_specs=pl.BlockSpec((B, 512), lambda i: (0, 0)),
            out_shape=jax.ShapeDtypeStruct((B, 512), jnp.bfloat16),
            compiler_params=pltpu.CompilerParams(
                dimension_semantics=("arbitrary",)),
            cost_estimate=trunk_cost,
        )(*trunk_args)

        # h3 resident (constant index_map), stream w4 once; largest TN
        # (lane-dense, divides P_pad) that fits the VMEM budget.
        TN = 128
        for cand in (2048, 1024, 512, 256, 128):
            if P_pad % cand == 0:
                workset = (2 * B * 512 * 2
                           + 2 * (512 * cand * 2 + cand * 4
                                  + B * cand * out_itemsize))
                if workset <= _VMEM_BUDGET:
                    TN = cand
                    break
        head_workset = (2 * B * 512 * 2
                        + 2 * (512 * TN * 2 + TN * 4 + B * TN * out_itemsize))
        head_cost = pl.CostEstimate(
            flops=2 * B * 512 * P_pad,
            transcendentals=B * P_pad,
            bytes_accessed=B * 512 * 2 + 512 * P_pad * 2 + P_pad * 4
                           + B * P_pad * out_itemsize,
        )
        flat = pl.pallas_call(
            head_kernel,
            grid=(P_pad // TN,),
            in_specs=[
                pl.BlockSpec((B, 512), lambda j: (0, 0)),    # resident
                pl.BlockSpec((512, TN), lambda j: (0, j)),   # streamed once
                pl.BlockSpec((1, TN), lambda j: (0, j)),
            ],
            out_specs=pl.BlockSpec((B, TN), lambda j: (0, j)),
            out_shape=jax.ShapeDtypeStruct((B, P_pad), out_dtype),
            compiler_params=pltpu.CompilerParams(
                dimension_semantics=("parallel",),
                vmem_limit_bytes=int(min(32 << 20,
                                         max(16 << 20, head_workset + (4 << 20)))),
            ),
            cost_estimate=head_cost,
        )(h3, params["w4"], params["b4"])

    flat = flat[:, :P]
    return flat.reshape(B, *img_shape)


def init_params(key, cond_dim, latent_dim, img_shape):
    """Deterministic synthetic params (PyTorch-Linear-like uniform init).
    Weights bf16 (halves weight DMA), biases / BN params f32.  w4/b4 are
    pre-padded to a lane-dense multiple of 128 once, here."""
    d_in = cond_dim + latent_dim
    P = 1
    for s in img_shape:
        P *= int(s)
    P_pad = _round_up(P, 128)

    dims = [(d_in, 128), (128, 256), (256, 512), (512, P)]
    params = {}
    full_w = {}
    keys = jax.random.split(key, 8)
    for i, (fi, fo) in enumerate(dims, start=1):
        bound = 1.0 / (fi ** 0.5)
        full_w[i] = jax.random.uniform(
            keys[2 * (i - 1)], (fi, fo), jnp.float32, -bound, bound)
        params[f"b{i}"] = jax.random.uniform(
            keys[2 * (i - 1) + 1], (1, fo), jnp.float32, -bound, bound)

    params["w1"] = full_w[1].astype(jnp.bfloat16)
    params["w2"] = full_w[2].astype(jnp.bfloat16)
    params["w3"] = full_w[3].astype(jnp.bfloat16)

    w4 = full_w[4].astype(jnp.bfloat16)
    b4 = params["b4"]
    if P_pad != P:
        w4 = jnp.pad(w4, ((0, 0), (0, P_pad - P)))
        b4 = jnp.pad(b4, ((0, 0), (0, P_pad - P)))
    params["w4"] = w4
    params["b4"] = b4

    # BatchNorm affine params (PyTorch init: weight=1, bias=0)
    params["g2"] = jnp.ones((1, 256), jnp.float32)
    params["be2"] = jnp.zeros((1, 256), jnp.float32)
    params["g3"] = jnp.ones((1, 512), jnp.float32)
    params["be3"] = jnp.zeros((1, 512), jnp.float32)
    return params


if __name__ == "__main__":
    # config: opt.cond_dim=8, opt.latent_dim=32, opt.img_shape=(1,16,16)
    # B=256 amortizes weight DMA / launch overhead and fills the MXU M dim.
    B = 256
    cond_dim = 8
    latent_dim = 32
    img_shape = (1, 16, 16)

    key = jax.random.PRNGKey(0)
    kz, kc, kp = jax.random.split(key, 3)
    z = jax.random.normal(kz, (B, latent_dim), jnp.float32)
    conds = jax.random.normal(kc, (B, cond_dim), jnp.float32)
    params = init_params(kp, cond_dim, latent_dim, img_shape)

    img = generator_forward(z, conds, params, img_shape)
    img = jax.block_until_ready(img)

    assert img.shape == (B, *img_shape), img.shape
    imgf = img.astype(jnp.float32)
    assert bool(jnp.all(jnp.isfinite(imgf)))
    assert bool(jnp.all(jnp.abs(imgf) <= 1.0))   # tanh output range

    print("KERNEL_OK")
</pallas_src>

<mosaic_0001>
module attributes {stable_mosaic.version = 11 : i64} {
  func.func @fused_kernel(%arg0: i32, %arg1: memref<256x40xbf16, #tpu.memory_space<vmem>>, %arg2: memref<40x128xbf16, #tpu.memory_space<vmem>>, %arg3: memref<1x128xf32, #tpu.memory_space<vmem>>, %arg4: memref<128x256xbf16, #tpu.memory_space<vmem>>, %arg5: memref<1x256xf32, #tpu.memory_space<vmem>>, %arg6: memref<1x256xf32, #tpu.memory_space<vmem>>, %arg7: memref<1x256xf32, #tpu.memory_space<vmem>>, %arg8: memref<256x512xbf16, #tpu.memory_space<vmem>>, %arg9: memref<1x512xf32, #tpu.memory_space<vmem>>, %arg10: memref<1x512xf32, #tpu.memory_space<vmem>>, %arg11: memref<1x512xf32, #tpu.memory_space<vmem>>, %arg12: memref<512x256xbf16, #tpu.memory_space<vmem>>, %arg13: memref<1x256xf32, #tpu.memory_space<vmem>>, %arg14: memref<256x256xbf16, #tpu.memory_space<vmem>>) attributes {dimension_semantics = [#tpu.dimension_semantics<arbitrary>], iteration_bounds = array<i64: 1>, scalar_prefetch = 0 : i64, scratch_operands = 0 : i64, tpu.core_type = #tpu.core_type<tc>, window_params = [{pipeline_mode = #tpu.pipeline_mode<synchronous>, transform_indices = @transform_0, window_bounds = array<i64: 256, 40>}, {pipeline_mode = #tpu.pipeline_mode<synchronous>, transform_indices = @transform_1, window_bounds = array<i64: 40, 128>}, {pipeline_mode = #tpu.pipeline_mode<synchronous>, transform_indices = @transform_2, window_bounds = array<i64: 1, 128>}, {pipeline_mode = #tpu.pipeline_mode<synchronous>, transform_indices = @transform_3, window_bounds = array<i64: 128, 256>}, {pipeline_mode = #tpu.pipeline_mode<synchronous>, transform_indices = @transform_4, window_bounds = array<i64: 1, 256>}, {pipeline_mode = #tpu.pipeline_mode<synchronous>, transform_indices = @transform_5, window_bounds = array<i64: 1, 256>}, {pipeline_mode = #tpu.pipeline_mode<synchronous>, transform_indices = @transform_6, window_bounds = array<i64: 1, 256>}, {pipeline_mode = #tpu.pipeline_mode<synchronous>, transform_indices = @transform_7, window_bounds = array<i64: 256, 512>}, {pipeline_mode = #tpu.pipeline_mode<synchronous>, transform_indices = @transform_8, window_bounds = array<i64: 1, 512>}, {pipeline_mode = #tpu.pipeline_mode<synchronous>, transform_indices = @transform_9, window_bounds = array<i64: 1, 512>}, {pipeline_mode = #tpu.pipeline_mode<synchronous>, transform_indices = @transform_10, window_bounds = array<i64: 1, 512>}, {pipeline_mode = #tpu.pipeline_mode<synchronous>, transform_indices = @transform_11, window_bounds = array<i64: 512, 256>}, {pipeline_mode = #tpu.pipeline_mode<synchronous>, transform_indices = @transform_12, window_bounds = array<i64: 1, 256>}, {pipeline_mode = #tpu.pipeline_mode<synchronous>, transform_indices = @transform_13, window_bounds = array<i64: 256, 256>}]} {
    %c0 = arith.constant 0 : index
    %c0_0 = arith.constant 0 : index
    %0 = vector.load %arg1[%c0, %c0_0] : memref<256x40xbf16, #tpu.memory_space<vmem>>, vector<256x40xbf16>
    %c0_1 = arith.constant 0 : index
    %c0_2 = arith.constant 0 : index
    %1 = vector.load %arg2[%c0_1, %c0_2] : memref<40x128xbf16, #tpu.memory_space<vmem>>, vector<40x128xbf16>
    %cst = arith.constant dense<0.000000e+00> : vector<256x128xf32>
    %2 = tpu.matmul %0, %1, %cst {dimension_numbers = #tpu.dot_dimension_numbers<[1], [0], [0], [1], [0, 0, 1, 1], [], []>} : vector<256x40xbf16>, vector<40x128xbf16>, vector<256x128xf32> -> vector<256x128xf32>
    %c0_3 = arith.constant 0 : index
    %c0_4 = arith.constant 0 : index
    %3 = vector.load %arg3[%c0_3, %c0_4] : memref<1x128xf32, #tpu.memory_space<vmem>>, vector<1x128xf32>
    %4 = vector.broadcast %3 : vector<1x128xf32> to vector<256x128xf32>
    %5 = arith.addf %2, %4 : vector<256x128xf32>
    %cst_5 = arith.constant 2.000000e-01 : f32
    %6 = vector.broadcast %cst_5 : f32 to vector<256x128xf32>
    %7 = arith.mulf %6, %5 : vector<256x128xf32>
    %8 = arith.maximumf %5, %7 : vector<256x128xf32>
    %9 = arith.truncf %8 : vector<256x128xf32> to vector<256x128xbf16>
    %c0_6 = arith.constant 0 : index
    %c0_7 = arith.constant 0 : index
    %10 = vector.load %arg4[%c0_6, %c0_7] : memref<128x256xbf16, #tpu.memory_space<vmem>>, vector<128x256xbf16>
    %cst_8 = arith.constant dense<0.000000e+00> : vector<256x256xf32>
    %11 = tpu.matmul %9, %10, %cst_8 {dimension_numbers = #tpu.dot_dimension_numbers<[1], [0], [0], [1], [0, 0, 1, 1], [], []>} : vector<256x128xbf16>, vector<128x256xbf16>, vector<256x256xf32> -> vector<256x256xf32>
    %c0_9 = arith.constant 0 : index
    %c0_10 = arith.constant 0 : index
    %12 = vector.load %arg5[%c0_9, %c0_10] : memref<1x256xf32, #tpu.memory_space<vmem>>, vector<1x256xf32>
    %13 = vector.broadcast %12 : vector<1x256xf32> to vector<256x256xf32>
    %14 = arith.addf %11, %13 : vector<256x256xf32>
    %c0_11 = arith.constant 0 : index
    %c0_12 = arith.constant 0 : index
    %15 = vector.load %arg6[%c0_11, %c0_12] : memref<1x256xf32, #tpu.memory_space<vmem>>, vector<1x256xf32>
    %c0_13 = arith.constant 0 : index
    %c0_14 = arith.constant 0 : index
    %16 = vector.load %arg7[%c0_13, %c0_14] : memref<1x256xf32, #tpu.memory_space<vmem>>, vector<1x256xf32>
    %cst_15 = arith.constant dense<0.000000e+00> : vector<256xf32>
    %17 = vector.multi_reduction <add>, %14, %cst_15 [0] : vector<256x256xf32> to vector<256xf32>
    %18 = vector.shape_cast %17 : vector<256xf32> to vector<1x256xf32>
    %cst_16 = arith.constant 3.906250e-03 : f32
    %19 = vector.broadcast %cst_16 : f32 to vector<1x256xf32>
    %20 = arith.mulf %18, %19 : vector<1x256xf32>
    %21 = vector.broadcast %20 : vector<1x256xf32> to vector<256x256xf32>
    %22 = arith.subf %14, %21 : vector<256x256xf32>
    %23 = arith.mulf %22, %22 : vector<256x256xf32>
    %cst_17 = arith.constant dense<0.000000e+00> : vector<256xf32>
    %24 = vector.multi_reduction <add>, %23, %cst_17 [0] : vector<256x256xf32> to vector<256xf32>
    %25 = vector.shape_cast %24 : vector<256xf32> to vector<1x256xf32>
    %cst_18 = arith.constant 3.906250e-03 : f32
    %26 = vector.broadcast %cst_18 : f32 to vector<1x256xf32>
    %27 = arith.mulf %25, %26 : vector<1x256xf32>
    %cst_19 = arith.constant 8.000000e-01 : f32
    %28 = vector.broadcast %cst_19 : f32 to vector<1x256xf32>
    %29 = arith.addf %27, %28 : vector<1x256xf32>
    %30 = math.rsqrt %29 : vector<1x256xf32>
    %31 = arith.mulf %15, %30 : vector<1x256xf32>
    %32 = vector.broadcast %31 : vector<1x256xf32> to vector<256x256xf32>
    %33 = arith.mulf %22, %32 : vector<256x256xf32>
    %34 = vector.broadcast %16 : vector<1x256xf32> to vector<256x256xf32>
    %35 = arith.addf %33, %34 : vector<256x256xf32>
    %cst_20 = arith.constant 2.000000e-01 : f32
    %36 = vector.broadcast %cst_20 : f32 to vector<256x256xf32>
    %37 = arith.mulf %36, %35 : vector<256x256xf32>
    %38 = arith.maximumf %35, %37 : vector<256x256xf32>
    %39 = arith.truncf %38 : vector<256x256xf32> to vector<256x256xbf16>
    %c0_21 = arith.constant 0 : index
    %c0_22 = arith.constant 0 : index
    %40 = vector.load %arg8[%c0_21, %c0_22] : memref<256x512xbf16, #tpu.memory_space<vmem>>, vector<256x512xbf16>
    %cst_23 = arith.constant dense<0.000000e+00> : vector<256x512xf32>
    %41 = tpu.matmul %39, %40, %cst_23 {dimension_numbers = #tpu.dot_dimension_numbers<[1], [0], [0], [1], [0, 0, 1, 1], [], []>} : vector<256x256xbf16>, vector<256x512xbf16>, vector<256x512xf32> -> vector<256x512xf32>
    %c0_24 = arith.constant 0 : index
    %c0_25 = arith.constant 0 : index
    %42 = vector.load %arg9[%c0_24, %c0_25] : memref<1x512xf32, #tpu.memory_space<vmem>>, vector<1x512xf32>
    %43 = vector.broadcast %42 : vector<1x512xf32> to vector<256x512xf32>
    %44 = arith.addf %41, %43 : vector<256x512xf32>
    %c0_26 = arith.constant 0 : index
    %c0_27 = arith.constant 0 : index
    %45 = vector.load %arg10[%c0_26, %c0_27] : memref<1x512xf32, #tpu.memory_space<vmem>>, vector<1x512xf32>
    %c0_28 = arith.constant 0 : index
    %c0_29 = arith.constant 0 : index
    %46 = vector.load %arg11[%c0_28, %c0_29] : memref<1x512xf32, #tpu.memory_space<vmem>>, vector<1x512xf32>
    %cst_30 = arith.constant dense<0.000000e+00> : vector<512xf32>
    %47 = vector.multi_reduction <add>, %44, %cst_30 [0] : vector<256x512xf32> to vector<512xf32>
    %48 = vector.shape_cast %47 : vector<512xf32> to vector<1x512xf32>
    %cst_31 = arith.constant 3.906250e-03 : f32
    %49 = vector.broadcast %cst_31 : f32 to vector<1x512xf32>
    %50 = arith.mulf %48, %49 : vector<1x512xf32>
    %51 = vector.broadcast %50 : vector<1x512xf32> to vector<256x512xf32>
    %52 = arith.subf %44, %51 : vector<256x512xf32>
    %53 = arith.mulf %52, %52 : vector<256x512xf32>
    %cst_32 = arith.constant dense<0.000000e+00> : vector<512xf32>
    %54 = vector.multi_reduction <add>, %53, %cst_32 [0] : vector<256x512xf32> to vector<512xf32>
    %55 = vector.shape_cast %54 : vector<512xf32> to vector<1x512xf32>
    %cst_33 = arith.constant 3.906250e-03 : f32
    %56 = vector.broadcast %cst_33 : f32 to vector<1x512xf32>
    %57 = arith.mulf %55, %56 : vector<1x512xf32>
    %cst_34 = arith.constant 8.000000e-01 : f32
    %58 = vector.broadcast %cst_34 : f32 to vector<1x512xf32>
    %59 = arith.addf %57, %58 : vector<1x512xf32>
    %60 = math.rsqrt %59 : vector<1x512xf32>
    %61 = arith.mulf %45, %60 : vector<1x512xf32>
    %62 = vector.broadcast %61 : vector<1x512xf32> to vector<256x512xf32>
    %63 = arith.mulf %52, %62 : vector<256x512xf32>
    %64 = vector.broadcast %46 : vector<1x512xf32> to vector<256x512xf32>
    %65 = arith.addf %63, %64 : vector<256x512xf32>
    %cst_35 = arith.constant 2.000000e-01 : f32
    %66 = vector.broadcast %cst_35 : f32 to vector<256x512xf32>
    %67 = arith.mulf %66, %65 : vector<256x512xf32>
    %68 = arith.maximumf %65, %67 : vector<256x512xf32>
    %69 = arith.truncf %68 : vector<256x512xf32> to vector<256x512xbf16>
    %c0_36 = arith.constant 0 : index
    %c0_37 = arith.constant 0 : index
    %70 = vector.load %arg12[%c0_36, %c0_37] : memref<512x256xbf16, #tpu.memory_space<vmem>>, vector<512x256xbf16>
    %cst_38 = arith.constant dense<0.000000e+00> : vector<256x256xf32>
    %71 = tpu.matmul %69, %70, %cst_38 {dimension_numbers = #tpu.dot_dimension_numbers<[1], [0], [0], [1], [0, 0, 1, 1], [], []>} : vector<256x512xbf16>, vector<512x256xbf16>, vector<256x256xf32> -> vector<256x256xf32>
    %c0_39 = arith.constant 0 : index
    %c0_40 = arith.constant 0 : index
    %72 = vector.load %arg13[%c0_39, %c0_40] : memref<1x256xf32, #tpu.memory_space<vmem>>, vector<1x256xf32>
    %73 = vector.broadcast %72 : vector<1x256xf32> to vector<256x256xf32>
    %74 = arith.addf %71, %73 : vector<256x256xf32>
    %75 = math.tanh %74 : vector<256x256xf32>
    %76 = arith.truncf %75 : vector<256x256xf32> to vector<256x256xbf16>
    %c0_41 = arith.constant 0 : index
    %c0_42 = arith.constant 0 : index
    %77 = vector.load %arg14[%c0_41, %c0_42] : memref<256x256xbf16, #tpu.memory_space<vmem>>, vector<256x256xbf16>
    tpu.vector_store %arg14[%c0_41, %c0_42], %76 {strides = array<i32>} : memref<256x256xbf16, #tpu.memory_space<vmem>>, vector<256x256xbf16>,
    return
  }
  func.func @transform_0(%arg0: i32) -> (i32, i32) {
    %c0_i32 = arith.constant 0 : i32
    %c0_i32_0 = arith.constant 0 : i32
    %c0_i32_1 = arith.constant 0 : i32
    return %c0_i32, %c0_i32_0 : i32, i32
  }
  func.func @transform_1(%arg0: i32) -> (i32, i32) {
    %c0_i32 = arith.constant 0 : i32
    %c0_i32_0 = arith.constant 0 : i32
    %c0_i32_1 = arith.constant 0 : i32
    return %c0_i32, %c0_i32_0 : i32, i32
  }
  func.func @transform_2(%arg0: i32) -> (i32, i32) {
    %c0_i32 = arith.constant 0 : i32
    %c0_i32_0 = arith.constant 0 : i32
    %c0_i32_1 = arith.constant 0 : i32
    return %c0_i32, %c0_i32_0 : i32, i32
  }
  func.func @transform_3(%arg0: i32) -> (i32, i32) {
    %c0_i32 = arith.constant 0 : i32
    %c0_i32_0 = arith.constant 0 : i32
    %c0_i32_1 = arith.constant 0 : i32
    return %c0_i32, %c0_i32_0 : i32, i32
  }
  func.func @transform_4(%arg0: i32) -> (i32, i32) {
    %c0_i32 = arith.constant 0 : i32
    %c0_i32_0 = arith.constant 0 : i32
    %c0_i32_1 = arith.constant 0 : i32
    return %c0_i32, %c0_i32_0 : i32, i32
  }
  func.func @transform_5(%arg0: i32) -> (i32, i32) {
    %c0_i32 = arith.constant 0 : i32
    %c0_i32_0 = arith.constant 0 : i32
    %c0_i32_1 = arith.constant 0 : i32
    return %c0_i32, %c0_i32_0 : i32, i32
  }
  func.func @transform_6(%arg0: i32) -> (i32, i32) {
    %c0_i32 = arith.constant 0 : i32
    %c0_i32_0 = arith.constant 0 : i32
    %c0_i32_1 = arith.constant 0 : i32
    return %c0_i32, %c0_i32_0 : i32, i32
  }
  func.func @transform_7(%arg0: i32) -> (i32, i32) {
    %c0_i32 = arith.constant 0 : i32
    %c0_i32_0 = arith.constant 0 : i32
    %c0_i32_1 = arith.constant 0 : i32
    return %c0_i32, %c0_i32_0 : i32, i32
  }
  func.func @transform_8(%arg0: i32) -> (i32, i32) {
    %c0_i32 = arith.constant 0 : i32
    %c0_i32_0 = arith.constant 0 : i32
    %c0_i32_1 = arith.constant 0 : i32
    return %c0_i32, %c0_i32_0 : i32, i32
  }
  func.func @transform_9(%arg0: i32) -> (i32, i32) {
    %c0_i32 = arith.constant 0 : i32
    %c0_i32_0 = arith.constant 0 : i32
    %c0_i32_1 = arith.constant 0 : i32
    return %c0_i32, %c0_i32_0 : i32, i32
  }
  func.func @transform_10(%arg0: i32) -> (i32, i32) {
    %c0_i32 = arith.constant 0 : i32
    %c0_i32_0 = arith.constant 0 : i32
    %c0_i32_1 = arith.constant 0 : i32
    return %c0_i32, %c0_i32_0 : i32, i32
  }
  func.func @transform_11(%arg0: i32) -> (i32, i32) {
    %c0_i32 = arith.constant 0 : i32
    %c0_i32_0 = arith.constant 0 : i32
    %c0_i32_1 = arith.constant 0 : i32
    return %c0_i32, %c0_i32_0 : i32, i32
  }
  func.func @transform_12(%arg0: i32) -> (i32, i32) {
    %c0_i32 = arith.constant 0 : i32
    %c0_i32_0 = arith.constant 0 : i32
    %c0_i32_1 = arith.constant 0 : i32
    return %c0_i32, %c0_i32_0 : i32, i32
  }
  func.func @transform_13(%arg0: i32) -> (i32, i32) {
    %c0_i32 = arith.constant 0 : i32
    %c0_i32_0 = arith.constant 0 : i32
    %c0_i32_1 = arith.constant 0 : i32
    return %c0_i32, %c0_i32_0 : i32, i32
  }
}

</mosaic_0001>

<llo_original>
// kernel: generator_forward.1
$region0: #{generator_forward.1}
  #allocation0 [shape = 'u32[]', space=smem, size = 0x4, offset = 0x4, fixed_abs, tag = 'smem constant byte address 0x4 - core index']
  #allocation1 [shape = 'u32[144,128]{1,0:T(1,128)}', space=vmem, size = 0x12000, scoped, tag = 'internal scratch']
  %s0 = inlined_call_operand.vmem [shape: bf16[256,40], index: 0, kind: input, shape index: {}]
  %s1 = inlined_call_operand.vmem [shape: bf16[40,128], index: 1, kind: input, shape index: {}]
  %s2 = inlined_call_operand.vmem [shape: f32[1,128], index: 2, kind: input, shape index: {}]
  %s3 = inlined_call_operand.vmem [shape: bf16[128,256], index: 3, kind: input, shape index: {}]
  %s4 = inlined_call_operand.vmem [shape: f32[1,256], index: 4, kind: input, shape index: {}]
  %s5 = inlined_call_operand.vmem [shape: f32[1,256], index: 5, kind: input, shape index: {}]
  %s6 = inlined_call_operand.vmem [shape: f32[1,256], index: 6, kind: input, shape index: {}]
  %s7 = inlined_call_operand.hbm [shape: bf16[256,512], index: 7, kind: input, shape index: {}]
  %s8 = inlined_call_operand.vmem [shape: f32[1,512], index: 8, kind: input, shape index: {}]
  %s9 = inlined_call_operand.vmem [shape: f32[1,512], index: 9, kind: input, shape index: {}]
  %s10 = inlined_call_operand.vmem [shape: f32[1,512], index: 10, kind: input, shape index: {}]
  %s11 = inlined_call_operand.hbm [shape: bf16[512,256], index: 11, kind: input, shape index: {}]
  %s12 = inlined_call_operand.vmem [shape: f32[1,256], index: 12, kind: input, shape index: {}]
  %s13 = inlined_call_operand.vmem [shape: bf16[256,256], index: 13, kind: output, shape index: {}]
  %s14 = sld [smem:[#allocation0]]
  $region70: #{generator_forward.1} parent=0
    _
  %s16 = ssub.s32 1, %s14
  %s17 = scalar_select 0, %s16, %s14
  $region1: #{generator_forward.1} parent=0
    #allocation2 [shape = 'u8[262144]{0}', space=vmem, size = 0x40000, scoped, tag = 'input window, operand 7, single buffered']
    #allocation3 [shape = 's32[1]{0}', space=sflag, size = 0x4, scoped, tag = 'scoped memory for generator_forward.1']
    #allocation4 [shape = 'u8[262144]{0}', space=vmem, size = 0x40000, scoped, tag = 'input window, operand 11, single buffered']
    #allocation5 [shape = 's32[1]{0}', space=sflag, size = 0x4, scoped, tag = 'scoped memory for generator_forward.1']
    %18 = vsyncpa [#allocation3], 0
    %19 = vsyncpa [#allocation5], 0
    // Predicated region
    $region2: #{generator_forward.1} parent=1 // pred_check
      _
    $region3: #{generator_forward.1} parent=1 // pred_check_branch
      %21 = sbr.rel (0) target = $region5
    $region4: #{generator_forward.1} parent=1 // pred_region
      _
    $region5: #{generator_forward.1} parent=1 // pred_fallthru
      _
    // Predicated region
    $region6: #{generator_forward.1} parent=1 // pred_check
      _
    $region7: #{generator_forward.1} parent=1 // pred_check_branch
      %23 = sbr.rel (0) target = $region9
    $region8: #{generator_forward.1} parent=1 // pred_region
      _
    $region9: #{generator_forward.1} parent=1 // pred_fallthru
      _
    // Predicated region
    $region10: #{generator_forward.1} parent=1 // pred_check
      _
    $region11: #{generator_forward.1} parent=1 // pred_check_branch
      %25 = sbr.rel (0) target = $region13
    $region12: #{generator_forward.1} parent=1 // pred_region
      _
    $region13: #{generator_forward.1} parent=1 // pred_fallthru
      _
    // Predicated region
    $region14: #{generator_forward.1} parent=1 // pred_check
      _
    $region15: #{generator_forward.1} parent=1 // pred_check_branch
      %27 = sbr.rel (0) target = $region17
    $region16: #{generator_forward.1} parent=1 // pred_region
      _
    $region17: #{generator_forward.1} parent=1 // pred_fallthru
      _
    // Predicated region
    $region18: #{generator_forward.1} parent=1 // pred_check
      _
    $region19: #{generator_forward.1} parent=1 // pred_check_branch
      %29 = sbr.rel (0) target = $region21
    $region20: #{generator_forward.1} parent=1 // pred_region
      _
    $region21: #{generator_forward.1} parent=1 // pred_fallthru
      _
    // Predicated region
    $region22: #{generator_forward.1} parent=1 // pred_check
      _
    $region23: #{generator_forward.1} parent=1 // pred_check_branch
      %31 = sbr.rel (0) target = $region25
    $region24: #{generator_forward.1} parent=1 // pred_region
      _
    $region25: #{generator_forward.1} parent=1 // pred_fallthru
      _
    // Predicated region
    $region26: #{generator_forward.1} parent=1 // pred_check
      _
    $region27: #{generator_forward.1} parent=1 // pred_check_branch
      %33 = sbr.rel (0) target = $region29
    $region28: #{generator_forward.1} parent=1 // pred_region
      _
    $region29: #{generator_forward.1} parent=1 // pred_fallthru
      _
    // Predicated region
    $region30: #{generator_forward.1} parent=1 // pred_check
      _
    $region31: #{generator_forward.1} parent=1 // pred_check_branch
      %35 = sbr.rel (0) target = $region33
    $region32: #{generator_forward.1} parent=1 // pred_region
      %s37 = ssub.s32 8192, 8192
      %38 = vsyncadd [#allocation3], %s37
      %s39 = sshll.u32 [#allocation2], 4
      %s40 = int_to_ptr.vmem [resolvable:$true] %s39
      %45 = dma.hbm_to_vmem [thread:$0]  %s7, 8192, %s40, [#allocation3], 256, 256, 16
    $region33: #{generator_forward.1} parent=1 // pred_fallthru
      _
    // Predicated region
    $region34: #{generator_forward.1} parent=1 // pred_check
      _
    $region35: #{generator_forward.1} parent=1 // pred_check_branch
      %47 = sbr.rel (0) target = $region37
    $region36: #{generator_forward.1} parent=1 // pred_region
      _
    $region37: #{generator_forward.1} parent=1 // pred_fallthru
      _
    // Predicated region
    $region38: #{generator_forward.1} parent=1 // pred_check
      _
    $region39: #{generator_forward.1} parent=1 // pred_check_branch
      %49 = sbr.rel (0) target = $region41
    $region40: #{generator_forward.1} parent=1 // pred_region
      _
    $region41: #{generator_forward.1} parent=1 // pred_fallthru
      _
    // Predicated region
    $region42: #{generator_forward.1} parent=1 // pred_check
      _
    $region43: #{generator_forward.1} parent=1 // pred_check_branch
      %51 = sbr.rel (0) target = $region45
    $region44: #{generator_forward.1} parent=1 // pred_region
      _
    $region45: #{generator_forward.1} parent=1 // pred_fallthru
      _
    // Predicated region
    $region46: #{generator_forward.1} parent=1 // pred_check
      _
    $region47: #{generator_forward.1} parent=1 // pred_check_branch
      %53 = sbr.rel (0) target = $region49
    $region48: #{generator_forward.1} parent=1 // pred_region
      %s55 = ssub.s32 8192, 8192
      %56 = vsyncadd [#allocation5], %s55
      %s57 = sshll.u32 [#allocation4], 4
      %s58 = int_to_ptr.vmem [resolvable:$true] %s57
      %63 = dma.hbm_to_vmem [thread:$0]  %s11, 8192, %s58, [#allocation5], 128, 128, 8
    $region49: #{generator_forward.1} parent=1 // pred_fallthru
      _
    // Predicated region
    $region50: #{generator_forward.1} parent=1 // pred_check
      _
    $region51: #{generator_forward.1} parent=1 // pred_check_branch
      %65 = sbr.rel (0) target = $region53
    $region52: #{generator_forward.1} parent=1 // pred_region
      _
    $region53: #{generator_forward.1} parent=1 // pred_fallthru
      _
    // Predicated region
    $region54: #{generator_forward.1} parent=1 // pred_check
      _
    $region55: #{generator_forward.1} parent=1 // pred_check_branch
      %67 = sbr.rel (0) target = $region57
    $region56: #{generator_forward.1} parent=1 // pred_region
      %68 = dma.done [#allocation3], 8192
    $region57: #{generator_forward.1} parent=1 // pred_fallthru
      _
    // Predicated region
    $region58: #{generator_forward.1} parent=1 // pred_check
      _
    $region59: #{generator_forward.1} parent=1 // pred_check_branch
      %70 = sbr.rel (0) target = $region61
    $region60: #{generator_forward.1} parent=1 // pred_region
      %71 = dma.done [#allocation5], 8192
    $region61: #{generator_forward.1} parent=1 // pred_fallthru
      _
    %v73 = vld [vmem:[%s0] sm:$0xf]
    %v74 = vld [vmem:[%s0 + $0x4] sm:$0xf]
    %v75 = vld [vmem:[%s0 + $0x8] sm:$0xf]
    %v76 = vld [vmem:[%s0 + $0xc] sm:$0xf]
    %v77 = vld [vmem:[%s0 + $0x10] sm:$0xf]
    %v78 = vld [vmem:[%s0 + $0x14] sm:$0xf]
    %v79 = vld [vmem:[%s0 + $0x18] sm:$0xf]
    %v80 = vld [vmem:[%s0 + $0x1c] sm:$0xf]
    %v81 = vld [vmem:[%s0 + $0x20] sm:$0xf]
    %v82 = vld [vmem:[%s0 + $0x24] sm:$0xf]
    %v83 = vld [vmem:[%s0 + $0x28] sm:$0xf]
    %v84 = vld [vmem:[%s0 + $0x2c] sm:$0xf]
    %v85 = vld [vmem:[%s0 + $0x30] sm:$0xf]
    %v86 = vld [vmem:[%s0 + $0x34] sm:$0xf]
    %v87 = vld [vmem:[%s0 + $0x38] sm:$0xf]
    %v88 = vld [vmem:[%s0 + $0x3c] sm:$0xf]
    %v89 = vld [vmem:[%s0 + $0x40] sm:$0xf]
    %v90 = vld [vmem:[%s0 + $0x44] sm:$0xf]
    %v91 = vld [vmem:[%s0 + $0x48] sm:$0xf]
    %v92 = vld [vmem:[%s0 + $0x4c] sm:$0xf]
    %v93 = vld [vmem:[%s0 + $0x50] sm:$0xf]
    %v94 = vld [vmem:[%s0 + $0x54] sm:$0xf]
    %v95 = vld [vmem:[%s0 + $0x58] sm:$0xf]
    %v96 = vld [vmem:[%s0 + $0x5c] sm:$0xf]
    %v97 = vld [vmem:[%s0 + $0x60] sm:$0xf]
    %v98 = vld [vmem:[%s0 + $0x64] sm:$0xf]
    %v99 = vld [vmem:[%s0 + $0x68] sm:$0xf]
    %v100 = vld [vmem:[%s0 + $0x6c] sm:$0xf]
    %v101 = vld [vmem:[%s0 + $0x70] sm:$0xf]
    %v102 = vld [vmem:[%s0 + $0x74] sm:$0xf]
    %v103 = vld [vmem:[%s0 + $0x78] sm:$0xf]
    %v104 = vld [vmem:[%s0 + $0x7c] sm:$0xf]
    %v105 = vld [vmem:[%s1] sm:$0xf]
    %v106 = vld [vmem:[%s1 + $0x4] sm:$0xf]
    %v107 = vld [vmem:[%s1 + $0x8] sm:$0xf]
    %v108 = vld [vmem:[%s1 + $0xc] sm:$0xf]
    %v109 = vld [vmem:[%s1 + $0x10] sm:$0xf]
    %v110 = vld [vmem:[%s2] sm:$0x1]
    %v112 = vlaneseq
    %v113 = vshrl.u32 %v112, 7
    %v114 = vsub.s32 0, %v113
    %v115 = vrot.slane %v110, %v114
    %v149 = vunpack.c.l.b16 %v73
    %v150 = vunpack.c.l.b16 %v74
    %v151 = vunpack.c.l.b16 %v75
    %v152 = vunpack.c.l.b16 %v76
    %v153 = vunpack.c.l.b16 %v77
    %v154 = vunpack.c.l.b16 %v78
    %v155 = vunpack.c.l.b16 %v79
    %v156 = vunpack.c.l.b16 %v80
    %v157 = vunpack.c.l.b16 %v81
    %v158 = vunpack.c.l.b16 %v82
    %v159 = vunpack.c.l.b16 %v83
    %v160 = vunpack.c.l.b16 %v84
    %v161 = vunpack.c.l.b16 %v85
    %v162 = vunpack.c.l.b16 %v86
    %v163 = vunpack.c.l.b16 %v87
    %v164 = vunpack.c.l.b16 %v88
    %v165 = vunpack.c.l.b16 %v89
    %v166 = vunpack.c.l.b16 %v90
    %v167 = vunpack.c.l.b16 %v91
    %v168 = vunpack.c.l.b16 %v92
    %v169 = vunpack.c.l.b16 %v93
    %v170 = vunpack.c.l.b16 %v94
    %v171 = vunpack.c.l.b16 %v95
    %v172 = vunpack.c.l.b16 %v96
    %v173 = vunpack.c.l.b16 %v97
    %v174 = vunpack.c.l.b16 %v98
    %v175 = vunpack.c.l.b16 %v99
    %v176 = vunpack.c.l.b16 %v100
    %v177 = vunpack.c.l.b16 %v101
    %v178 = vunpack.c.l.b16 %v102
    %v179 = vunpack.c.l.b16 %v103
    %v180 = vunpack.c.l.b16 %v104
    %v181 = vpack.c.b16 %v150, %v149
    %v182 = vpack.c.b16 %v152, %v151
    %v183 = vpack.c.b16 %v154, %v153
    %v184 = vpack.c.b16 %v156, %v155
    %v185 = vpack.c.b16 %v158, %v157
    %v186 = vpack.c.b16 %v160, %v159
    %v187 = vpack.c.b16 %v162, %v161
    %v188 = vpack.c.b16 %v164, %v163
    %v189 = vpack.c.b16 %v166, %v165
    %v190 = vpack.c.b16 %v168, %v167
    %v191 = vpack.c.b16 %v170, %v169
    %v192 = vpack.c.b16 %v172, %v171
    %v193 = vpack.c.b16 %v174, %v173
    %v194 = vpack.c.b16 %v176, %v175
    %v195 = vpack.c.b16 %v178, %v177
    %v196 = vpack.c.b16 %v180, %v179
    %v202 = vunpack.c.l.b16 %v105
    %v203 = vunpack.c.l.b16 %v106
    %v204 = vunpack.c.l.b16 %v107
    %v205 = vunpack.c.l.b16 %v108
    %v206 = vunpack.c.l.b16 %v109
    %v207 = vpack.c.b16 %v203, %v202
    %v208 = vpack.c.b16 %v205, %v204
    %v209 = vpack.c.b16 %v206, %v206
    %vm212 = vcmask 326656
    %v214 = vsel %vm212, %v181, 0
    %v217 = vsel %vm212, %v182, 0
    %v220 = vsel %vm212, %v183, 0
    %v223 = vsel %vm212, %v184, 0
    %v226 = vsel %vm212, %v185, 0
    %v229 = vsel %vm212, %v186, 0
    %v232 = vsel %vm212, %v187, 0
    %v235 = vsel %vm212, %v188, 0
    %v238 = vsel %vm212, %v189, 0
    %v241 = vsel %vm212, %v190, 0
    %v244 = vsel %vm212, %v191, 0
    %v247 = vsel %vm212, %v192, 0
    %v250 = vsel %vm212, %v193, 0
    %v253 = vsel %vm212, %v194, 0
    %v256 = vsel %vm212, %v195, 0
    %v259 = vsel %vm212, %v196, 0
    %vm261 = vcmask 1043456
    %v263 = vsel %vm261, %v209, 0
    %265 = vmatprep.subr.bf16.mxu0 0
    %266 = vmatpush1.bf16.msra.mxu0 %v207
    %267 = vmatprep.subr.bf16.mxu0 0
    %268 = vmatpush1.bf16.msra.mxu0 %v208
    %269 = vmatprep.subr.bf16.mxu0 0
    %270 = vmatpush1.bf16.msra.mxu0 %v263
    %271 = vmatprep.subr.bf16.mxu0 0
    %272 = vmatpush1.bf16.msra.mxu0 0
    %273 = vmatprep.subr.bf16.mxu0 0
    %274 = vmatpush1.bf16.msra.mxu0 0
    %275 = vmatprep.subr.bf16.mxu0 0
    %276 = vmatpush1.bf16.msra.mxu0 0
    %277 = vmatprep.subr.bf16.mxu0 0
    %278 = vmatpush1.bf16.msra.mxu0 0
    %279 = vmatprep.subr.bf16.mxu0 0
    %280 = vmatpush1.bf16.msra.mxu0 0
    %281 = vmatprep.subr.bf16.mxu0 0
    %282 = vmatpush1.bf16.msra.mxu0 0
    %283 = vmatprep.subr.bf16.mxu0 0
    %284 = vmatpush1.bf16.msra.mxu0 0
    %285 = vmatprep.subr.bf16.mxu0 0
    %286 = vmatpush1.bf16.msra.mxu0 0
    %287 = vmatprep.subr.bf16.mxu0 0
    %288 = vmatpush1.bf16.msra.mxu0 0
    %289 = vmatprep.subr.bf16.mxu0 0
    %290 = vmatpush1.bf16.msra.mxu0 0
    %291 = vmatprep.subr.bf16.mxu0 0
    %292 = vmatpush1.bf16.msra.mxu0 0
    %293 = vmatprep.subr.bf16.mxu0 0
    %294 = vmatpush1.bf16.msra.mxu0 0
    %295 = vmatprep.subr.bf16.mxu0 0
    %296 = vmatpush1.bf16.msra.mxu0 0
    %297 = vmatprep.mubr.bf16.mxu0 0
    %298 = vmatmul.mubr.bf16.gmra.mrb[0].mxu0 %v214
    %v299 = vpop.f32.mrb[0].mxu0
    %v300 = vadd.f32 %v115, %v299
    %v301 = vpop.f32.mrb[0].mxu0
    %v302 = vpop.f32.mrb[0].mxu0
    %v303 = vadd.f32 %v115, %v302
    %v304 = vpop.f32.mrb[0].mxu0
    %305 = vmatprep.mubr.bf16.mxu0 0
    %306 = vmatmul.mubr.bf16.gmra.mrb[0].mxu0 %v217
    %v307 = vpop.f32.mrb[0].mxu0
    %v308 = vadd.f32 %v115, %v307
    %v309 = vpop.f32.mrb[0].mxu0
    %v310 = vpop.f32.mrb[0].mxu0
    %v311 = vadd.f32 %v115, %v310
    %v312 = vpop.f32.mrb[0].mxu0
    %313 = vmatprep.mubr.bf16.mxu0 0
    %314 = vmatmul.mubr.bf16.gmra.mrb[0].mxu0 %v220
    %v315 = vpop.f32.mrb[0].mxu0
    %v316 = vadd.f32 %v115, %v315
    %v317 = vpop.f32.mrb[0].mxu0
    %v318 = vpop.f32.mrb[0].mxu0
    %v319 = vadd.f32 %v115, %v318
    %v320 = vpop.f32.mrb[0].mxu0
    %321 = vmatprep.mubr.bf16.mxu0 0
    %322 = vmatmul.mubr.bf16.gmra.mrb[0].mxu0 %v223
    %v323 = vpop.f32.mrb[0].mxu0
    %v324 = vadd.f32 %v115, %v323
    %v325 = vpop.f32.mrb[0].mxu0
    %v326 = vpop.f32.mrb[0].mxu0
    %v327 = vadd.f32 %v115, %v326
    %v328 = vpop.f32.mrb[0].mxu0
    %329 = vmatprep.mubr.bf16.mxu0 0
    %330 = vmatmul.mubr.bf16.gmra.mrb[0].mxu0 %v226
    %v331 = vpop.f32.mrb[0].mxu0
    %v332 = vadd.f32 %v115, %v331
    %v333 = vpop.f32.mrb[0].mxu0
    %v334 = vpop.f32.mrb[0].mxu0
    %v335 = vadd.f32 %v115, %v334
    %v336 = vpop.f32.mrb[0].mxu0
    %337 = vmatprep.mubr.bf16.mxu0 0
    %338 = vmatmul.mubr.bf16.gmra.mrb[0].mxu0 %v229
    %v339 = vpop.f32.mrb[0].mxu0
    %v340 = vadd.f32 %v115, %v339
    %v341 = vpop.f32.mrb[0].mxu0
    %v342 = vpop.f32.mrb[0].mxu0
    %v343 = vadd.f32 %v115, %v342
    %v344 = vpop.f32.mrb[0].mxu0
    %345 = vmatprep.mubr.bf16.mxu0 0
    %346 = vmatmul.mubr.bf16.gmra.mrb[0].mxu0 %v232
    %v347 = vpop.f32.mrb[0].mxu0
    %v348 = vadd.f32 %v115, %v347
    %v349 = vpop.f32.mrb[0].mxu0
    %v350 = vpop.f32.mrb[0].mxu0
    %v351 = vadd.f32 %v115, %v350
    %v352 = vpop.f32.mrb[0].mxu0
    %353 = vmatprep.mubr.bf16.mxu0 0
    %354 = vmatmul.mubr.bf16.gmra.mrb[0].mxu0 %v235
    %v355 = vpop.f32.mrb[0].mxu0
    %v356 = vadd.f32 %v115, %v355
    %v357 = vpop.f32.mrb[0].mxu0
    %v358 = vpop.f32.mrb[0].mxu0
    %v359 = vadd.f32 %v115, %v358
    %v360 = vpop.f32.mrb[0].mxu0
    %361 = vmatprep.mubr.bf16.mxu0 0
    %362 = vmatmul.mubr.bf16.gmra.mrb[0].mxu0 %v238
    %v363 = vpop.f32.mrb[0].mxu0
    %v364 = vadd.f32 %v115, %v363
    %v365 = vpop.f32.mrb[0].mxu0
    %v366 = vpop.f32.mrb[0].mxu0
    %v367 = vadd.f32 %v115, %v366
    %v368 = vpop.f32.mrb[0].mxu0
    %369 = vmatprep.mubr.bf16.mxu0 0
    %370 = vmatmul.mubr.bf16.gmra.mrb[0].mxu0 %v241
    %v371 = vpop.f32.mrb[0].mxu0
    %v372 = vadd.f32 %v115, %v371
    %v373 = vpop.f32.mrb[0].mxu0
    %v374 = vpop.f32.mrb[0].mxu0
    %v375 = vadd.f32 %v115, %v374
    %v376 = vpop.f32.mrb[0].mxu0
    %377 = vmatprep.mubr.bf16.mxu0 0
    %378 = vmatmul.mubr.bf16.gmra.mrb[0].mxu0 %v244
    %v379 = vpop.f32.mrb[0].mxu0
    %v380 = vadd.f32 %v115, %v379
    %v381 = vpop.f32.mrb[0].mxu0
    %v382 = vpop.f32.mrb[0].mxu0
    %v383 = vadd.f32 %v115, %v382
    %v384 = vpop.f32.mrb[0].mxu0
    %385 = vmatprep.mubr.bf16.mxu0 0
    %386 = vmatmul.mubr.bf16.gmra.mrb[0].mxu0 %v247
    %v387 = vpop.f32.mrb[0].mxu0
    %v388 = vadd.f32 %v115, %v387
    %v389 = vpop.f32.mrb[0].mxu0
    %v390 = vpop.f32.mrb[0].mxu0
    %v391 = vadd.f32 %v115, %v390
    %v392 = vpop.f32.mrb[0].mxu0
    %393 = vmatprep.mubr.bf16.mxu0 0
    %394 = vmatmul.mubr.bf16.gmra.mrb[0].mxu0 %v250
    %v395 = vpop.f32.mrb[0].mxu0
    %v396 = vadd.f32 %v115, %v395
    %v397 = vpop.f32.mrb[0].mxu0
    %v398 = vpop.f32.mrb[0].mxu0
    %v399 = vadd.f32 %v115, %v398
    %v400 = vpop.f32.mrb[0].mxu0
    %401 = vmatprep.mubr.bf16.mxu0 0
    %402 = vmatmul.mubr.bf16.gmra.mrb[0].mxu0 %v253
    %v403 = vpop.f32.mrb[0].mxu0
    %v404 = vadd.f32 %v115, %v403
    %v405 = vpop.f32.mrb[0].mxu0
    %v406 = vpop.f32.mrb[0].mxu0
    %v407 = vadd.f32 %v115, %v406
    %v408 = vpop.f32.mrb[0].mxu0
    %409 = vmatprep.mubr.bf16.mxu0 0
    %410 = vmatmul.mubr.bf16.gmra.mrb[0].mxu0 %v256
    %v411 = vpop.f32.mrb[0].mxu0
    %v412 = vadd.f32 %v115, %v411
    %v413 = vpop.f32.mrb[0].mxu0
    %v414 = vpop.f32.mrb[0].mxu0
    %v415 = vadd.f32 %v115, %v414
    %v416 = vpop.f32.mrb[0].mxu0
    %417 = vmatprep.mubr.bf16.mxu0 0
    %418 = vmatmul.mubr.bf16.gmra.mrb[0].mxu0 %v259
    %v419 = vpop.f32.mrb[0].mxu0
    %v420 = vadd.f32 %v115, %v419
    %v421 = vpop.f32.mrb[0].mxu0
    %v422 = vpop.f32.mrb[0].mxu0
    %v423 = vadd.f32 %v115, %v422
    %v424 = vpop.f32.mrb[0].mxu0
    %425 = vdwg.mxu0
    %v426 = vmul.f32 %v300, 0.2
    %v427 = vmul.f32 %v303, 0.2
    %v428 = vmul.f32 %v308, 0.2
    %v429 = vmul.f32 %v311, 0.2
    %v430 = vmul.f32 %v316, 0.2
    %v431 = vmul.f32 %v319, 0.2
    %v432 = vmul.f32 %v324, 0.2
    %v433 = vmul.f32 %v327, 0.2
    %v434 = vmul.f32 %v332, 0.2
    %v435 = vmul.f32 %v335, 0.2
    %v436 = vmul.f32 %v340, 0.2
    %v437 = vmul.f32 %v343, 0.2
    %v438 = vmul.f32 %v348, 0.2
    %v439 = vmul.f32 %v351, 0.2
    %v440 = vmul.f32 %v356, 0.2
    %v441 = vmul.f32 %v359, 0.2
    %v442 = vmul.f32 %v364, 0.2
    %v443 = vmul.f32 %v367, 0.2
    %v444 = vmul.f32 %v372, 0.2
    %v445 = vmul.f32 %v375, 0.2
    %v446 = vmul.f32 %v380, 0.2
    %v447 = vmul.f32 %v383, 0.2
    %v448 = vmul.f32 %v388, 0.2
    %v449 = vmul.f32 %v391, 0.2
    %v450 = vmul.f32 %v396, 0.2
    %v451 = vmul.f32 %v399, 0.2
    %v452 = vmul.f32 %v404, 0.2
    %v453 = vmul.f32 %v407, 0.2
    %v454 = vmul.f32 %v412, 0.2
    %v455 = vmul.f32 %v415, 0.2
    %v456 = vmul.f32 %v420, 0.2
    %v457 = vmul.f32 %v423, 0.2
    %v458 = vmax.f32 %v300, %v426
    %v459 = vmax.f32 %v303, %v427
    %v460 = vmax.f32 %v308, %v428
    %v461 = vmax.f32 %v311, %v429
    %v462 = vmax.f32 %v316, %v430
    %v463 = vmax.f32 %v319, %v431
    %v464 = vmax.f32 %v324, %v432
    %v465 = vmax.f32 %v327, %v433
    %v466 = vmax.f32 %v332, %v434
    %v467 = vmax.f32 %v335, %v435
    %v468 = vmax.f32 %v340, %v436
    %v469 = vmax.f32 %v343, %v437
    %v470 = vmax.f32 %v348, %v438
    %v471 = vmax.f32 %v351, %v439
    %v472 = vmax.f32 %v356, %v440
    %v473 = vmax.f32 %v359, %v441
    %v474 = vmax.f32 %v364, %v442
    %v475 = vmax.f32 %v367, %v443
    %v476 = vmax.f32 %v372, %v444
    %v477 = vmax.f32 %v375, %v445
    %v478 = vmax.f32 %v380, %v446
    %v479 = vmax.f32 %v383, %v447
    %v480 = vmax.f32 %v388, %v448
    %v481 = vmax.f32 %v391, %v449
    %v482 = vmax.f32 %v396, %v450
    %v483 = vmax.f32 %v399, %v451
    %v484 = vmax.f32 %v404, %v452
    %v485 = vmax.f32 %v407, %v453
    %v486 = vmax.f32 %v412, %v454
    %v487 = vmax.f32 %v415, %v455
    %v488 = vmax.f32 %v420, %v456
    %v489 = vmax.f32 %v423, %v457
    %v490 = vpack.c.bf16 %v459, %v458
    %v491 = vpack.c.bf16 %v461, %v460
    %v492 = vpack.c.bf16 %v463, %v462
    %v493 = vpack.c.bf16 %v465, %v464
    %v494 = vpack.c.bf16 %v467, %v466
    %v495 = vpack.c.bf16 %v469, %v468
    %v496 = vpack.c.bf16 %v471, %v470
    %v497 = vpack.c.bf16 %v473, %v472
    %v498 = vpack.c.bf16 %v475, %v474
    %v499 = vpack.c.bf16 %v477, %v476
    %v500 = vpack.c.bf16 %v479, %v478
    %v501 = vpack.c.bf16 %v481, %v480
    %v502 = vpack.c.bf16 %v483, %v482
    %v503 = vpack.c.bf16 %v485, %v484
    %v504 = vpack.c.bf16 %v487, %v486
    %v505 = vpack.c.bf16 %v489, %v488
    %v506 = vld [vmem:[%s3] sm:$0xff]
    %v507 = vld [vmem:[%s3 + $0x8] sm:$0xff]
    %v508 = vld [vmem:[%s3 + $0x10] sm:$0xff]
    %v509 = vld [vmem:[%s3 + $0x18] sm:$0xff]
    %v510 = vld [vmem:[%s3 + $0x20] sm:$0xff]
    %v511 = vld [vmem:[%s3 + $0x28] sm:$0xff]
    %v512 = vld [vmem:[%s3 + $0x30] sm:$0xff]
    %v513 = vld [vmem:[%s3 + $0x38] sm:$0xff]
    %v514 = vld [vmem:[%s3 + $0x40] sm:$0xff]
    %v515 = vld [vmem:[%s3 + $0x48] sm:$0xff]
    %v516 = vld [vmem:[%s3 + $0x50] sm:$0xff]
    %v517 = vld [vmem:[%s3 + $0x58] sm:$0xff]
    %v518 = vld [vmem:[%s3 + $0x60] sm:$0xff]
    %v519 = vld [vmem:[%s3 + $0x68] sm:$0xff]
    %v520 = vld [vmem:[%s3 + $0x70] sm:$0xff]
    %v521 = vld [vmem:[%s3 + $0x78] sm:$0xff]
    %v522 = vld [vmem:[%s4] sm:$0x3]
    %v524 = vlaneseq
    %v525 = vshrl.u32 %v524, 7
    %v526 = vsub.s32 0, %v525
    %v527 = vrot.slane %v522, %v526
    %v528 = vlaneseq
    %v529 = vshrl.u32 %v528, 7
    %v530 = vsub.s32 1, %v529
    %v531 = vrot.slane %v522, %v530
    %v550 = vunpack.c.l.b16 %v506
    %v551 = vunpack.c.h.b16 %v506
    %v552 = vunpack.c.l.b16 %v507
    %v553 = vunpack.c.h.b16 %v507
    %v554 = vunpack.c.l.b16 %v508
    %v555 = vunpack.c.h.b16 %v508
    %v556 = vunpack.c.l.b16 %v509
    %v557 = vunpack.c.h.b16 %v509
    %v558 = vunpack.c.l.b16 %v510
    %v559 = vunpack.c.h.b16 %v510
    %v560 = vunpack.c.l.b16 %v511
    %v561 = vunpack.c.h.b16 %v511
    %v562 = vunpack.c.l.b16 %v512
    %v563 = vunpack.c.h.b16 %v512
    %v564 = vunpack.c.l.b16 %v513
    %v565 = vunpack.c.h.b16 %v513
    %v566 = vunpack.c.l.b16 %v514
    %v567 = vunpack.c.h.b16 %v514
    %v568 = vunpack.c.l.b16 %v515
    %v569 = vunpack.c.h.b16 %v515
    %v570 = vunpack.c.l.b16 %v516
    %v571 = vunpack.c.h.b16 %v516
    %v572 = vunpack.c.l.b16 %v517
    %v573 = vunpack.c.h.b16 %v517
    %v574 = vunpack.c.l.b16 %v518
    %v575 = vunpack.c.h.b16 %v518
    %v576 = vunpack.c.l.b16 %v519
    %v577 = vunpack.c.h.b16 %v519
    %v578 = vunpack.c.l.b16 %v520
    %v579 = vunpack.c.h.b16 %v520
    %v580 = vunpack.c.l.b16 %v521
    %v581 = vunpack.c.h.b16 %v521
    %v582 = vpack.c.b16 %v552, %v550
    %v583 = vpack.c.b16 %v553, %v551
    %v584 = vpack.c.b16 %v556, %v554
    %v585 = vpack.c.b16 %v557, %v555
    %v586 = vpack.c.b16 %v560, %v558
    %v587 = vpack.c.b16 %v561, %v559
    %v588 = vpack.c.b16 %v564, %v562
    %v589 = vpack.c.b16 %v565, %v563
    %v590 = vpack.c.b16 %v568, %v566
    %v591 = vpack.c.b16 %v569, %v567
    %v592 = vpack.c.b16 %v572, %v570
    %v593 = vpack.c.b16 %v573, %v571
    %v594 = vpack.c.b16 %v576, %v574
    %v595 = vpack.c.b16 %v577, %v575
    %v596 = vpack.c.b16 %v580, %v578
    %v597 = vpack.c.b16 %v581, %v579
    %614 = vmatprep.subr.bf16.mxu0 %v583
    %615 = vmatpush1.bf16.msra.mxu0 %v582
    %616 = vmatprep.subr.bf16.mxu0 %v585
    %617 = vmatpush1.bf16.msra.mxu0 %v584
    %618 = vmatprep.subr.bf16.mxu0 %v587
    %619 = vmatpush1.bf16.msra.mxu0 %v586
    %620 = vmatprep.subr.bf16.mxu0 %v589
    %621 = vmatpush1.bf16.msra.mxu0 %v588
    %622 = vmatprep.subr.bf16.mxu0 %v591
    %623 = vmatpush1.bf16.msra.mxu0 %v590
    %624 = vmatprep.subr.bf16.mxu0 %v593
    %625 = vmatpush1.bf16.msra.mxu0 %v592
    %626 = vmatprep.subr.bf16.mxu0 %v595
    %627 = vmatpush1.bf16.msra.mxu0 %v594
    %628 = vmatprep.subr.bf16.mxu0 %v597
    %629 = vmatpush1.bf16.msra.mxu0 %v596
    %630 = vmatprep.subr.bf16.mxu0 0
    %631 = vmatpush1.bf16.msra.mxu0 0
    %632 = vmatprep.subr.bf16.mxu0 0
    %633 = vmatpush1.bf16.msra.mxu0 0
    %634 = vmatprep.subr.bf16.mxu0 0
    %635 = vmatpush1.bf16.msra.mxu0 0
    %636 = vmatprep.subr.bf16.mxu0 0
    %637 = vmatpush1.bf16.msra.mxu0 0
    %638 = vmatprep.subr.bf16.mxu0 0
    %639 = vmatpush1.bf16.msra.mxu0 0
    %640 = vmatprep.subr.bf16.mxu0 0
    %641 = vmatpush1.bf16.msra.mxu0 0
    %642 = vmatprep.subr.bf16.mxu0 0
    %643 = vmatpush1.bf16.msra.mxu0 0
    %644 = vmatprep.subr.bf16.mxu0 0
    %645 = vmatpush1.bf16.msra.mxu0 0
    %646 = vmatprep.mubr.bf16.mxu0 0
    %647 = vmatmul.mubr.bf16.gmra.mrb[0].mxu0 %v490
    %v648 = vpop.f32.mrb[0].mxu0
    %v649 = vadd.f32 %v527, %v648
    %v650 = vpop.f32.mrb[0].mxu0
    %v651 = vadd.f32 %v531, %v650
    %v652 = vpop.f32.mrb[0].mxu0
    %v653 = vadd.f32 %v527, %v652
    %v654 = vpop.f32.mrb[0].mxu0
    %v655 = vadd.f32 %v531, %v654
    %656 = vmatprep.mubr.bf16.mxu0 0
    %657 = vmatmul.mubr.bf16.gmra.mrb[0].mxu0 %v491
    %v658 = vpop.f32.mrb[0].mxu0
    %v659 = vadd.f32 %v527, %v658
    %v660 = vpop.f32.mrb[0].mxu0
    %v661 = vadd.f32 %v531, %v660
    %v662 = vpop.f32.mrb[0].mxu0
    %v663 = vadd.f32 %v527, %v662
    %v664 = vpop.f32.mrb[0].mxu0
    %v665 = vadd.f32 %v531, %v664
    %666 = vmatprep.mubr.bf16.mxu0 0
    %667 = vmatmul.mubr.bf16.gmra.mrb[0].mxu0 %v492
    %v668 = vpop.f32.mrb[0].mxu0
    %v669 = vadd.f32 %v527, %v668
    %v670 = vpop.f32.mrb[0].mxu0
    %v671 = vadd.f32 %v531, %v670
    %v672 = vpop.f32.mrb[0].mxu0
    %v673 = vadd.f32 %v527, %v672
    %v674 = vpop.f32.mrb[0].mxu0
    %v675 = vadd.f32 %v531, %v674
    %676 = vmatprep.mubr.bf16.mxu0 0
    %677 = vmatmul.mubr.bf16.gmra.mrb[0].mxu0 %v493
    %v678 = vpop.f32.mrb[0].mxu0
    %v679 = vadd.f32 %v527, %v678
    %v680 = vpop.f32.mrb[0].mxu0
    %v681 = vadd.f32 %v531, %v680
    %v682 = vpop.f32.mrb[0].mxu0
    %v683 = vadd.f32 %v527, %v682
    %v684 = vpop.f32.mrb[0].mxu0
    %v685 = vadd.f32 %v531, %v684
    %686 = vmatprep.mubr.bf16.mxu0 0
    %687 = vmatmul.mubr.bf16.gmra.mrb[0].mxu0 %v494
    %v688 = vpop.f32.mrb[0].mxu0
    %v689 = vadd.f32 %v527, %v688
    %v690 = vpop.f32.mrb[0].mxu0
    %v691 = vadd.f32 %v531, %v690
    %v692 = vpop.f32.mrb[0].mxu0
    %v693 = vadd.f32 %v527, %v692
    %v694 = vpop.f32.mrb[0].mxu0
    %v695 = vadd.f32 %v531, %v694
    %696 = vmatprep.mubr.bf16.mxu0 0
    %697 = vmatmul.mubr.bf16.gmra.mrb[0].mxu0 %v495
    %v698 = vpop.f32.mrb[0].mxu0
    %v699 = vadd.f32 %v527, %v698
    %v700 = vpop.f32.mrb[0].mxu0
    %v701 = vadd.f32 %v531, %v700
    %v702 = vpop.f32.mrb[0].mxu0
    %v703 = vadd.f32 %v527, %v702
    %v704 = vpop.f32.mrb[0].mxu0
    %v705 = vadd.f32 %v531, %v704
    %706 = vmatprep.mubr.bf16.mxu0 0
    %707 = vmatmul.mubr.bf16.gmra.mrb[0].mxu0 %v496
    %v708 = vpop.f32.mrb[0].mxu0
    %v709 = vadd.f32 %v527, %v708
    %v710 = vpop.f32.mrb[0].mxu0
    %v711 = vadd.f32 %v531, %v710
    %v712 = vpop.f32.mrb[0].mxu0
    %v713 = vadd.f32 %v527, %v712
    %v714 = vpop.f32.mrb[0].mxu0
    %v715 = vadd.f32 %v531, %v714
    %716 = vmatprep.mubr.bf16.mxu0 0
    %717 = vmatmul.mubr.bf16.gmra.mrb[0].mxu0 %v497
    %v718 = vpop.f32.mrb[0].mxu0
    %v719 = vadd.f32 %v527, %v718
    %v720 = vpop.f32.mrb[0].mxu0
    %v721 = vadd.f32 %v531, %v720
    %v722 = vpop.f32.mrb[0].mxu0
    %v723 = vadd.f32 %v527, %v722
    %v724 = vpop.f32.mrb[0].mxu0
    %v725 = vadd.f32 %v531, %v724
    %726 = vmatprep.mubr.bf16.mxu0 0
    %727 = vmatmul.mubr.bf16.gmra.mrb[0].mxu0 %v498
    %v728 = vpop.f32.mrb[0].mxu0
    %v729 = vadd.f32 %v527, %v728
    %v730 = vpop.f32.mrb[0].mxu0
    %v731 = vadd.f32 %v531, %v730
    %v732 = vpop.f32.mrb[0].mxu0
    %v733 = vadd.f32 %v527, %v732
    %v734 = vpop.f32.mrb[0].mxu0
    %v735 = vadd.f32 %v531, %v734
    %736 = vmatprep.mubr.bf16.mxu0 0
    %737 = vmatmul.mubr.bf16.gmra.mrb[0].mxu0 %v499
    %v738 = vpop.f32.mrb[0].mxu0
    %v739 = vadd.f32 %v527, %v738
    %v740 = vpop.f32.mrb[0].mxu0
    %v741 = vadd.f32 %v531, %v740
    %v742 = vpop.f32.mrb[0].mxu0
    %v743 = vadd.f32 %v527, %v742
    %v744 = vpop.f32.mrb[0].mxu0
    %v745 = vadd.f32 %v531, %v744
    %746 = vmatprep.mubr.bf16.mxu0 0
    %747 = vmatmul.mubr.bf16.gmra.mrb[0].mxu0 %v500
    %v748 = vpop.f32.mrb[0].mxu0
    %v749 = vadd.f32 %v527, %v748
    %v750 = vpop.f32.mrb[0].mxu0
    %v751 = vadd.f32 %v531, %v750
    %v752 = vpop.f32.mrb[0].mxu0
    %v753 = vadd.f32 %v527, %v752
    %v754 = vpop.f32.mrb[0].mxu0
    %v755 = vadd.f32 %v531, %v754
    %756 = vmatprep.mubr.bf16.mxu0 0
    %757 = vmatmul.mubr.bf16.gmra.mrb[0].mxu0 %v501
    %v758 = vpop.f32.mrb[0].mxu0
    %v759 = vadd.f32 %v527, %v758
    %v760 = vpop.f32.mrb[0].mxu0
    %v761 = vadd.f32 %v531, %v760
    %v762 = vpop.f32.mrb[0].mxu0
    %v763 = vadd.f32 %v527, %v762
    %v764 = vpop.f32.mrb[0].mxu0
    %v765 = vadd.f32 %v531, %v764
    %766 = vmatprep.mubr.bf16.mxu0 0
    %767 = vmatmul.mubr.bf16.gmra.mrb[0].mxu0 %v502
    %v768 = vpop.f32.mrb[0].mxu0
    %v769 = vadd.f32 %v527, %v768
    %v770 = vpop.f32.mrb[0].mxu0
    %v771 = vadd.f32 %v531, %v770
    %v772 = vpop.f32.mrb[0].mxu0
    %v773 = vadd.f32 %v527, %v772
    %v774 = vpop.f32.mrb[0].mxu0
    %v775 = vadd.f32 %v531, %v774
    %776 = vmatprep.mubr.bf16.mxu0 0
    %777 = vmatmul.mubr.bf16.gmra.mrb[0].mxu0 %v503
    %v778 = vpop.f32.mrb[0].mxu0
    %v779 = vadd.f32 %v527, %v778
    %v780 = vpop.f32.mrb[0].mxu0
    %v781 = vadd.f32 %v531, %v780
    %v782 = vpop.f32.mrb[0].mxu0
    %v783 = vadd.f32 %v527, %v782
    %v784 = vpop.f32.mrb[0].mxu0
    %v785 = vadd.f32 %v531, %v784
    %786 = vmatprep.mubr.bf16.mxu0 0
    %787 = vmatmul.mubr.bf16.gmra.mrb[0].mxu0 %v504
    %v788 = vpop.f32.mrb[0].mxu0
    %v789 = vadd.f32 %v527, %v788
    %v790 = vpop.f32.mrb[0].mxu0
    %v791 = vadd.f32 %v531, %v790
    %v792 = vpop.f32.mrb[0].mxu0
    %v793 = vadd.f32 %v527, %v792
    %v794 = vpop.f32.mrb[0].mxu0
    %v795 = vadd.f32 %v531, %v794
    %796 = vmatprep.mubr.bf16.mxu0 0
    %797 = vmatmul.mubr.bf16.gmra.mrb[0].mxu0 %v505
    %v798 = vpop.f32.mrb[0].mxu0
    %v799 = vadd.f32 %v527, %v798
    %v800 = vpop.f32.mrb[0].mxu0
    %v801 = vadd.f32 %v531, %v800
    %v802 = vpop.f32.mrb[0].mxu0
    %v803 = vadd.f32 %v527, %v802
    %v804 = vpop.f32.mrb[0].mxu0
    %v805 = vadd.f32 %v531, %v804
    %806 = vdwg.mxu0
    %v807 = vld [vmem:[%s5] sm:$0x3]
    %v808 = vld [vmem:[%s6] sm:$0x3]
    %v809 = vadd.f32 %v649, %v653
    %v810 = vadd.f32 %v809, %v659
    %v811 = vadd.f32 %v810, %v663
    %v812 = vadd.f32 %v811, %v669
    %v813 = vadd.f32 %v812, %v673
    %v814 = vadd.f32 %v813, %v679
    %v815 = vadd.f32 %v814, %v683
    %v816 = vadd.f32 %v815, %v689
    %v817 = vadd.f32 %v816, %v693
    %v818 = vadd.f32 %v817, %v699
    %v819 = vadd.f32 %v818, %v703
    %v820 = vadd.f32 %v819, %v709
    %v821 = vadd.f32 %v820, %v713
    %v822 = vadd.f32 %v821, %v719
    %v823 = vadd.f32 %v822, %v723
    %v824 = vadd.f32 %v823, %v729
    %v825 = vadd.f32 %v824, %v733
    %v826 = vadd.f32 %v825, %v739
    %v827 = vadd.f32 %v826, %v743
    %v828 = vadd.f32 %v827, %v749
    %v829 = vadd.f32 %v828, %v753
    %v830 = vadd.f32 %v829, %v759
    %v831 = vadd.f32 %v830, %v763
    %v832 = vadd.f32 %v831, %v769
    %v833 = vadd.f32 %v832, %v773
    %v834 = vadd.f32 %v833, %v779
    %v835 = vadd.f32 %v834, %v783
    %v836 = vadd.f32 %v835, %v789
    %v837 = vadd.f32 %v836, %v793
    %v838 = vadd.f32 %v837, %v799
    %v839 = vadd.f32 %v838, %v803
    %v840 = vrot.slane %v839, 4
    %v841 = vadd.f32 %v839, %v840
    %v842 = vrot.slane %v841, 2
    %v843 = vadd.f32 %v841, %v842
    %v844 = vrot.slane %v843, 1
    %v845 = vadd.f32 %v843, %v844
    %v846 = vadd.f32 %v651, %v655
    %v847 = vadd.f32 %v846, %v661
    %v848 = vadd.f32 %v847, %v665
    %v849 = vadd.f32 %v848, %v671
    %v850 = vadd.f32 %v849, %v675
    %v851 = vadd.f32 %v850, %v681
    %v852 = vadd.f32 %v851, %v685
    %v853 = vadd.f32 %v852, %v691
    %v854 = vadd.f32 %v853, %v695
    %v855 = vadd.f32 %v854, %v701
    %v856 = vadd.f32 %v855, %v705
    %v857 = vadd.f32 %v856, %v711
    %v858 = vadd.f32 %v857, %v715
    %v859 = vadd.f32 %v858, %v721
    %v860 = vadd.f32 %v859, %v725
    %v861 = vadd.f32 %v860, %v731
    %v862 = vadd.f32 %v861, %v735
    %v863 = vadd.f32 %v862, %v741
    %v864 = vadd.f32 %v863, %v745
    %v865 = vadd.f32 %v864, %v751
    %v866 = vadd.f32 %v865, %v755
    %v867 = vadd.f32 %v866, %v761
    %v868 = vadd.f32 %v867, %v765
    %v869 = vadd.f32 %v868, %v771
    %v870 = vadd.f32 %v869, %v775
    %v871 = vadd.f32 %v870, %v781
    %v872 = vadd.f32 %v871, %v785
    %v873 = vadd.f32 %v872, %v791
    %v874 = vadd.f32 %v873, %v795
    %v875 = vadd.f32 %v874, %v801
    %v876 = vadd.f32 %v875, %v805
    %v877 = vrot.slane %v876, 4
    %v878 = vadd.f32 %v876, %v877
    %v879 = vrot.slane %v878, 2
    %v880 = vadd.f32 %v878, %v879
    %v881 = vrot.slane %v880, 1
    %v882 = vadd.f32 %v880, %v881
    %v883 = vmul.f32 %v845, 0.00390625
    %v884 = vmul.f32 %v882, 0.00390625
    %v885 = vsub.f32 %v649, %v883
    %v886 = vsub.f32 %v651, %v884
    %v887 = vsub.f32 %v653, %v883
    %v888 = vsub.f32 %v655, %v884
    %v889 = vsub.f32 %v659, %v883
    %v890 = vsub.f32 %v661, %v884
    %v891 = vsub.f32 %v663, %v883
    %v892 = vsub.f32 %v665, %v884
    %v893 = vsub.f32 %v669, %v883
    %v894 = vsub.f32 %v671, %v884
    %v895 = vsub.f32 %v673, %v883
    %v896 = vsub.f32 %v675, %v884
    %v897 = vsub.f32 %v679, %v883
    %v898 = vsub.f32 %v681, %v884
    %v899 = vsub.f32 %v683, %v883
    %v900 = vsub.f32 %v685, %v884
    %v901 = vsub.f32 %v689, %v883
    %v902 = vsub.f32 %v691, %v884
    %v903 = vsub.f32 %v693, %v883
    %v904 = vsub.f32 %v695, %v884
    %v905 = vsub.f32 %v699, %v883
    %v906 = vsub.f32 %v701, %v884
    %v907 = vsub.f32 %v703, %v883
    %v908 = vsub.f32 %v705, %v884
    %v909 = vsub.f32 %v709, %v883
    %v910 = vsub.f32 %v711, %v884
    %v911 = vsub.f32 %v713, %v883
    %v912 = vsub.f32 %v715, %v884
    %v913 = vsub.f32 %v719, %v883
    %v914 = vsub.f32 %v721, %v884
    %v915 = vsub.f32 %v723, %v883
    %v916 = vsub.f32 %v725, %v884
    %v917 = vsub.f32 %v729, %v883
    %v918 = vsub.f32 %v731, %v884
    %v919 = vsub.f32 %v733, %v883
    %v920 = vsub.f32 %v735, %v884
    %v921 = vsub.f32 %v739, %v883
    %v922 = vsub.f32 %v741, %v884
    %v923 = vsub.f32 %v743, %v883
    %v924 = vsub.f32 %v745, %v884
    %v925 = vsub.f32 %v749, %v883
    %v926 = vsub.f32 %v751, %v884
    %v927 = vsub.f32 %v753, %v883
    %v928 = vsub.f32 %v755, %v884
    %v929 = vsub.f32 %v759, %v883
    %v930 = vsub.f32 %v761, %v884
    %v931 = vsub.f32 %v763, %v883
    %v932 = vsub.f32 %v765, %v884
    %v933 = vsub.f32 %v769, %v883
    %v934 = vsub.f32 %v771, %v884
    %v935 = vsub.f32 %v773, %v883
    %v936 = vsub.f32 %v775, %v884
    %v937 = vsub.f32 %v779, %v883
    %v938 = vsub.f32 %v781, %v884
    %v939 = vsub.f32 %v783, %v883
    %v940 = vsub.f32 %v785, %v884
    %v941 = vsub.f32 %v789, %v883
    %v942 = vsub.f32 %v791, %v884
    %v943 = vsub.f32 %v793, %v883
    %v944 = vsub.f32 %v795, %v884
    %v945 = vsub.f32 %v799, %v883
    %v946 = vsub.f32 %v801, %v884
    %v947 = vsub.f32 %v803, %v883
    %v948 = vsub.f32 %v805, %v884
    %v949 = vmul.f32 %v885, %v885
    %v950 = vmul.f32 %v886, %v886
    %v951 = vmul.f32 %v887, %v887
    %v952 = vmul.f32 %v888, %v888
    %v953 = vmul.f32 %v889, %v889
    %v954 = vmul.f32 %v890, %v890
    %v955 = vmul.f32 %v891, %v891
    %v956 = vmul.f32 %v892, %v892
    %v957 = vmul.f32 %v893, %v893
    %v958 = vmul.f32 %v894, %v894
    %v959 = vmul.f32 %v895, %v895
    %v960 = vmul.f32 %v896, %v896
    %v961 = vmul.f32 %v897, %v897
    %v962 = vmul.f32 %v898, %v898
    %v963 = vmul.f32 %v899, %v899
    %v964 = vmul.f32 %v900, %v900
    %v965 = vmul.f32 %v901, %v901
    %v966 = vmul.f32 %v902, %v902
    %v967 = vmul.f32 %v903, %v903
    %v968 = vmul.f32 %v904, %v904
    %v969 = vmul.f32 %v905, %v905
    %v970 = vmul.f32 %v906, %v906
    %v971 = vmul.f32 %v907, %v907
    %v972 = vmul.f32 %v908, %v908
    %v973 = vmul.f32 %v909, %v909
    %v974 = vmul.f32 %v910, %v910
    %v975 = vmul.f32 %v911, %v911
    %v976 = vmul.f32 %v912, %v912
    %v977 = vmul.f32 %v913, %v913
    %v978 = vmul.f32 %v914, %v914
    %v979 = vmul.f32 %v915, %v915
    %v980 = vmul.f32 %v916, %v916
    %v981 = vmul.f32 %v917, %v917
    %v982 = vmul.f32 %v918, %v918
    %v983 = vmul.f32 %v919, %v919
    %v984 = vmul.f32 %v920, %v920
    %v985 = vmul.f32 %v921, %v921
    %v986 = vmul.f32 %v922, %v922
    %v987 = vmul.f32 %v923, %v923
    %v988 = vmul.f32 %v924, %v924
    %v989 = vmul.f32 %v925, %v925
    %v990 = vmul.f32 %v926, %v926
    %v991 = vmul.f32 %v927, %v927
    %v992 = vmul.f32 %v928, %v928
    %v993 = vmul.f32 %v929, %v929
    %v994 = vmul.f32 %v930, %v930
    %v995 = vmul.f32 %v931, %v931
    %v996 = vmul.f32 %v932, %v932
    %v997 = vmul.f32 %v933, %v933
    %v998 = vmul.f32 %v934, %v934
    %v999 = vmul.f32 %v935, %v935
    %v1000 = vmul.f32 %v936, %v936
    %v1001 = vmul.f32 %v937, %v937
    %v1002 = vmul.f32 %v938, %v938
    %v1003 = vmul.f32 %v939, %v939
    %v1004 = vmul.f32 %v940, %v940
    %v1005 = vmul.f32 %v941, %v941
    %v1006 = vmul.f32 %v942, %v942
    %v1007 = vmul.f32 %v943, %v943
    %v1008 = vmul.f32 %v944, %v944
    %v1009 = vmul.f32 %v945, %v945
    %v1010 = vmul.f32 %v946, %v946
    %v1011 = vmul.f32 %v947, %v947
    %v1012 = vmul.f32 %v948, %v948
    %v1013 = vadd.f32 %v949, %v951
    %v1014 = vadd.f32 %v1013, %v953
    %v1015 = vadd.f32 %v1014, %v955
    %v1016 = vadd.f32 %v1015, %v957
    %v1017 = vadd.f32 %v1016, %v959
    %v1018 = vadd.f32 %v1017, %v961
    %v1019 = vadd.f32 %v1018, %v963
    %v1020 = vadd.f32 %v1019, %v965
    %v1021 = vadd.f32 %v1020, %v967
    %v1022 = vadd.f32 %v1021, %v969
    %v1023 = vadd.f32 %v1022, %v971
    %v1024 = vadd.f32 %v1023, %v973
    %v1025 = vadd.f32 %v1024, %v975
    %v1026 = vadd.f32 %v1025, %v977
    %v1027 = vadd.f32 %v1026, %v979
    %v1028 = vadd.f32 %v1027, %v981
    %v1029 = vadd.f32 %v1028, %v983
    %v1030 = vadd.f32 %v1029, %v985
    %v1031 = vadd.f32 %v1030, %v987
    %v1032 = vadd.f32 %v1031, %v989
    %v1033 = vadd.f32 %v1032, %v991
    %v1034 = vadd.f32 %v1033, %v993
    %v1035 = vadd.f32 %v1034, %v995
    %v1036 = vadd.f32 %v1035, %v997
    %v1037 = vadd.f32 %v1036, %v999
    %v1038 = vadd.f32 %v1037, %v1001
    %v1039 = vadd.f32 %v1038, %v1003
    %v1040 = vadd.f32 %v1039, %v1005
    %v1041 = vadd.f32 %v1040, %v1007
    %v1042 = vadd.f32 %v1041, %v1009
    %v1043 = vadd.f32 %v1042, %v1011
    %v1044 = vrot.slane %v1043, 4
    %v1045 = vadd.f32 %v1043, %v1044
    %v1046 = vrot.slane %v1045, 2
    %v1047 = vadd.f32 %v1045, %v1046
    %v1048 = vrot.slane %v1047, 1
    %v1049 = vadd.f32 %v1047, %v1048
    %v1050 = vadd.f32 %v950, %v952
    %v1051 = vadd.f32 %v1050, %v954
    %v1052 = vadd.f32 %v1051, %v956
    %v1053 = vadd.f32 %v1052, %v958
    %v1054 = vadd.f32 %v1053, %v960
    %v1055 = vadd.f32 %v1054, %v962
    %v1056 = vadd.f32 %v1055, %v964
    %v1057 = vadd.f32 %v1056, %v966
    %v1058 = vadd.f32 %v1057, %v968
    %v1059 = vadd.f32 %v1058, %v970
    %v1060 = vadd.f32 %v1059, %v972
    %v1061 = vadd.f32 %v1060, %v974
    %v1062 = vadd.f32 %v1061, %v976
    %v1063 = vadd.f32 %v1062, %v978
    %v1064 = vadd.f32 %v1063, %v980
    %v1065 = vadd.f32 %v1064, %v982
    %v1066 = vadd.f32 %v1065, %v984
    %v1067 = vadd.f32 %v1066, %v986
    %v1068 = vadd.f32 %v1067, %v988
    %v1069 = vadd.f32 %v1068, %v990
    %v1070 = vadd.f32 %v1069, %v992
    %v1071 = vadd.f32 %v1070, %v994
    %v1072 = vadd.f32 %v1071, %v996
    %v1073 = vadd.f32 %v1072, %v998
    %v1074 = vadd.f32 %v1073, %v1000
    %v1075 = vadd.f32 %v1074, %v1002
    %v1076 = vadd.f32 %v1075, %v1004
    %v1077 = vadd.f32 %v1076, %v1006
    %v1078 = vadd.f32 %v1077, %v1008
    %v1079 = vadd.f32 %v1078, %v1010
    %v1080 = vadd.f32 %v1079, %v1012
    %v1081 = vrot.slane %v1080, 4
    %v1082 = vadd.f32 %v1080, %v1081
    %v1083 = vrot.slane %v1082, 2
    %v1084 = vadd.f32 %v1082, %v1083
    %v1085 = vrot.slane %v1084, 1
    %v1086 = vadd.f32 %v1084, %v1085
    %v1087 = vmul.f32 %v1049, 0.00390625
    %v1088 = vmul.f32 %v1086, 0.00390625
    %v1089 = vadd.f32 %v1087, 0.8
    %v1090 = vadd.f32 %v1088, 0.8
    %v1091 = vrsqrt.pop %v1089
    %v1092 = vrsqrt.pop %v1090
    %v1095 = vcombine.low %v1091, %v1092
    %v1097 = vunpack.c.l.s4 1966171168
    %v1098 = vunpack.c.0.s8 %v1097
    %v1099 = vlaneseq
    %v1100 = vshrl.u32 %v1099, 7
    %v1101 = vsub.s32 %v1098, %v1100
    %v1102 = vrot.slane %v1095, %v1101
    %v1104 = vunpack.c.l.s4 1966171168
    %v1105 = vunpack.c.0.s8 %v1104
    %v1106 = vlaneseq
    %v1107 = vshrl.u32 %v1106, 7
    %v1108 = vsub.s32 %v1105, %v1107
    %v1109 = vrot.slane %v1102, %v1108
    %v1111 = vmul.f32 %v807, %v1109
    %v1113 = vlaneseq
    %v1114 = vshrl.u32 %v1113, 7
    %v1115 = vsub.s32 0, %v1114
    %v1116 = vrot.slane %v1111, %v1115
    %v1117 = vlaneseq
    %v1118 = vshrl.u32 %v1117, 7
    %v1119 = vsub.s32 1, %v1118
    %v1120 = vrot.slane %v1111, %v1119
    %v1123 = vmul.f32 %v885, %v1116
    %v1124 = vmul.f32 %v886, %v1120
    %v1125 = vmul.f32 %v887, %v1116
    %v1126 = vmul.f32 %v888, %v1120
    %v1127 = vmul.f32 %v889, %v1116
    %v1128 = vmul.f32 %v890, %v1120
    %v1129 = vmul.f32 %v891, %v1116
    %v1130 = vmul.f32 %v892, %v1120
    %v1131 = vmul.f32 %v893, %v1116
    %v1132 = vmul.f32 %v894, %v1120
    %v1133 = vmul.f32 %v895, %v1116
    %v1134 = vmul.f32 %v896, %v1120
    %v1135 = vmul.f32 %v897, %v1116
    %v1136 = vmul.f32 %v898, %v1120
    %v1137 = vmul.f32 %v899, %v1116
    %v1138 = vmul.f32 %v900, %v1120
    %v1139 = vmul.f32 %v901, %v1116
    %v1140 = vmul.f32 %v902, %v1120
    %v1141 = vmul.f32 %v903, %v1116
    %v1142 = vmul.f32 %v904, %v1120
    %v1143 = vmul.f32 %v905, %v1116
    %v1144 = vmul.f32 %v906, %v1120
    %v1145 = vmul.f32 %v907, %v1116
    %v1146 = vmul.f32 %v908, %v1120
    %v1147 = vmul.f32 %v909, %v1116
    %v1148 = vmul.f32 %v910, %v1120
    %v1149 = vmul.f32 %v911, %v1116
    %v1150 = vmul.f32 %v912, %v1120
    %v1151 = vmul.f32 %v913, %v1116
    %v1152 = vmul.f32 %v914, %v1120
    %v1153 = vmul.f32 %v915, %v1116
    %v1154 = vmul.f32 %v916, %v1120
    %v1155 = vmul.f32 %v917, %v1116
    %v1156 = vmul.f32 %v918, %v1120
    %v1157 = vmul.f32 %v919, %v1116
    %v1158 = vmul.f32 %v920, %v1120
    %v1159 = vmul.f32 %v921, %v1116
    %v1160 = vmul.f32 %v922, %v1120
    %v1161 = vmul.f32 %v923, %v1116
    %v1162 = vmul.f32 %v924, %v1120
    %v1163 = vmul.f32 %v925, %v1116
    %v1164 = vmul.f32 %v926, %v1120
    %v1165 = vmul.f32 %v927, %v1116
    %v1166 = vmul.f32 %v928, %v1120
    %v1167 = vmul.f32 %v929, %v1116
    %v1168 = vmul.f32 %v930, %v1120
    %v1169 = vmul.f32 %v931, %v1116
    %v1170 = vmul.f32 %v932, %v1120
    %v1171 = vmul.f32 %v933, %v1116
    %v1172 = vmul.f32 %v934, %v1120
    %v1173 = vmul.f32 %v935, %v1116
    %v1174 = vmul.f32 %v936, %v1120
    %v1175 = vmul.f32 %v937, %v1116
    %v1176 = vmul.f32 %v938, %v1120
    %v1177 = vmul.f32 %v939, %v1116
    %v1178 = vmul.f32 %v940, %v1120
    %v1179 = vmul.f32 %v941, %v1116
    %v1180 = vmul.f32 %v942, %v1120
    %v1181 = vmul.f32 %v943, %v1116
    %v1182 = vmul.f32 %v944, %v1120
    %v1183 = vmul.f32 %v945, %v1116
    %v1184 = vmul.f32 %v946, %v1120
    %v1185 = vmul.f32 %v947, %v1116
    %v1186 = vmul.f32 %v948, %v1120
    %v1188 = vlaneseq
    %v1189 = vshrl.u32 %v1188, 7
    %v1190 = vsub.s32 0, %v1189
    %v1191 = vrot.slane %v808, %v1190
    %v1192 = vlaneseq
    %v1193 = vshrl.u32 %v1192, 7
    %v1194 = vsub.s32 1, %v1193
    %v1195 = vrot.slane %v808, %v1194
    %v1198 = vadd.f32 %v1123, %v1191
    %v1199 = vadd.f32 %v1124, %v1195
    %v1200 = vadd.f32 %v1125, %v1191
    %v1201 = vadd.f32 %v1126, %v1195
    %v1202 = vadd.f32 %v1127, %v1191
    %v1203 = vadd.f32 %v1128, %v1195
    %v1204 = vadd.f32 %v1129, %v1191
    %v1205 = vadd.f32 %v1130, %v1195
    %v1206 = vadd.f32 %v1131, %v1191
    %v1207 = vadd.f32 %v1132, %v1195
    %v1208 = vadd.f32 %v1133, %v1191
    %v1209 = vadd.f32 %v1134, %v1195
    %v1210 = vadd.f32 %v1135, %v1191
    %v1211 = vadd.f32 %v1136, %v1195
    %v1212 = vadd.f32 %v1137, %v1191
    %v1213 = vadd.f32 %v1138, %v1195
    %v1214 = vadd.f32 %v1139, %v1191
    %v1215 = vadd.f32 %v1140, %v1195
    %v1216 = vadd.f32 %v1141, %v1191
    %v1217 = vadd.f32 %v1142, %v1195
    %v1218 = vadd.f32 %v1143, %v1191
    %v1219 = vadd.f32 %v1144, %v1195
    %v1220 = vadd.f32 %v1145, %v1191
    %v1221 = vadd.f32 %v1146, %v1195
    %v1222 = vadd.f32 %v1147, %v1191
    %v1223 = vadd.f32 %v1148, %v1195
    %v1224 = vadd.f32 %v1149, %v1191
    %v1225 = vadd.f32 %v1150, %v1195
    %v1226 = vadd.f32 %v1151, %v1191
    %v1227 = vadd.f32 %v1152, %v1195
    %v1228 = vadd.f32 %v1153, %v1191
    %v1229 = vadd.f32 %v1154, %v1195
    %v1230 = vadd.f32 %v1155, %v1191
    %v1231 = vadd.f32 %v1156, %v1195
    %v1232 = vadd.f32 %v1157, %v1191
    %v1233 = vadd.f32 %v1158, %v1195
    %v1234 = vadd.f32 %v1159, %v1191
    %v1235 = vadd.f32 %v1160, %v1195
    %v1236 = vadd.f32 %v1161, %v1191
    %v1237 = vadd.f32 %v1162, %v1195
    %v1238 = vadd.f32 %v1163, %v1191
    %v1239 = vadd.f32 %v1164, %v1195
    %v1240 = vadd.f32 %v1165, %v1191
    %v1241 = vadd.f32 %v1166, %v1195
    %v1242 = vadd.f32 %v1167, %v1191
    %v1243 = vadd.f32 %v1168, %v1195
    %v1244 = vadd.f32 %v1169, %v1191
    %v1245 = vadd.f32 %v1170, %v1195
    %v1246 = vadd.f32 %v1171, %v1191
    %v1247 = vadd.f32 %v1172, %v1195
    %v1248 = vadd.f32 %v1173, %v1191
    %v1249 = vadd.f32 %v1174, %v1195
    %v1250 = vadd.f32 %v1175, %v1191
    %v1251 = vadd.f32 %v1176, %v1195
    %v1252 = vadd.f32 %v1177, %v1191
    %v1253 = vadd.f32 %v1178, %v1195
    %v1254 = vadd.f32 %v1179, %v1191
    %v1255 = vadd.f32 %v1180, %v1195
    %v1256 = vadd.f32 %v1181, %v1191
    %v1257 = vadd.f32 %v1182, %v1195
    %v1258 = vadd.f32 %v1183, %v1191
    %v1259 = vadd.f32 %v1184, %v1195
    %v1260 = vadd.f32 %v1185, %v1191
    %v1261 = vadd.f32 %v1186, %v1195
    %v1262 = vmul.f32 %v1198, 0.2
    %v1263 = vmul.f32 %v1199, 0.2
    %v1264 = vmul.f32 %v1200, 0.2
    %v1265 = vmul.f32 %v1201, 0.2
    %v1266 = vmul.f32 %v1202, 0.2
    %v1267 = vmul.f32 %v1203, 0.2
    %v1268 = vmul.f32 %v1204, 0.2
    %v1269 = vmul.f32 %v1205, 0.2
    %v1270 = vmul.f32 %v1206, 0.2
    %v1271 = vmul.f32 %v1207, 0.2
    %v1272 = vmul.f32 %v1208, 0.2
    %v1273 = vmul.f32 %v1209, 0.2
    %v1274 = vmul.f32 %v1210, 0.2
    %v1275 = vmul.f32 %v1211, 0.2
    %v1276 = vmul.f32 %v1212, 0.2
    %v1277 = vmul.f32 %v1213, 0.2
    %v1278 = vmul.f32 %v1214, 0.2
    %v1279 = vmul.f32 %v1215, 0.2
    %v1280 = vmul.f32 %v1216, 0.2
    %v1281 = vmul.f32 %v1217, 0.2
    %v1282 = vmul.f32 %v1218, 0.2
    %v1283 = vmul.f32 %v1219, 0.2
    %v1284 = vmul.f32 %v1220, 0.2
    %v1285 = vmul.f32 %v1221, 0.2
    %v1286 = vmul.f32 %v1222, 0.2
    %v1287 = vmul.f32 %v1223, 0.2
    %v1288 = vmul.f32 %v1224, 0.2
    %v1289 = vmul.f32 %v1225, 0.2
    %v1290 = vmul.f32 %v1226, 0.2
    %v1291 = vmul.f32 %v1227, 0.2
    %v1292 = vmul.f32 %v1228, 0.2
    %v1293 = vmul.f32 %v1229, 0.2
    %v1294 = vmul.f32 %v1230, 0.2
    %v1295 = vmul.f32 %v1231, 0.2
    %v1296 = vmul.f32 %v1232, 0.2
    %v1297 = vmul.f32 %v1233, 0.2
    %v1298 = vmul.f32 %v1234, 0.2
    %v1299 = vmul.f32 %v1235, 0.2
    %v1300 = vmul.f32 %v1236, 0.2
    %v1301 = vmul.f32 %v1237, 0.2
    %v1302 = vmul.f32 %v1238, 0.2
    %v1303 = vmul.f32 %v1239, 0.2
    %v1304 = vmul.f32 %v1240, 0.2
    %v1305 = vmul.f32 %v1241, 0.2
    %v1306 = vmul.f32 %v1242, 0.2
    %v1307 = vmul.f32 %v1243, 0.2
    %v1308 = vmul.f32 %v1244, 0.2
    %v1309 = vmul.f32 %v1245, 0.2
    %v1310 = vmul.f32 %v1246, 0.2
    %v1311 = vmul.f32 %v1247, 0.2
    %v1312 = vmul.f32 %v1248, 0.2
    %v1313 = vmul.f32 %v1249, 0.2
    %v1314 = vmul.f32 %v1250, 0.2
    %v1315 = vmul.f32 %v1251, 0.2
    %v1316 = vmul.f32 %v1252, 0.2
    %v1317 = vmul.f32 %v1253, 0.2
    %v1318 = vmul.f32 %v1254, 0.2
    %v1319 = vmul.f32 %v1255, 0.2
    %v1320 = vmul.f32 %v1256, 0.2
    %v1321 = vmul.f32 %v1257, 0.2
    %v1322 = vmul.f32 %v1258, 0.2
    %v1323 = vmul.f32 %v1259, 0.2
    %v1324 = vmul.f32 %v1260, 0.2
    %v1325 = vmul.f32 %v1261, 0.2
    %v1326 = vmax.f32 %v1198, %v1262
    %v1327 = vmax.f32 %v1199, %v1263
    %v1328 = vmax.f32 %v1200, %v1264
    %v1329 = vmax.f32 %v1201, %v1265
    %v1330 = vmax.f32 %v1202, %v1266
    %v1331 = vmax.f32 %v1203, %v1267
    %v1332 = vmax.f32 %v1204, %v1268
    %v1333 = vmax.f32 %v1205, %v1269
    %v1334 = vmax.f32 %v1206, %v1270
    %v1335 = vmax.f32 %v1207, %v1271
    %v1336 = vmax.f32 %v1208, %v1272
    %v1337 = vmax.f32 %v1209, %v1273
    %v1338 = vmax.f32 %v1210, %v1274
    %v1339 = vmax.f32 %v1211, %v1275
    %v1340 = vmax.f32 %v1212, %v1276
    %v1341 = vmax.f32 %v1213, %v1277
    %v1342 = vmax.f32 %v1214, %v1278
    %v1343 = vmax.f32 %v1215, %v1279
    %v1344 = vmax.f32 %v1216, %v1280
    %v1345 = vmax.f32 %v1217, %v1281
    %v1346 = vmax.f32 %v1218, %v1282
    %v1347 = vmax.f32 %v1219, %v1283
    %v1348 = vmax.f32 %v1220, %v1284
    %v1349 = vmax.f32 %v1221, %v1285
    %v1350 = vmax.f32 %v1222, %v1286
    %v1351 = vmax.f32 %v1223, %v1287
    %v1352 = vmax.f32 %v1224, %v1288
    %v1353 = vmax.f32 %v1225, %v1289
    %v1354 = vmax.f32 %v1226, %v1290
    %v1355 = vmax.f32 %v1227, %v1291
    %v1356 = vmax.f32 %v1228, %v1292
    %v1357 = vmax.f32 %v1229, %v1293
    %v1358 = vmax.f32 %v1230, %v1294
    %v1359 = vmax.f32 %v1231, %v1295
    %v1360 = vmax.f32 %v1232, %v1296
    %v1361 = vmax.f32 %v1233, %v1297
    %v1362 = vmax.f32 %v1234, %v1298
    %v1363 = vmax.f32 %v1235, %v1299
    %v1364 = vmax.f32 %v1236, %v1300
    %v1365 = vmax.f32 %v1237, %v1301
    %v1366 = vmax.f32 %v1238, %v1302
    %v1367 = vmax.f32 %v1239, %v1303
    %v1368 = vmax.f32 %v1240, %v1304
    %v1369 = vmax.f32 %v1241, %v1305
    %v1370 = vmax.f32 %v1242, %v1306
    %v1371 = vmax.f32 %v1243, %v1307
    %v1372 = vmax.f32 %v1244, %v1308
    %v1373 = vmax.f32 %v1245, %v1309
    %v1374 = vmax.f32 %v1246, %v1310
    %v1375 = vmax.f32 %v1247, %v1311
    %v1376 = vmax.f32 %v1248, %v1312
    %v1377 = vmax.f32 %v1249, %v1313
    %v1378 = vmax.f32 %v1250, %v1314
    %v1379 = vmax.f32 %v1251, %v1315
    %v1380 = vmax.f32 %v1252, %v1316
    %v1381 = vmax.f32 %v1253, %v1317
    %v1382 = vmax.f32 %v1254, %v1318
    %v1383 = vmax.f32 %v1255, %v1319
    %v1384 = vmax.f32 %v1256, %v1320
    %v1385 = vmax.f32 %v1257, %v1321
    %v1386 = vmax.f32 %v1258, %v1322
    %v1387 = vmax.f32 %v1259, %v1323
    %v1388 = vmax.f32 %v1260, %v1324
    %v1389 = vmax.f32 %v1261, %v1325
    %v1390 = vpack.c.bf16 %v1328, %v1326
    %v1391 = vpack.c.bf16 %v1329, %v1327
    %v1392 = vpack.c.bf16 %v1332, %v1330
    %v1393 = vpack.c.bf16 %v1333, %v1331
    %v1394 = vpack.c.bf16 %v1336, %v1334
    %v1395 = vpack.c.bf16 %v1337, %v1335
    %v1396 = vpack.c.bf16 %v1340, %v1338
    %v1397 = vpack.c.bf16 %v1341, %v1339
    %v1398 = vpack.c.bf16 %v1344, %v1342
    %v1399 = vpack.c.bf16 %v1345, %v1343
    %v1400 = vpack.c.bf16 %v1348, %v1346
    %v1401 = vpack.c.bf16 %v1349, %v1347
    %v1402 = vpack.c.bf16 %v1352, %v1350
    %v1403 = vpack.c.bf16 %v1353, %v1351
    %v1404 = vpack.c.bf16 %v1356, %v1354
    %v1405 = vpack.c.bf16 %v1357, %v1355
    %v1406 = vpack.c.bf16 %v1360, %v1358
    %v1407 = vpack.c.bf16 %v1361, %v1359
    %v1408 = vpack.c.bf16 %v1364, %v1362
    %v1409 = vpack.c.bf16 %v1365, %v1363
    %v1410 = vpack.c.bf16 %v1368, %v1366
    %v1411 = vpack.c.bf16 %v1369, %v1367
    %v1412 = vpack.c.bf16 %v1372, %v1370
    %v1413 = vpack.c.bf16 %v1373, %v1371
    %v1414 = vpack.c.bf16 %v1376, %v1374
    %v1415 = vpack.c.bf16 %v1377, %v1375
    %v1416 = vpack.c.bf16 %v1380, %v1378
    %v1417 = vpack.c.bf16 %v1381, %v1379
    %v1418 = vpack.c.bf16 %v1384, %v1382
    %v1419 = vpack.c.bf16 %v1385, %v1383
    %v1420 = vpack.c.bf16 %v1388, %v1386
    %v1421 = vpack.c.bf16 %v1389, %v1387
    %v1422 = vld [vmem:[#allocation2] sm:$0xff]
    %v1423 = vld [vmem:[#allocation2 + $0x8] sm:$0xff]
    %v1424 = vld [vmem:[#allocation2 + $0x10] sm:$0xff]
    %v1425 = vld [vmem:[#allocation2 + $0x18] sm:$0xff]
    %v1426 = vld [vmem:[#allocation2 + $0x20] sm:$0xff]
    %v1427 = vld [vmem:[#allocation2 + $0x28] sm:$0xff]
    %v1428 = vld [vmem:[#allocation2 + $0x30] sm:$0xff]
    %v1429 = vld [vmem:[#allocation2 + $0x38] sm:$0xff]
    %v1430 = vld [vmem:[#allocation2 + $0x40] sm:$0xff]
    %v1431 = vld [vmem:[#allocation2 + $0x48] sm:$0xff]
    %v1432 = vld [vmem:[#allocation2 + $0x50] sm:$0xff]
    %v1433 = vld [vmem:[#allocation2 + $0x58] sm:$0xff]
    %v1434 = vld [vmem:[#allocation2 + $0x60] sm:$0xff]
    %v1435 = vld [vmem:[#allocation2 + $0x68] sm:$0xff]
    %v1436 = vld [vmem:[#allocation2 + $0x70] sm:$0xff]
    %v1437 = vld [vmem:[#allocation2 + $0x78] sm:$0xff]
    %v1438 = vld [vmem:[#allocation2 + $0x80] sm:$0xff]
    %v1439 = vld [vmem:[#allocation2 + $0x88] sm:$0xff]
    %v1440 = vld [vmem:[#allocation2 + $0x90] sm:$0xff]
    %v1441 = vld [vmem:[#allocation2 + $0x98] sm:$0xff]
    %v1442 = vld [vmem:[#allocation2 + $0xa0] sm:$0xff]
    %v1443 = vld [vmem:[#allocation2 + $0xa8] sm:$0xff]
    %v1444 = vld [vmem:[#allocation2 + $0xb0] sm:$0xff]
    %v1445 = vld [vmem:[#allocation2 + $0xb8] sm:$0xff]
    %v1446 = vld [vmem:[#allocation2 + $0xc0] sm:$0xff]
    %v1447 = vld [vmem:[#allocation2 + $0xc8] sm:$0xff]
    %v1448 = vld [vmem:[#allocation2 + $0xd0] sm:$0xff]
    %v1449 = vld [vmem:[#allocation2 + $0xd8] sm:$0xff]
    %v1450 = vld [vmem:[#allocation2 + $0xe0] sm:$0xff]
    %v1451 = vld [vmem:[#allocation2 + $0xe8] sm:$0xff]
    %v1452 = vld [vmem:[#allocation2 + $0xf0] sm:$0xff]
    %v1453 = vld [vmem:[#allocation2 + $0xf8] sm:$0xff]
    %v1454 = vld [vmem:[#allocation2 + $0x100] sm:$0xff]
    %v1455 = vld [vmem:[#allocation2 + $0x108] sm:$0xff]
    %v1456 = vld [vmem:[#allocation2 + $0x110] sm:$0xff]
    %v1457 = vld [vmem:[#allocation2 + $0x118] sm:$0xff]
    %v1458 = vld [vmem:[#allocation2 + $0x120] sm:$0xff]
    %v1459 = vld [vmem:[#allocation2 + $0x128] sm:$0xff]
    %v1460 = vld [vmem:[#allocation2 + $0x130] sm:$0xff]
    %v1461 = vld [vmem:[#allocation2 + $0x138] sm:$0xff]
    %v1462 = vld [vmem:[#allocation2 + $0x140] sm:$0xff]
    %v1463 = vld [vmem:[#allocation2 + $0x148] sm:$0xff]
    %v1464 = vld [vmem:[#allocation2 + $0x150] sm:$0xff]
    %v1465 = vld [vmem:[#allocation2 + $0x158] sm:$0xff]
    %v1466 = vld [vmem:[#allocation2 + $0x160] sm:$0xff]
    %v1467 = vld [vmem:[#allocation2 + $0x168] sm:$0xff]
    %v1468 = vld [vmem:[#allocation2 + $0x170] sm:$0xff]
    %v1469 = vld [vmem:[#allocation2 + $0x178] sm:$0xff]
    %v1470 = vld [vmem:[#allocation2 + $0x180] sm:$0xff]
    %v1471 = vld [vmem:[#allocation2 + $0x188] sm:$0xff]
    %v1472 = vld [vmem:[#allocation2 + $0x190] sm:$0xff]
    %v1473 = vld [vmem:[#allocation2 + $0x198] sm:$0xff]
    %v1474 = vld [vmem:[#allocation2 + $0x1a0] sm:$0xff]
    %v1475 = vld [vmem:[#allocation2 + $0x1a8] sm:$0xff]
    %v1476 = vld [vmem:[#allocation2 + $0x1b0] sm:$0xff]
    %v1477 = vld [vmem:[#allocation2 + $0x1b8] sm:$0xff]
    %v1478 = vld [vmem:[#allocation2 + $0x1c0] sm:$0xff]
    %v1479 = vld [vmem:[#allocation2 + $0x1c8] sm:$0xff]
    %v1480 = vld [vmem:[#allocation2 + $0x1d0] sm:$0xff]
    %v1481 = vld [vmem:[#allocation2 + $0x1d8] sm:$0xff]
    %v1482 = vld [vmem:[#allocation2 + $0x1e0] sm:$0xff]
    %v1483 = vld [vmem:[#allocation2 + $0x1e8] sm:$0xff]
    %v1484 = vld [vmem:[#allocation2 + $0x1f0] sm:$0xff]
    %v1485 = vld [vmem:[#allocation2 + $0x1f8] sm:$0xff]
    %v1486 = vld [vmem:[%s8] sm:$0xf]
    %v1488 = vlaneseq
    %v1489 = vshrl.u32 %v1488, 7
    %v1490 = vsub.s32 0, %v1489
    %v1491 = vrot.slane %v1486, %v1490
    %v1492 = vlaneseq
    %v1493 = vshrl.u32 %v1492, 7
    %v1494 = vsub.s32 1, %v1493
    %v1495 = vrot.slane %v1486, %v1494
    %v1496 = vlaneseq
    %v1497 = vshrl.u32 %v1496, 7
    %v1498 = vsub.s32 2, %v1497
    %v1499 = vrot.slane %v1486, %v1498
    %v1500 = vlaneseq
    %v1501 = vshrl.u32 %v1500, 7
    %v1502 = vsub.s32 3, %v1501
    %v1503 = vrot.slane %v1486, %v1502
    %v1572 = vunpack.c.l.b16 %v1422
    %v1573 = vunpack.c.h.b16 %v1422
    %v1574 = vunpack.c.l.b16 %v1423
    %v1575 = vunpack.c.h.b16 %v1423
    %v1576 = vunpack.c.l.b16 %v1424
    %v1577 = vunpack.c.h.b16 %v1424
    %v1578 = vunpack.c.l.b16 %v1425
    %v1579 = vunpack.c.h.b16 %v1425
    %v1580 = vunpack.c.l.b16 %v1426
    %v1581 = vunpack.c.h.b16 %v1426
    %v1582 = vunpack.c.l.b16 %v1427
    %v1583 = vunpack.c.h.b16 %v1427
    %v1584 = vunpack.c.l.b16 %v1428
    %v1585 = vunpack.c.h.b16 %v1428
    %v1586 = vunpack.c.l.b16 %v1429
    %v1587 = vunpack.c.h.b16 %v1429
    %v1588 = vunpack.c.l.b16 %v1430
    %v1589 = vunpack.c.h.b16 %v1430
    %v1590 = vunpack.c.l.b16 %v1431
    %v1591 = vunpack.c.h.b16 %v1431
    %v1592 = vunpack.c.l.b16 %v1432
    %v1593 = vunpack.c.h.b16 %v1432
    %v1594 = vunpack.c.l.b16 %v1433
    %v1595 = vunpack.c.h.b16 %v1433
    %v1596 = vunpack.c.l.b16 %v1434
    %v1597 = vunpack.c.h.b16 %v1434
    %v1598 = vunpack.c.l.b16 %v1435
    %v1599 = vunpack.c.h.b16 %v1435
    %v1600 = vunpack.c.l.b16 %v1436
    %v1601 = vunpack.c.h.b16 %v1436
    %v1602 = vunpack.c.l.b16 %v1437
    %v1603 = vunpack.c.h.b16 %v1437
    %v1604 = vunpack.c.l.b16 %v1438
    %v1605 = vunpack.c.h.b16 %v1438
    %v1606 = vunpack.c.l.b16 %v1439
    %v1607 = vunpack.c.h.b16 %v1439
    %v1608 = vunpack.c.l.b16 %v1440
    %v1609 = vunpack.c.h.b16 %v1440
    %v1610 = vunpack.c.l.b16 %v1441
    %v1611 = vunpack.c.h.b16 %v1441
    %v1612 = vunpack.c.l.b16 %v1442
    %v1613 = vunpack.c.h.b16 %v1442
    %v1614 = vunpack.c.l.b16 %v1443
    %v1615 = vunpack.c.h.b16 %v1443
    %v1616 = vunpack.c.l.b16 %v1444
    %v1617 = vunpack.c.h.b16 %v1444
    %v1618 = vunpack.c.l.b16 %v1445
    %v1619 = vunpack.c.h.b16 %v1445
    %v1620 = vunpack.c.l.b16 %v1446
    %v1621 = vunpack.c.h.b16 %v1446
    %v1622 = vunpack.c.l.b16 %v1447
    %v1623 = vunpack.c.h.b16 %v1447
    %v1624 = vunpack.c.l.b16 %v1448
    %v1625 = vunpack.c.h.b16 %v1448
    %v1626 = vunpack.c.l.b16 %v1449
    %v1627 = vunpack.c.h.b16 %v1449
    %v1628 = vunpack.c.l.b16 %v1450
    %v1629 = vunpack.c.h.b16 %v1450
    %v1630 = vunpack.c.l.b16 %v1451
    %v1631 = vunpack.c.h.b16 %v1451
    %v1632 = vunpack.c.l.b16 %v1452
    %v1633 = vunpack.c.h.b16 %v1452
    %v1634 = vunpack.c.l.b16 %v1453
    %v1635 = vunpack.c.h.b16 %v1453
    %v1636 = vunpack.c.l.b16 %v1454
    %v1637 = vunpack.c.h.b16 %v1454
    %v1638 = vunpack.c.l.b16 %v1455
    %v1639 = vunpack.c.h.b16 %v1455
    %v1640 = vunpack.c.l.b16 %v1456
    %v1641 = vunpack.c.h.b16 %v1456
    %v1642 = vunpack.c.l.b16 %v1457
    %v1643 = vunpack.c.h.b16 %v1457
    %v1644 = vunpack.c.l.b16 %v1458
    %v1645 = vunpack.c.h.b16 %v1458
    %v1646 = vunpack.c.l.b16 %v1459
    %v1647 = vunpack.c.h.b16 %v1459
    %v1648 = vunpack.c.l.b16 %v1460
    %v1649 = vunpack.c.h.b16 %v1460
    %v1650 = vunpack.c.l.b16 %v1461
    %v1651 = vunpack.c.h.b16 %v1461
    %v1652 = vunpack.c.l.b16 %v1462
    %v1653 = vunpack.c.h.b16 %v1462
    %v1654 = vunpack.c.l.b16 %v1463
    %v1655 = vunpack.c.h.b16 %v1463
    %v1656 = vunpack.c.l.b16 %v1464
    %v1657 = vunpack.c.h.b16 %v1464
    %v1658 = vunpack.c.l.b16 %v1465
    %v1659 = vunpack.c.h.b16 %v1465
    %v1660 = vunpack.c.l.b16 %v1466
    %v1661 = vunpack.c.h.b16 %v1466
    %v1662 = vunpack.c.l.b16 %v1467
    %v1663 = vunpack.c.h.b16 %v1467
    %v1664 = vunpack.c.l.b16 %v1468
    %v1665 = vunpack.c.h.b16 %v1468
    %v1666 = vunpack.c.l.b16 %v1469
    %v1667 = vunpack.c.h.b16 %v1469
    %v1668 = vunpack.c.l.b16 %v1470
    %v1669 = vunpack.c.h.b16 %v1470
    %v1670 = vunpack.c.l.b16 %v1471
    %v1671 = vunpack.c.h.b16 %v1471
    %v1672 = vunpack.c.l.b16 %v1472
    %v1673 = vunpack.c.h.b16 %v1472
    %v1674 = vunpack.c.l.b16 %v1473
    %v1675 = vunpack.c.h.b16 %v1473
    %v1676 = vunpack.c.l.b16 %v1474
    %v1677 = vunpack.c.h.b16 %v1474
    %v1678 = vunpack.c.l.b16 %v1475
    %v1679 = vunpack.c.h.b16 %v1475
    %v1680 = vunpack.c.l.b16 %v1476
    %v1681 = vunpack.c.h.b16 %v1476
    %v1682 = vunpack.c.l.b16 %v1477
    %v1683 = vunpack.c.h.b16 %v1477
    %v1684 = vunpack.c.l.b16 %v1478
    %v1685 = vunpack.c.h.b16 %v1478
    %v1686 = vunpack.c.l.b16 %v1479
    %v1687 = vunpack.c.h.b16 %v1479
    %v1688 = vunpack.c.l.b16 %v1480
    %v1689 = vunpack.c.h.b16 %v1480
    %v1690 = vunpack.c.l.b16 %v1481
    %v1691 = vunpack.c.h.b16 %v1481
    %v1692 = vunpack.c.l.b16 %v1482
    %v1693 = vunpack.c.h.b16 %v1482
    %v1694 = vunpack.c.l.b16 %v1483
    %v1695 = vunpack.c.h.b16 %v1483
    %v1696 = vunpack.c.l.b16 %v1484
    %v1697 = vunpack.c.h.b16 %v1484
    %v1698 = vunpack.c.l.b16 %v1485
    %v1699 = vunpack.c.h.b16 %v1485
    %v1700 = vpack.c.b16 %v1576, %v1572
    %v1701 = vpack.c.b16 %v1577, %v1573
    %v1702 = vpack.c.b16 %v1578, %v1574
    %v1703 = vpack.c.b16 %v1579, %v1575
    %v1704 = vpack.c.b16 %v1584, %v1580
    %v1705 = vpack.c.b16 %v1585, %v1581
    %v1706 = vpack.c.b16 %v1586, %v1582
    %v1707 = vpack.c.b16 %v1587, %v1583
    %v1708 = vpack.c.b16 %v1592, %v1588
    %v1709 = vpack.c.b16 %v1593, %v1589
    %v1710 = vpack.c.b16 %v1594, %v1590
    %v1711 = vpack.c.b16 %v1595, %v1591
    %v1712 = vpack.c.b16 %v1600, %v1596
    %v1713 = vpack.c.b16 %v1601, %v1597
    %v1714 = vpack.c.b16 %v1602, %v1598
    %v1715 = vpack.c.b16 %v1603, %v1599
    %v1716 = vpack.c.b16 %v1608, %v1604
    %v1717 = vpack.c.b16 %v1609, %v1605
    %v1718 = vpack.c.b16 %v1610, %v1606
    %v1719 = vpack.c.b16 %v1611, %v1607
    %v1720 = vpack.c.b16 %v1616, %v1612
    %v1721 = vpack.c.b16 %v1617, %v1613
    %v1722 = vpack.c.b16 %v1618, %v1614
    %v1723 = vpack.c.b16 %v1619, %v1615
    %v1724 = vpack.c.b16 %v1624, %v1620
    %v1725 = vpack.c.b16 %v1625, %v1621
    %v1726 = vpack.c.b16 %v1626, %v1622
    %v1727 = vpack.c.b16 %v1627, %v1623
    %v1728 = vpack.c.b16 %v1632, %v1628
    %v1729 = vpack.c.b16 %v1633, %v1629
    %v1730 = vpack.c.b16 %v1634, %v1630
    %v1731 = vpack.c.b16 %v1635, %v1631
    %v1732 = vpack.c.b16 %v1640, %v1636
    %v1733 = vpack.c.b16 %v1641, %v1637
    %v1734 = vpack.c.b16 %v1642, %v1638
    %v1735 = vpack.c.b16 %v1643, %v1639
    %v1736 = vpack.c.b16 %v1648, %v1644
    %v1737 = vpack.c.b16 %v1649, %v1645
    %v1738 = vpack.c.b16 %v1650, %v1646
    %v1739 = vpack.c.b16 %v1651, %v1647
    %v1740 = vpack.c.b16 %v1656, %v1652
    %v1741 = vpack.c.b16 %v1657, %v1653
    %v1742 = vpack.c.b16 %v1658, %v1654
    %v1743 = vpack.c.b16 %v1659, %v1655
    %v1744 = vpack.c.b16 %v1664, %v1660
    %v1745 = vpack.c.b16 %v1665, %v1661
    %v1746 = vpack.c.b16 %v1666, %v1662
    %v1747 = vpack.c.b16 %v1667, %v1663
    %v1748 = vpack.c.b16 %v1672, %v1668
    %v1749 = vpack.c.b16 %v1673, %v1669
    %v1750 = vpack.c.b16 %v1674, %v1670
    %v1751 = vpack.c.b16 %v1675, %v1671
    %v1752 = vpack.c.b16 %v1680, %v1676
    %v1753 = vpack.c.b16 %v1681, %v1677
    %v1754 = vpack.c.b16 %v1682, %v1678
    %v1755 = vpack.c.b16 %v1683, %v1679
    %v1756 = vpack.c.b16 %v1688, %v1684
    %v1757 = vpack.c.b16 %v1689, %v1685
    %v1758 = vpack.c.b16 %v1690, %v1686
    %v1759 = vpack.c.b16 %v1691, %v1687
    %v1760 = vpack.c.b16 %v1696, %v1692
    %v1761 = vpack.c.b16 %v1697, %v1693
    %v1762 = vpack.c.b16 %v1698, %v1694
    %v1763 = vpack.c.b16 %v1699, %v1695
    %1828 = vmatprep.subr.bf16.mxu0 %v1701
    %1829 = vmatpush1.bf16.msra.mxu0 %v1700
    %1830 = vmatprep.subr.bf16.mxu0 %v1705
    %1831 = vmatpush1.bf16.msra.mxu0 %v1704
    %1832 = vmatprep.subr.bf16.mxu0 %v1709
    %1833 = vmatpush1.bf16.msra.mxu0 %v1708
    %1834 = vmatprep.subr.bf16.mxu0 %v1713
    %1835 = vmatpush1.bf16.msra.mxu0 %v1712
    %1836 = vmatprep.subr.bf16.mxu0 %v1717
    %1837 = vmatpush1.bf16.msra.mxu0 %v1716
    %1838 = vmatprep.subr.bf16.mxu0 %v1721
    %1839 = vmatpush1.bf16.msra.mxu0 %v1720
    %1840 = vmatprep.subr.bf16.mxu0 %v1725
    %1841 = vmatpush1.bf16.msra.mxu0 %v1724
    %1842 = vmatprep.subr.bf16.mxu0 %v1729
    %1843 = vmatpush1.bf16.msra.mxu0 %v1728
    %1844 = vmatprep.subr.bf16.mxu0 %v1733
    %1845 = vmatpush1.bf16.msra.mxu0 %v1732
    %1846 = vmatprep.subr.bf16.mxu0 %v1737
    %1847 = vmatpush1.bf16.msra.mxu0 %v1736
    %1848 = vmatprep.subr.bf16.mxu0 %v1741
    %1849 = vmatpush1.bf16.msra.mxu0 %v1740
    %1850 = vmatprep.subr.bf16.mxu0 %v1745
    %1851 = vmatpush1.bf16.msra.mxu0 %v1744
    %1852 = vmatprep.subr.bf16.mxu0 %v1749
    %1853 = vmatpush1.bf16.msra.mxu0 %v1748
    %1854 = vmatprep.subr.bf16.mxu0 %v1753
    %1855 = vmatpush1.bf16.msra.mxu0 %v1752
    %1856 = vmatprep.subr.bf16.mxu0 %v1757
    %1857 = vmatpush1.bf16.msra.mxu0 %v1756
    %1858 = vmatprep.subr.bf16.mxu0 %v1761
    %1859 = vmatpush1.bf16.msra.mxu0 %v1760
    %1860 = vmatprep.mubr.bf16.mxu0 %v1391
    %1861 = vmatmul.mubr.bf16.gmra.mrb[0].mxu0 %v1390
    %v1862 = vpop.f32.mrb[0].mxu0
    %v1863 = vadd.f32 %v1491, %v1862
    %v1864 = vpop.f32.mrb[0].mxu0
    %v1865 = vadd.f32 %v1495, %v1864
    %v1866 = vpop.f32.mrb[0].mxu0
    %v1867 = vadd.f32 %v1491, %v1866
    %v1868 = vpop.f32.mrb[0].mxu0
    %v1869 = vadd.f32 %v1495, %v1868
    %1870 = vmatprep.mubr.bf16.mxu0 %v1393
    %1871 = vmatmul.mubr.bf16.gmra.mrb[0].mxu0 %v1392
    %v1872 = vpop.f32.mrb[0].mxu0
    %v1873 = vadd.f32 %v1491, %v1872
    %v1874 = vpop.f32.mrb[0].mxu0
    %v1875 = vadd.f32 %v1495, %v1874
    %v1876 = vpop.f32.mrb[0].mxu0
    %v1877 = vadd.f32 %v1491, %v1876
    %v1878 = vpop.f32.mrb[0].mxu0
    %v1879 = vadd.f32 %v1495, %v1878
    %1880 = vmatprep.mubr.bf16.mxu0 %v1395
    %1881 = vmatmul.mubr.bf16.gmra.mrb[0].mxu0 %v1394
    %v1882 = vpop.f32.mrb[0].mxu0
    %v1883 = vadd.f32 %v1491, %v1882
    %v1884 = vpop.f32.mrb[0].mxu0
    %v1885 = vadd.f32 %v1495, %v1884
    %v1886 = vpop.f32.mrb[0].mxu0
    %v1887 = vadd.f32 %v1491, %v1886
    %v1888 = vpop.f32.mrb[0].mxu0
    %v1889 = vadd.f32 %v1495, %v1888
    %1890 = vmatprep.mubr.bf16.mxu0 %v1397
    %1891 = vmatmul.mubr.bf16.gmra.mrb[0].mxu0 %v1396
    %v1892 = vpop.f32.mrb[0].mxu0
    %v1893 = vadd.f32 %v1491, %v1892
    %v1894 = vpop.f32.mrb[0].mxu0
    %v1895 = vadd.f32 %v1495, %v1894
    %v1896 = vpop.f32.mrb[0].mxu0
    %v1897 = vadd.f32 %v1491, %v1896
    %v1898 = vpop.f32.mrb[0].mxu0
    %v1899 = vadd.f32 %v1495, %v1898
    %1900 = vmatprep.mubr.bf16.mxu0 %v1399
    %1901 = vmatmul.mubr.bf16.gmra.mrb[0].mxu0 %v1398
    %v1902 = vpop.f32.mrb[0].mxu0
    %v1903 = vadd.f32 %v1491, %v1902
    %v1904 = vpop.f32.mrb[0].mxu0
    %v1905 = vadd.f32 %v1495, %v1904
    %v1906 = vpop.f32.mrb[0].mxu0
    %v1907 = vadd.f32 %v1491, %v1906
    %v1908 = vpop.f32.mrb[0].mxu0
    %v1909 = vadd.f32 %v1495, %v1908
    %1910 = vmatprep.mubr.bf16.mxu0 %v1401
    %1911 = vmatmul.mubr.bf16.gmra.mrb[0].mxu0 %v1400
    %v1912 = vpop.f32.mrb[0].mxu0
    %v1913 = vadd.f32 %v1491, %v1912
    %v1914 = vpop.f32.mrb[0].mxu0
    %v1915 = vadd.f32 %v1495, %v1914
    %v1916 = vpop.f32.mrb[0].mxu0
    %v1917 = vadd.f32 %v1491, %v1916
    %v1918 = vpop.f32.mrb[0].mxu0
    %v1919 = vadd.f32 %v1495, %v1918
    %1920 = vmatprep.mubr.bf16.mxu0 %v1403
    %1921 = vmatmul.mubr.bf16.gmra.mrb[0].mxu0 %v1402
    %v1922 = vpop.f32.mrb[0].mxu0
    %v1923 = vadd.f32 %v1491, %v1922
    %v1924 = vpop.f32.mrb[0].mxu0
    %v1925 = vadd.f32 %v1495, %v1924
    %v1926 = vpop.f32.mrb[0].mxu0
    %v1927 = vadd.f32 %v1491, %v1926
    %v1928 = vpop.f32.mrb[0].mxu0
    %v1929 = vadd.f32 %v1495, %v1928
    %1930 = vmatprep.mubr.bf16.mxu0 %v1405
    %1931 = vmatmul.mubr.bf16.gmra.mrb[0].mxu0 %v1404
    %v1932 = vpop.f32.mrb[0].mxu0
    %v1933 = vadd.f32 %v1491, %v1932
    %v1934 = vpop.f32.mrb[0].mxu0
    %v1935 = vadd.f32 %v1495, %v1934
    %v1936 = vpop.f32.mrb[0].mxu0
    %v1937 = vadd.f32 %v1491, %v1936
    %v1938 = vpop.f32.mrb[0].mxu0
    %v1939 = vadd.f32 %v1495, %v1938
    %1940 = vmatprep.mubr.bf16.mxu0 %v1407
    %1941 = vmatmul.mubr.bf16.gmra.mrb[0].mxu0 %v1406
    %v1942 = vpop.f32.mrb[0].mxu0
    %v1943 = vadd.f32 %v1491, %v1942
    %v1944 = vpop.f32.mrb[0].mxu0
    %v1945 = vadd.f32 %v1495, %v1944
    %v1946 = vpop.f32.mrb[0].mxu0
    %v1947 = vadd.f32 %v1491, %v1946
    %v1948 = vpop.f32.mrb[0].mxu0
    %v1949 = vadd.f32 %v1495, %v1948
    %1950 = vmatprep.mubr.bf16.mxu0 %v1409
    %1951 = vmatmul.mubr.bf16.gmra.mrb[0].mxu0 %v1408
    %v1952 = vpop.f32.mrb[0].mxu0
    %v1953 = vadd.f32 %v1491, %v1952
    %v1954 = vpop.f32.mrb[0].mxu0
    %v1955 = vadd.f32 %v1495, %v1954
    %v1956 = vpop.f32.mrb[0].mxu0
    %v1957 = vadd.f32 %v1491, %v1956
    %v1958 = vpop.f32.mrb[0].mxu0
    %v1959 = vadd.f32 %v1495, %v1958
    %1960 = vmatprep.mubr.bf16.mxu0 %v1411
    %1961 = vmatmul.mubr.bf16.gmra.mrb[0].mxu0 %v1410
    %v1962 = vpop.f32.mrb[0].mxu0
    %v1963 = vadd.f32 %v1491, %v1962
    %v1964 = vpop.f32.mrb[0].mxu0
    %v1965 = vadd.f32 %v1495, %v1964
    %v1966 = vpop.f32.mrb[0].mxu0
    %v1967 = vadd.f32 %v1491, %v1966
    %v1968 = vpop.f32.mrb[0].mxu0
    %v1969 = vadd.f32 %v1495, %v1968
    %1970 = vmatprep.mubr.bf16.mxu0 %v1413
    %1971 = vmatmul.mubr.bf16.gmra.mrb[0].mxu0 %v1412
    %v1972 = vpop.f32.mrb[0].mxu0
    %v1973 = vadd.f32 %v1491, %v1972
    %v1974 = vpop.f32.mrb[0].mxu0
    %v1975 = vadd.f32 %v1495, %v1974
    %v1976 = vpop.f32.mrb[0].mxu0
    %v1977 = vadd.f32 %v1491, %v1976
    %v1978 = vpop.f32.mrb[0].mxu0
    %v1979 = vadd.f32 %v1495, %v1978
    %1980 = vmatprep.mubr.bf16.mxu0 %v1415
    %1981 = vmatmul.mubr.bf16.gmra.mrb[0].mxu0 %v1414
    %v1982 = vpop.f32.mrb[0].mxu0
    %v1983 = vadd.f32 %v1491, %v1982
    %v1984 = vpop.f32.mrb[0].mxu0
    %v1985 = vadd.f32 %v1495, %v1984
    %v1986 = vpop.f32.mrb[0].mxu0
    %v1987 = vadd.f32 %v1491, %v1986
    %v1988 = vpop.f32.mrb[0].mxu0
    %v1989 = vadd.f32 %v1495, %v1988
    %1990 = vmatprep.mubr.bf16.mxu0 %v1417
    %1991 = vmatmul.mubr.bf16.gmra.mrb[0].mxu0 %v1416
    %v1992 = vpop.f32.mrb[0].mxu0
    %v1993 = vadd.f32 %v1491, %v1992
    %v1994 = vpop.f32.mrb[0].mxu0
    %v1995 = vadd.f32 %v1495, %v1994
    %v1996 = vpop.f32.mrb[0].mxu0
    %v1997 = vadd.f32 %v1491, %v1996
    %v1998 = vpop.f32.mrb[0].mxu0
    %v1999 = vadd.f32 %v1495, %v1998
    %2000 = vmatprep.mubr.bf16.mxu0 %v1419
    %2001 = vmatmul.mubr.bf16.gmra.mrb[0].mxu0 %v1418
    %v2002 = vpop.f32.mrb[0].mxu0
    %v2003 = vadd.f32 %v1491, %v2002
    %v2004 = vpop.f32.mrb[0].mxu0
    %v2005 = vadd.f32 %v1495, %v2004
    %v2006 = vpop.f32.mrb[0].mxu0
    %v2007 = vadd.f32 %v1491, %v2006
    %v2008 = vpop.f32.mrb[0].mxu0
    %v2009 = vadd.f32 %v1495, %v2008
    %2010 = vmatprep.mubr.bf16.mxu0 %v1421
    %2011 = vmatmul.mubr.bf16.gmra.mrb[0].mxu0 %v1420
    %v2012 = vpop.f32.mrb[0].mxu0
    %v2013 = vadd.f32 %v1491, %v2012
    %v2014 = vpop.f32.mrb[0].mxu0
    %v2015 = vadd.f32 %v1495, %v2014
    %v2016 = vpop.f32.mrb[0].mxu0
    %v2017 = vadd.f32 %v1491, %v2016
    %v2018 = vpop.f32.mrb[0].mxu0
    %v2019 = vadd.f32 %v1495, %v2018
    %2020 = vdwg.mxu0
    %2021 = vmatprep.subr.bf16.mxu0 %v1703
    %2022 = vmatpush1.bf16.msra.mxu0 %v1702
    %2023 = vmatprep.subr.bf16.mxu0 %v1707
    %2024 = vmatpush1.bf16.msra.mxu0 %v1706
    %2025 = vmatprep.subr.bf16.mxu0 %v1711
    %2026 = vmatpush1.bf16.msra.mxu0 %v1710
    %2027 = vmatprep.subr.bf16.mxu0 %v1715
    %2028 = vmatpush1.bf16.msra.mxu0 %v1714
    %2029 = vmatprep.subr.bf16.mxu0 %v1719
    %2030 = vmatpush1.bf16.msra.mxu0 %v1718
    %2031 = vmatprep.subr.bf16.mxu0 %v1723
    %2032 = vmatpush1.bf16.msra.mxu0 %v1722
    %2033 = vmatprep.subr.bf16.mxu0 %v1727
    %2034 = vmatpush1.bf16.msra.mxu0 %v1726
    %2035 = vmatprep.subr.bf16.mxu0 %v1731
    %2036 = vmatpush1.bf16.msra.mxu0 %v1730
    %2037 = vmatprep.subr.bf16.mxu0 %v1735
    %2038 = vmatpush1.bf16.msra.mxu0 %v1734
    %2039 = vmatprep.subr.bf16.mxu0 %v1739
    %2040 = vmatpush1.bf16.msra.mxu0 %v1738
    %2041 = vmatprep.subr.bf16.mxu0 %v1743
    %2042 = vmatpush1.bf16.msra.mxu0 %v1742
    %2043 = vmatprep.subr.bf16.mxu0 %v1747
    %2044 = vmatpush1.bf16.msra.mxu0 %v1746
    %2045 = vmatprep.subr.bf16.mxu0 %v1751
    %2046 = vmatpush1.bf16.msra.mxu0 %v1750
    %2047 = vmatprep.subr.bf16.mxu0 %v1755
    %2048 = vmatpush1.bf16.msra.mxu0 %v1754
    %2049 = vmatprep.subr.bf16.mxu0 %v1759
    %2050 = vmatpush1.bf16.msra.mxu0 %v1758
    %2051 = vmatprep.subr.bf16.mxu0 %v1763
    %2052 = vmatpush1.bf16.msra.mxu0 %v1762
    %2053 = vmatprep.mubr.bf16.mxu0 %v1391
    %2054 = vmatmul.mubr.bf16.gmra.mrb[0].mxu0 %v1390
    %v2055 = vpop.f32.mrb[0].mxu0
    %v2056 = vadd.f32 %v1499, %v2055
    %v2057 = vpop.f32.mrb[0].mxu0
    %v2058 = vadd.f32 %v1503, %v2057
    %v2059 = vpop.f32.mrb[0].mxu0
    %v2060 = vadd.f32 %v1499, %v2059
    %v2061 = vpop.f32.mrb[0].mxu0
    %v2062 = vadd.f32 %v1503, %v2061
    %2063 = vmatprep.mubr.bf16.mxu0 %v1393
    %2064 = vmatmul.mubr.bf16.gmra.mrb[0].mxu0 %v1392
    %v2065 = vpop.f32.mrb[0].mxu0
    %v2066 = vadd.f32 %v1499, %v2065
    %v2067 = vpop.f32.mrb[0].mxu0
    %v2068 = vadd.f32 %v1503, %v2067
    %v2069 = vpop.f32.mrb[0].mxu0
    %v2070 = vadd.f32 %v1499, %v2069
    %v2071 = vpop.f32.mrb[0].mxu0
    %v2072 = vadd.f32 %v1503, %v2071
    %2073 = vmatprep.mubr.bf16.mxu0 %v1395
    %2074 = vmatmul.mubr.bf16.gmra.mrb[0].mxu0 %v1394
    %v2075 = vpop.f32.mrb[0].mxu0
    %v2076 = vadd.f32 %v1499, %v2075
    %v2077 = vpop.f32.mrb[0].mxu0
    %v2078 = vadd.f32 %v1503, %v2077
    %v2079 = vpop.f32.mrb[0].mxu0
    %v2080 = vadd.f32 %v1499, %v2079
    %v2081 = vpop.f32.mrb[0].mxu0
    %v2082 = vadd.f32 %v1503, %v2081
    %2083 = vmatprep.mubr.bf16.mxu0 %v1397
    %2084 = vmatmul.mubr.bf16.gmra.mrb[0].mxu0 %v1396
    %v2085 = vpop.f32.mrb[0].mxu0
    %v2086 = vadd.f32 %v1499, %v2085
    %v2087 = vpop.f32.mrb[0].mxu0
    %v2088 = vadd.f32 %v1503, %v2087
    %v2089 = vpop.f32.mrb[0].mxu0
    %v2090 = vadd.f32 %v1499, %v2089
    %v2091 = vpop.f32.mrb[0].mxu0
    %v2092 = vadd.f32 %v1503, %v2091
    %2093 = vmatprep.mubr.bf16.mxu0 %v1399
    %2094 = vmatmul.mubr.bf16.gmra.mrb[0].mxu0 %v1398
    %v2095 = vpop.f32.mrb[0].mxu0
    %v2096 = vadd.f32 %v1499, %v2095
    %v2097 = vpop.f32.mrb[0].mxu0
    %v2098 = vadd.f32 %v1503, %v2097
    %v2099 = vpop.f32.mrb[0].mxu0
    %v2100 = vadd.f32 %v1499, %v2099
    %v2101 = vpop.f32.mrb[0].mxu0
    %v2102 = vadd.f32 %v1503, %v2101
    %2103 = vmatprep.mubr.bf16.mxu0 %v1401
    %2104 = vmatmul.mubr.bf16.gmra.mrb[0].mxu0 %v1400
    %v2105 = vpop.f32.mrb[0].mxu0
    %v2106 = vadd.f32 %v1499, %v2105
    %v2107 = vpop.f32.mrb[0].mxu0
    %v2108 = vadd.f32 %v1503, %v2107
    %v2109 = vpop.f32.mrb[0].mxu0
    %v2110 = vadd.f32 %v1499, %v2109
    %v2111 = vpop.f32.mrb[0].mxu0
    %v2112 = vadd.f32 %v1503, %v2111
    %2113 = vmatprep.mubr.bf16.mxu0 %v1403
    %2114 = vmatmul.mubr.bf16.gmra.mrb[0].mxu0 %v1402
    %v2115 = vpop.f32.mrb[0].mxu0
    %v2116 = vadd.f32 %v1499, %v2115
    %v2117 = vpop.f32.mrb[0].mxu0
    %v2118 = vadd.f32 %v1503, %v2117
    %v2119 = vpop.f32.mrb[0].mxu0
    %v2120 = vadd.f32 %v1499, %v2119
    %v2121 = vpop.f32.mrb[0].mxu0
    %v2122 = vadd.f32 %v1503, %v2121
    %2123 = vmatprep.mubr.bf16.mxu0 %v1405
    %2124 = vmatmul.mubr.bf16.gmra.mrb[0].mxu0 %v1404
    %v2125 = vpop.f32.mrb[0].mxu0
    %v2126 = vadd.f32 %v1499, %v2125
    %v2127 = vpop.f32.mrb[0].mxu0
    %v2128 = vadd.f32 %v1503, %v2127
    %v2129 = vpop.f32.mrb[0].mxu0
    %v2130 = vadd.f32 %v1499, %v2129
    %v2131 = vpop.f32.mrb[0].mxu0
    %v2132 = vadd.f32 %v1503, %v2131
    %2133 = vmatprep.mubr.bf16.mxu0 %v1407
    %2134 = vmatmul.mubr.bf16.gmra.mrb[0].mxu0 %v1406
    %v2135 = vpop.f32.mrb[0].mxu0
    %v2136 = vadd.f32 %v1499, %v2135
    %v2137 = vpop.f32.mrb[0].mxu0
    %v2138 = vadd.f32 %v1503, %v2137
    %v2139 = vpop.f32.mrb[0].mxu0
    %v2140 = vadd.f32 %v1499, %v2139
    %v2141 = vpop.f32.mrb[0].mxu0
    %v2142 = vadd.f32 %v1503, %v2141
    %2143 = vmatprep.mubr.bf16.mxu0 %v1409
    %2144 = vmatmul.mubr.bf16.gmra.mrb[0].mxu0 %v1408
    %v2145 = vpop.f32.mrb[0].mxu0
    %v2146 = vadd.f32 %v1499, %v2145
    %v2147 = vpop.f32.mrb[0].mxu0
    %v2148 = vadd.f32 %v1503, %v2147
    %v2149 = vpop.f32.mrb[0].mxu0
    %v2150 = vadd.f32 %v1499, %v2149
    %v2151 = vpop.f32.mrb[0].mxu0
    %v2152 = vadd.f32 %v1503, %v2151
    %2153 = vmatprep.mubr.bf16.mxu0 %v1411
    %2154 = vmatmul.mubr.bf16.gmra.mrb[0].mxu0 %v1410
    %v2155 = vpop.f32.mrb[0].mxu0
    %v2156 = vadd.f32 %v1499, %v2155
    %v2157 = vpop.f32.mrb[0].mxu0
    %v2158 = vadd.f32 %v1503, %v2157
    %v2159 = vpop.f32.mrb[0].mxu0
    %v2160 = vadd.f32 %v1499, %v2159
    %v2161 = vpop.f32.mrb[0].mxu0
    %v2162 = vadd.f32 %v1503, %v2161
    %2163 = vmatprep.mubr.bf16.mxu0 %v1413
    %2164 = vmatmul.mubr.bf16.gmra.mrb[0].mxu0 %v1412
    %v2165 = vpop.f32.mrb[0].mxu0
    %v2166 = vadd.f32 %v1499, %v2165
    %v2167 = vpop.f32.mrb[0].mxu0
    %v2168 = vadd.f32 %v1503, %v2167
    %v2169 = vpop.f32.mrb[0].mxu0
    %v2170 = vadd.f32 %v1499, %v2169
    %v2171 = vpop.f32.mrb[0].mxu0
    %v2172 = vadd.f32 %v1503, %v2171
    %2173 = vmatprep.mubr.bf16.mxu0 %v1415
    %2174 = vmatmul.mubr.bf16.gmra.mrb[0].mxu0 %v1414
    %v2175 = vpop.f32.mrb[0].mxu0
    %v2176 = vadd.f32 %v1499, %v2175
    %v2177 = vpop.f32.mrb[0].mxu0
    %v2178 = vadd.f32 %v1503, %v2177
    %v2179 = vpop.f32.mrb[0].mxu0
    %v2180 = vadd.f32 %v1499, %v2179
    %v2181 = vpop.f32.mrb[0].mxu0
    %v2182 = vadd.f32 %v1503, %v2181
    %2183 = vmatprep.mubr.bf16.mxu0 %v1417
    %2184 = vmatmul.mubr.bf16.gmra.mrb[0].mxu0 %v1416
    %v2185 = vpop.f32.mrb[0].mxu0
    %v2186 = vadd.f32 %v1499, %v2185
    %v2187 = vpop.f32.mrb[0].mxu0
    %v2188 = vadd.f32 %v1503, %v2187
    %v2189 = vpop.f32.mrb[0].mxu0
    %v2190 = vadd.f32 %v1499, %v2189
    %v2191 = vpop.f32.mrb[0].mxu0
    %v2192 = vadd.f32 %v1503, %v2191
    %2193 = vmatprep.mubr.bf16.mxu0 %v1419
    %2194 = vmatmul.mubr.bf16.gmra.mrb[0].mxu0 %v1418
    %v2195 = vpop.f32.mrb[0].mxu0
    %v2196 = vadd.f32 %v1499, %v2195
    %v2197 = vpop.f32.mrb[0].mxu0
    %v2198 = vadd.f32 %v1503, %v2197
    %v2199 = vpop.f32.mrb[0].mxu0
    %v2200 = vadd.f32 %v1499, %v2199
    %v2201 = vpop.f32.mrb[0].mxu0
    %v2202 = vadd.f32 %v1503, %v2201
    %2203 = vmatprep.mubr.bf16.mxu0 %v1421
    %2204 = vmatmul.mubr.bf16.gmra.mrb[0].mxu0 %v1420
    %v2205 = vpop.f32.mrb[0].mxu0
    %v2206 = vadd.f32 %v1499, %v2205
    %v2207 = vpop.f32.mrb[0].mxu0
    %v2208 = vadd.f32 %v1503, %v2207
    %v2209 = vpop.f32.mrb[0].mxu0
    %v2210 = vadd.f32 %v1499, %v2209
    %v2211 = vpop.f32.mrb[0].mxu0
    %v2212 = vadd.f32 %v1503, %v2211
    %2213 = vdwg.mxu0
    %v2214 = vld [vmem:[%s9] sm:$0xf]
    %v2215 = vld [vmem:[%s10] sm:$0xf]
    %v2216 = vadd.f32 %v1863, %v1867
    %v2217 = vadd.f32 %v2216, %v1873
    %v2218 = vadd.f32 %v2217, %v1877
    %v2219 = vadd.f32 %v2218, %v1883
    %v2220 = vadd.f32 %v2219, %v1887
    %v2221 = vadd.f32 %v2220, %v1893
    %v2222 = vadd.f32 %v2221, %v1897
    %v2223 = vadd.f32 %v2222, %v1903
    %v2224 = vadd.f32 %v2223, %v1907
    %v2225 = vadd.f32 %v2224, %v1913
    %v2226 = vadd.f32 %v2225, %v1917
    %v2227 = vadd.f32 %v2226, %v1923
    %v2228 = vadd.f32 %v2227, %v1927
    %v2229 = vadd.f32 %v2228, %v1933
    %v2230 = vadd.f32 %v2229, %v1937
    %v2231 = vadd.f32 %v2230, %v1943
    %v2232 = vadd.f32 %v2231, %v1947
    %v2233 = vadd.f32 %v2232, %v1953
    %v2234 = vadd.f32 %v2233, %v1957
    %v2235 = vadd.f32 %v2234, %v1963
    %v2236 = vadd.f32 %v2235, %v1967
    %v2237 = vadd.f32 %v2236, %v1973
    %v2238 = vadd.f32 %v2237, %v1977
    %v2239 = vadd.f32 %v2238, %v1983
    %v2240 = vadd.f32 %v2239, %v1987
    %v2241 = vadd.f32 %v2240, %v1993
    %v2242 = vadd.f32 %v2241, %v1997
    %v2243 = vadd.f32 %v2242, %v2003
    %v2244 = vadd.f32 %v2243, %v2007
    %v2245 = vadd.f32 %v2244, %v2013
    %v2246 = vadd.f32 %v2245, %v2017
    %v2247 = vrot.slane %v2246, 4
    %v2248 = vadd.f32 %v2246, %v2247
    %v2249 = vrot.slane %v2248, 2
    %v2250 = vadd.f32 %v2248, %v2249
    %v2251 = vrot.slane %v2250, 1
    %v2252 = vadd.f32 %v2250, %v2251
    %v2253 = vadd.f32 %v1865, %v1869
    %v2254 = vadd.f32 %v2253, %v1875
    %v2255 = vadd.f32 %v2254, %v1879
    %v2256 = vadd.f32 %v2255, %v1885
    %v2257 = vadd.f32 %v2256, %v1889
    %v2258 = vadd.f32 %v2257, %v1895
    %v2259 = vadd.f32 %v2258, %v1899
    %v2260 = vadd.f32 %v2259, %v1905
    %v2261 = vadd.f32 %v2260, %v1909
    %v2262 = vadd.f32 %v2261, %v1915
    %v2263 = vadd.f32 %v2262, %v1919
    %v2264 = vadd.f32 %v2263, %v1925
    %v2265 = vadd.f32 %v2264, %v1929
    %v2266 = vadd.f32 %v2265, %v1935
    %v2267 = vadd.f32 %v2266, %v1939
    %v2268 = vadd.f32 %v2267, %v1945
    %v2269 = vadd.f32 %v2268, %v1949
    %v2270 = vadd.f32 %v2269, %v1955
    %v2271 = vadd.f32 %v2270, %v1959
    %v2272 = vadd.f32 %v2271, %v1965
    %v2273 = vadd.f32 %v2272, %v1969
    %v2274 = vadd.f32 %v2273, %v1975
    %v2275 = vadd.f32 %v2274, %v1979
    %v2276 = vadd.f32 %v2275, %v1985
    %v2277 = vadd.f32 %v2276, %v1989
    %v2278 = vadd.f32 %v2277, %v1995
    %v2279 = vadd.f32 %v2278, %v1999
    %v2280 = vadd.f32 %v2279, %v2005
    %v2281 = vadd.f32 %v2280, %v2009
    %v2282 = vadd.f32 %v2281, %v2015
    %v2283 = vadd.f32 %v2282, %v2019
    %v2284 = vrot.slane %v2283, 4
    %v2285 = vadd.f32 %v2283, %v2284
    %v2286 = vrot.slane %v2285, 2
    %v2287 = vadd.f32 %v2285, %v2286
    %v2288 = vrot.slane %v2287, 1
    %v2289 = vadd.f32 %v2287, %v2288
    %v2290 = vadd.f32 %v2056, %v2060
    %v2291 = vadd.f32 %v2290, %v2066
    %v2292 = vadd.f32 %v2291, %v2070
    %v2293 = vadd.f32 %v2292, %v2076
    %v2294 = vadd.f32 %v2293, %v2080
    %v2295 = vadd.f32 %v2294, %v2086
    %v2296 = vadd.f32 %v2295, %v2090
    %v2297 = vadd.f32 %v2296, %v2096
    %v2298 = vadd.f32 %v2297, %v2100
    %v2299 = vadd.f32 %v2298, %v2106
    %v2300 = vadd.f32 %v2299, %v2110
    %v2301 = vadd.f32 %v2300, %v2116
    %v2302 = vadd.f32 %v2301, %v2120
    %v2303 = vadd.f32 %v2302, %v2126
    %v2304 = vadd.f32 %v2303, %v2130
    %v2305 = vadd.f32 %v2304, %v2136
    %v2306 = vadd.f32 %v2305, %v2140
    %v2307 = vadd.f32 %v2306, %v2146
    %v2308 = vadd.f32 %v2307, %v2150
    %v2309 = vadd.f32 %v2308, %v2156
    %v2310 = vadd.f32 %v2309, %v2160
    %v2311 = vadd.f32 %v2310, %v2166
    %v2312 = vadd.f32 %v2311, %v2170
    %v2313 = vadd.f32 %v2312, %v2176
    %v2314 = vadd.f32 %v2313, %v2180
    %v2315 = vadd.f32 %v2314, %v2186
    %v2316 = vadd.f32 %v2315, %v2190
    %v2317 = vadd.f32 %v2316, %v2196
    %v2318 = vadd.f32 %v2317, %v2200
    %v2319 = vadd.f32 %v2318, %v2206
    %v2320 = vadd.f32 %v2319, %v2210
    %v2321 = vrot.slane %v2320, 4
    %v2322 = vadd.f32 %v2320, %v2321
    %v2323 = vrot.slane %v2322, 2
    %v2324 = vadd.f32 %v2322, %v2323
    %v2325 = vrot.slane %v2324, 1
    %v2326 = vadd.f32 %v2324, %v2325
    %v2327 = vadd.f32 %v2058, %v2062
    %v2328 = vadd.f32 %v2327, %v2068
    %v2329 = vadd.f32 %v2328, %v2072
    %v2330 = vadd.f32 %v2329, %v2078
    %v2331 = vadd.f32 %v2330, %v2082
    %v2332 = vadd.f32 %v2331, %v2088
    %v2333 = vadd.f32 %v2332, %v2092
    %v2334 = vadd.f32 %v2333, %v2098
    %v2335 = vadd.f32 %v2334, %v2102
    %v2336 = vadd.f32 %v2335, %v2108
    %v2337 = vadd.f32 %v2336, %v2112
    %v2338 = vadd.f32 %v2337, %v2118
    %v2339 = vadd.f32 %v2338, %v2122
    %v2340 = vadd.f32 %v2339, %v2128
    %v2341 = vadd.f32 %v2340, %v2132
    %v2342 = vadd.f32 %v2341, %v2138
    %v2343 = vadd.f32 %v2342, %v2142
    %v2344 = vadd.f32 %v2343, %v2148
    %v2345 = vadd.f32 %v2344, %v2152
    %v2346 = vadd.f32 %v2345, %v2158
    %v2347 = vadd.f32 %v2346, %v2162
    %v2348 = vadd.f32 %v2347, %v2168
    %v2349 = vadd.f32 %v2348, %v2172
    %v2350 = vadd.f32 %v2349, %v2178
    %v2351 = vadd.f32 %v2350, %v2182
    %v2352 = vadd.f32 %v2351, %v2188
    %v2353 = vadd.f32 %v2352, %v2192
    %v2354 = vadd.f32 %v2353, %v2198
    %v2355 = vadd.f32 %v2354, %v2202
    %v2356 = vadd.f32 %v2355, %v2208
    %v2357 = vadd.f32 %v2356, %v2212
    %v2358 = vrot.slane %v2357, 4
    %v2359 = vadd.f32 %v2357, %v2358
    %v2360 = vrot.slane %v2359, 2
    %v2361 = vadd.f32 %v2359, %v2360
    %v2362 = vrot.slane %v2361, 1
    %v2363 = vadd.f32 %v2361, %v2362
    %v2364 = vmul.f32 %v2252, 0.00390625
    %v2365 = vmul.f32 %v2289, 0.00390625
    %v2366 = vmul.f32 %v2326, 0.00390625
    %v2367 = vmul.f32 %v2363, 0.00390625
    %v2368 = vsub.f32 %v1863, %v2364
    %v2369 = vsub.f32 %v1865, %v2365
    %v2370 = vsub.f32 %v2056, %v2366
    %v2371 = vsub.f32 %v2058, %v2367
    %v2372 = vsub.f32 %v1867, %v2364
    %v2373 = vsub.f32 %v1869, %v2365
    %v2374 = vsub.f32 %v2060, %v2366
    %v2375 = vsub.f32 %v2062, %v2367
    %v2376 = vsub.f32 %v1873, %v2364
    %v2377 = vsub.f32 %v1875, %v2365
    %v2378 = vsub.f32 %v2066, %v2366
    %v2379 = vsub.f32 %v2068, %v2367
    %v2380 = vsub.f32 %v1877, %v2364
    %v2381 = vsub.f32 %v1879, %v2365
    %v2382 = vsub.f32 %v2070, %v2366
    %v2383 = vsub.f32 %v2072, %v2367
    %v2384 = vsub.f32 %v1883, %v2364
    %v2385 = vsub.f32 %v1885, %v2365
    %v2386 = vsub.f32 %v2076, %v2366
    %v2387 = vsub.f32 %v2078, %v2367
    %v2388 = vsub.f32 %v1887, %v2364
    %v2389 = vsub.f32 %v1889, %v2365
    %v2390 = vsub.f32 %v2080, %v2366
    %v2391 = vsub.f32 %v2082, %v2367
    %v2392 = vsub.f32 %v1893, %v2364
    %v2393 = vsub.f32 %v1895, %v2365
    %v2394 = vsub.f32 %v2086, %v2366
    %v2395 = vsub.f32 %v2088, %v2367
    %v2396 = vsub.f32 %v1897, %v2364
    %v2397 = vsub.f32 %v1899, %v2365
    %v2398 = vsub.f32 %v2090, %v2366
    %v2399 = vsub.f32 %v2092, %v2367
    %v2400 = vsub.f32 %v1903, %v2364
    %v2401 = vsub.f32 %v1905, %v2365
    %v2402 = vsub.f32 %v2096, %v2366
    %v2403 = vsub.f32 %v2098, %v2367
    %v2404 = vsub.f32 %v1907, %v2364
    %v2405 = vsub.f32 %v1909, %v2365
    %v2406 = vsub.f32 %v2100, %v2366
    %v2407 = vsub.f32 %v2102, %v2367
    %v2408 = vsub.f32 %v1913, %v2364
    %v2409 = vsub.f32 %v1915, %v2365
    %v2410 = vsub.f32 %v2106, %v2366
    %v2411 = vsub.f32 %v2108, %v2367
    %v2412 = vsub.f32 %v1917, %v2364
    %v2413 = vsub.f32 %v1919, %v2365
    %v2414 = vsub.f32 %v2110, %v2366
    %v2415 = vsub.f32 %v2112, %v2367
    %v2416 = vsub.f32 %v1923, %v2364
    %v2417 = vsub.f32 %v1925, %v2365
    %v2418 = vsub.f32 %v2116, %v2366
    %v2419 = vsub.f32 %v2118, %v2367
    %v2420 = vsub.f32 %v1927, %v2364
    %v2421 = vsub.f32 %v1929, %v2365
    %v2422 = vsub.f32 %v2120, %v2366
    %v2423 = vsub.f32 %v2122, %v2367
    %v2424 = vsub.f32 %v1933, %v2364
    %v2425 = vsub.f32 %v1935, %v2365
    %v2426 = vsub.f32 %v2126, %v2366
    %v2427 = vsub.f32 %v2128, %v2367
    %v2428 = vsub.f32 %v1937, %v2364
    %v2429 = vsub.f32 %v1939, %v2365
    %v2430 = vsub.f32 %v2130, %v2366
    %v2431 = vsub.f32 %v2132, %v2367
    %v2432 = vsub.f32 %v1943, %v2364
    %v2433 = vsub.f32 %v1945, %v2365
    %v2434 = vsub.f32 %v2136, %v2366
    %v2435 = vsub.f32 %v2138, %v2367
    %v2436 = vsub.f32 %v1947, %v2364
    %v2437 = vsub.f32 %v1949, %v2365
    %v2438 = vsub.f32 %v2140, %v2366
    %v2439 = vsub.f32 %v2142, %v2367
    %v2440 = vsub.f32 %v1953, %v2364
    %v2441 = vsub.f32 %v1955, %v2365
    %v2442 = vsub.f32 %v2146, %v2366
    %v2443 = vsub.f32 %v2148, %v2367
    %v2444 = vsub.f32 %v1957, %v2364
    %v2445 = vsub.f32 %v1959, %v2365
    %v2446 = vsub.f32 %v2150, %v2366
    %v2447 = vsub.f32 %v2152, %v2367
    %v2448 = vsub.f32 %v1963, %v2364
    %v2449 = vsub.f32 %v1965, %v2365
    %v2450 = vsub.f32 %v2156, %v2366
    %v2451 = vsub.f32 %v2158, %v2367
    %v2452 = vsub.f32 %v1967, %v2364
    %v2453 = vsub.f32 %v1969, %v2365
    %v2454 = vsub.f32 %v2160, %v2366
    %v2455 = vsub.f32 %v2162, %v2367
    %v2456 = vsub.f32 %v1973, %v2364
    %v2457 = vsub.f32 %v1975, %v2365
    %v2458 = vsub.f32 %v2166, %v2366
    %v2459 = vsub.f32 %v2168, %v2367
    %v2460 = vsub.f32 %v1977, %v2364
    %v2461 = vsub.f32 %v1979, %v2365
    %v2462 = vsub.f32 %v2170, %v2366
    %v2463 = vsub.f32 %v2172, %v2367
    %v2464 = vsub.f32 %v1983, %v2364
    %v2465 = vsub.f32 %v1985, %v2365
    %v2466 = vsub.f32 %v2176, %v2366
    %v2467 = vsub.f32 %v2178, %v2367
    %v2468 = vsub.f32 %v1987, %v2364
    %v2469 = vsub.f32 %v1989, %v2365
    %v2470 = vsub.f32 %v2180, %v2366
    %v2471 = vsub.f32 %v2182, %v2367
    %v2472 = vsub.f32 %v1993, %v2364
    %v2473 = vsub.f32 %v1995, %v2365
    %v2474 = vsub.f32 %v2186, %v2366
    %v2475 = vsub.f32 %v2188, %v2367
    %v2476 = vsub.f32 %v1997, %v2364
    %v2477 = vsub.f32 %v1999, %v2365
    %v2478 = vsub.f32 %v2190, %v2366
    %v2479 = vsub.f32 %v2192, %v2367
    %v2480 = vsub.f32 %v2003, %v2364
    %v2481 = vsub.f32 %v2005, %v2365
    %v2482 = vsub.f32 %v2196, %v2366
    %v2483 = vsub.f32 %v2198, %v2367
    %v2484 = vsub.f32 %v2007, %v2364
    %v2485 = vsub.f32 %v2009, %v2365
    %v2486 = vsub.f32 %v2200, %v2366
    %v2487 = vsub.f32 %v2202, %v2367
    %v2488 = vsub.f32 %v2013, %v2364
    %v2489 = vsub.f32 %v2015, %v2365
    %v2490 = vsub.f32 %v2206, %v2366
    %v2491 = vsub.f32 %v2208, %v2367
    %v2492 = vsub.f32 %v2017, %v2364
    %v2493 = vsub.f32 %v2019, %v2365
    %v2494 = vsub.f32 %v2210, %v2366
    %v2495 = vsub.f32 %v2212, %v2367
    %v2496 = vmul.f32 %v2368, %v2368
    %v2497 = vmul.f32 %v2369, %v2369
    %v2498 = vmul.f32 %v2370, %v2370
    %v2499 = vmul.f32 %v2371, %v2371
    %v2500 = vmul.f32 %v2372, %v2372
    %v2501 = vmul.f32 %v2373, %v2373
    %v2502 = vmul.f32 %v2374, %v2374
    %v2503 = vmul.f32 %v2375, %v2375
    %v2504 = vmul.f32 %v2376, %v2376
    %v2505 = vmul.f32 %v2377, %v2377
    %v2506 = vmul.f32 %v2378, %v2378
    %v2507 = vmul.f32 %v2379, %v2379
    %v2508 = vmul.f32 %v2380, %v2380
    %v2509 = vmul.f32 %v2381, %v2381
    %v2510 = vmul.f32 %v2382, %v2382
    %v2511 = vmul.f32 %v2383, %v2383
    %v2512 = vmul.f32 %v2384, %v2384
    %v2513 = vmul.f32 %v2385, %v2385
    %v2514 = vmul.f32 %v2386, %v2386
    %v2515 = vmul.f32 %v2387, %v2387
    %v2516 = vmul.f32 %v2388, %v2388
    %v2517 = vmul.f32 %v2389, %v2389
    %v2518 = vmul.f32 %v2390, %v2390
    %v2519 = vmul.f32 %v2391, %v2391
    %v2520 = vmul.f32 %v2392, %v2392
    %v2521 = vmul.f32 %v2393, %v2393
    %v2522 = vmul.f32 %v2394, %v2394
    %v2523 = vmul.f32 %v2395, %v2395
    %v2524 = vmul.f32 %v2396, %v2396
    %v2525 = vmul.f32 %v2397, %v2397
    %v2526 = vmul.f32 %v2398, %v2398
    %v2527 = vmul.f32 %v2399, %v2399
    %v2528 = vmul.f32 %v2400, %v2400
    %v2529 = vmul.f32 %v2401, %v2401
    %v2530 = vmul.f32 %v2402, %v2402
    %v2531 = vmul.f32 %v2403, %v2403
    %v2532 = vmul.f32 %v2404, %v2404
    %v2533 = vmul.f32 %v2405, %v2405
    %v2534 = vmul.f32 %v2406, %v2406
    %v2535 = vmul.f32 %v2407, %v2407
    %v2536 = vmul.f32 %v2408, %v2408
    %v2537 = vmul.f32 %v2409, %v2409
    %v2538 = vmul.f32 %v2410, %v2410
    %v2539 = vmul.f32 %v2411, %v2411
    %v2540 = vmul.f32 %v2412, %v2412
    %v2541 = vmul.f32 %v2413, %v2413
    %v2542 = vmul.f32 %v2414, %v2414
    %v2543 = vmul.f32 %v2415, %v2415
    %v2544 = vmul.f32 %v2416, %v2416
    %v2545 = vmul.f32 %v2417, %v2417
    %v2546 = vmul.f32 %v2418, %v2418
    %v2547 = vmul.f32 %v2419, %v2419
    %v2548 = vmul.f32 %v2420, %v2420
    %v2549 = vmul.f32 %v2421, %v2421
    %v2550 = vmul.f32 %v2422, %v2422
    %v2551 = vmul.f32 %v2423, %v2423
    %v2552 = vmul.f32 %v2424, %v2424
    %v2553 = vmul.f32 %v2425, %v2425
    %v2554 = vmul.f32 %v2426, %v2426
    %v2555 = vmul.f32 %v2427, %v2427
    %v2556 = vmul.f32 %v2428, %v2428
    %v2557 = vmul.f32 %v2429, %v2429
    %v2558 = vmul.f32 %v2430, %v2430
    %v2559 = vmul.f32 %v2431, %v2431
    %v2560 = vmul.f32 %v2432, %v2432
    %v2561 = vmul.f32 %v2433, %v2433
    %v2562 = vmul.f32 %v2434, %v2434
    %v2563 = vmul.f32 %v2435, %v2435
    %v2564 = vmul.f32 %v2436, %v2436
    %v2565 = vmul.f32 %v2437, %v2437
    %v2566 = vmul.f32 %v2438, %v2438
    %v2567 = vmul.f32 %v2439, %v2439
    %v2568 = vmul.f32 %v2440, %v2440
    %v2569 = vmul.f32 %v2441, %v2441
    %v2570 = vmul.f32 %v2442, %v2442
    %v2571 = vmul.f32 %v2443, %v2443
    %v2572 = vmul.f32 %v2444, %v2444
    %v2573 = vmul.f32 %v2445, %v2445
    %v2574 = vmul.f32 %v2446, %v2446
    %v2575 = vmul.f32 %v2447, %v2447
    %v2576 = vmul.f32 %v2448, %v2448
    %v2577 = vmul.f32 %v2449, %v2449
    %v2578 = vmul.f32 %v2450, %v2450
    %v2579 = vmul.f32 %v2451, %v2451
    %v2580 = vmul.f32 %v2452, %v2452
    %v2581 = vmul.f32 %v2453, %v2453
    %v2582 = vmul.f32 %v2454, %v2454
    %v2583 = vmul.f32 %v2455, %v2455
    %v2584 = vmul.f32 %v2456, %v2456
    %v2585 = vmul.f32 %v2457, %v2457
    %v2586 = vmul.f32 %v2458, %v2458
    %v2587 = vmul.f32 %v2459, %v2459
    %v2588 = vmul.f32 %v2460, %v2460
    %v2589 = vmul.f32 %v2461, %v2461
    %v2590 = vmul.f32 %v2462, %v2462
    %v2591 = vmul.f32 %v2463, %v2463
    %v2592 = vmul.f32 %v2464, %v2464
    %v2593 = vmul.f32 %v2465, %v2465
    %v2594 = vmul.f32 %v2466, %v2466
    %v2595 = vmul.f32 %v2467, %v2467
    %v2596 = vmul.f32 %v2468, %v2468
    %v2597 = vmul.f32 %v2469, %v2469
    %v2598 = vmul.f32 %v2470, %v2470
    %v2599 = vmul.f32 %v2471, %v2471
    %v2600 = vmul.f32 %v2472, %v2472
    %v2601 = vmul.f32 %v2473, %v2473
    %v2602 = vmul.f32 %v2474, %v2474
    %v2603 = vmul.f32 %v2475, %v2475
    %v2604 = vmul.f32 %v2476, %v2476
    %v2605 = vmul.f32 %v2477, %v2477
    %v2606 = vmul.f32 %v2478, %v2478
    %v2607 = vmul.f32 %v2479, %v2479
    %v2608 = vmul.f32 %v2480, %v2480
    %v2609 = vmul.f32 %v2481, %v2481
    %v2610 = vmul.f32 %v2482, %v2482
    %v2611 = vmul.f32 %v2483, %v2483
    %v2612 = vmul.f32 %v2484, %v2484
    %v2613 = vmul.f32 %v2485, %v2485
    %v2614 = vmul.f32 %v2486, %v2486
    %v2615 = vmul.f32 %v2487, %v2487
    %v2616 = vmul.f32 %v2488, %v2488
    %v2617 = vmul.f32 %v2489, %v2489
    %v2618 = vmul.f32 %v2490, %v2490
    %v2619 = vmul.f32 %v2491, %v2491
    %v2620 = vmul.f32 %v2492, %v2492
    %v2621 = vmul.f32 %v2493, %v2493
    %v2622 = vmul.f32 %v2494, %v2494
    %v2623 = vmul.f32 %v2495, %v2495
    %v2624 = vadd.f32 %v2496, %v2500
    %v2625 = vadd.f32 %v2624, %v2504
    %v2626 = vadd.f32 %v2625, %v2508
    %v2627 = vadd.f32 %v2626, %v2512
    %v2628 = vadd.f32 %v2627, %v2516
    %v2629 = vadd.f32 %v2628, %v2520
    %v2630 = vadd.f32 %v2629, %v2524
    %v2631 = vadd.f32 %v2630, %v2528
    %v2632 = vadd.f32 %v2631, %v2532
    %v2633 = vadd.f32 %v2632, %v2536
    %v2634 = vadd.f32 %v2633, %v2540
    %v2635 = vadd.f32 %v2634, %v2544
    %v2636 = vadd.f32 %v2635, %v2548
    %v2637 = vadd.f32 %v2636, %v2552
    %v2638 = vadd.f32 %v2637, %v2556
    %v2639 = vadd.f32 %v2638, %v2560
    %v2640 = vadd.f32 %v2639, %v2564
    %v2641 = vadd.f32 %v2640, %v2568
    %v2642 = vadd.f32 %v2641, %v2572
    %v2643 = vadd.f32 %v2642, %v2576
    %v2644 = vadd.f32 %v2643, %v2580
    %v2645 = vadd.f32 %v2644, %v2584
    %v2646 = vadd.f32 %v2645, %v2588
    %v2647 = vadd.f32 %v2646, %v2592
    %v2648 = vadd.f32 %v2647, %v2596
    %v2649 = vadd.f32 %v2648, %v2600
    %v2650 = vadd.f32 %v2649, %v2604
    %v2651 = vadd.f32 %v2650, %v2608
    %v2652 = vadd.f32 %v2651, %v2612
    %v2653 = vadd.f32 %v2652, %v2616
    %v2654 = vadd.f32 %v2653, %v2620
    %v2655 = vrot.slane %v2654, 4
    %v2656 = vadd.f32 %v2654, %v2655
    %v2657 = vrot.slane %v2656, 2
    %v2658 = vadd.f32 %v2656, %v2657
    %v2659 = vrot.slane %v2658, 1
    %v2660 = vadd.f32 %v2658, %v2659
    %v2661 = vadd.f32 %v2497, %v2501
    %v2662 = vadd.f32 %v2661, %v2505
    %v2663 = vadd.f32 %v2662, %v2509
    %v2664 = vadd.f32 %v2663, %v2513
    %v2665 = vadd.f32 %v2664, %v2517
    %v2666 = vadd.f32 %v2665, %v2521
    %v2667 = vadd.f32 %v2666, %v2525
    %v2668 = vadd.f32 %v2667, %v2529
    %v2669 = vadd.f32 %v2668, %v2533
    %v2670 = vadd.f32 %v2669, %v2537
    %v2671 = vadd.f32 %v2670, %v2541
    %v2672 = vadd.f32 %v2671, %v2545
    %v2673 = vadd.f32 %v2672, %v2549
    %v2674 = vadd.f32 %v2673, %v2553
    %v2675 = vadd.f32 %v2674, %v2557
    %v2676 = vadd.f32 %v2675, %v2561
    %v2677 = vadd.f32 %v2676, %v2565
    %v2678 = vadd.f32 %v2677, %v2569
    %v2679 = vadd.f32 %v2678, %v2573
    %v2680 = vadd.f32 %v2679, %v2577
    %v2681 = vadd.f32 %v2680, %v2581
    %v2682 = vadd.f32 %v2681, %v2585
    %v2683 = vadd.f32 %v2682, %v2589
    %v2684 = vadd.f32 %v2683, %v2593
    %v2685 = vadd.f32 %v2684, %v2597
    %v2686 = vadd.f32 %v2685, %v2601
    %v2687 = vadd.f32 %v2686, %v2605
    %v2688 = vadd.f32 %v2687, %v2609
    %v2689 = vadd.f32 %v2688, %v2613
    %v2690 = vadd.f32 %v2689, %v2617
    %v2691 = vadd.f32 %v2690, %v2621
    %v2692 = vrot.slane %v2691, 4
    %v2693 = vadd.f32 %v2691, %v2692
    %v2694 = vrot.slane %v2693, 2
    %v2695 = vadd.f32 %v2693, %v2694
    %v2696 = vrot.slane %v2695, 1
    %v2697 = vadd.f32 %v2695, %v2696
    %v2698 = vadd.f32 %v2498, %v2502
    %v2699 = vadd.f32 %v2698, %v2506
    %v2700 = vadd.f32 %v2699, %v2510
    %v2701 = vadd.f32 %v2700, %v2514
    %v2702 = vadd.f32 %v2701, %v2518
    %v2703 = vadd.f32 %v2702, %v2522
    %v2704 = vadd.f32 %v2703, %v2526
    %v2705 = vadd.f32 %v2704, %v2530
    %v2706 = vadd.f32 %v2705, %v2534
    %v2707 = vadd.f32 %v2706, %v2538
    %v2708 = vadd.f32 %v2707, %v2542
    %v2709 = vadd.f32 %v2708, %v2546
    %v2710 = vadd.f32 %v2709, %v2550
    %v2711 = vadd.f32 %v2710, %v2554
    %v2712 = vadd.f32 %v2711, %v2558
    %v2713 = vadd.f32 %v2712, %v2562
    %v2714 = vadd.f32 %v2713, %v2566
    %v2715 = vadd.f32 %v2714, %v2570
    %v2716 = vadd.f32 %v2715, %v2574
    %v2717 = vadd.f32 %v2716, %v2578
    %v2718 = vadd.f32 %v2717, %v2582
    %v2719 = vadd.f32 %v2718, %v2586
    %v2720 = vadd.f32 %v2719, %v2590
    %v2721 = vadd.f32 %v2720, %v2594
    %v2722 = vadd.f32 %v2721, %v2598
    %v2723 = vadd.f32 %v2722, %v2602
    %v2724 = vadd.f32 %v2723, %v2606
    %v2725 = vadd.f32 %v2724, %v2610
    %v2726 = vadd.f32 %v2725, %v2614
    %v2727 = vadd.f32 %v2726, %v2618
    %v2728 = vadd.f32 %v2727, %v2622
    %v2729 = vrot.slane %v2728, 4
    %v2730 = vadd.f32 %v2728, %v2729
    %v2731 = vrot.slane %v2730, 2
    %v2732 = vadd.f32 %v2730, %v2731
    %v2733 = vrot.slane %v2732, 1
    %v2734 = vadd.f32 %v2732, %v2733
    %v2735 = vadd.f32 %v2499, %v2503
    %v2736 = vadd.f32 %v2735, %v2507
    %v2737 = vadd.f32 %v2736, %v2511
    %v2738 = vadd.f32 %v2737, %v2515
    %v2739 = vadd.f32 %v2738, %v2519
    %v2740 = vadd.f32 %v2739, %v2523
    %v2741 = vadd.f32 %v2740, %v2527
    %v2742 = vadd.f32 %v2741, %v2531
    %v2743 = vadd.f32 %v2742, %v2535
    %v2744 = vadd.f32 %v2743, %v2539
    %v2745 = vadd.f32 %v2744, %v2543
    %v2746 = vadd.f32 %v2745, %v2547
    %v2747 = vadd.f32 %v2746, %v2551
    %v2748 = vadd.f32 %v2747, %v2555
    %v2749 = vadd.f32 %v2748, %v2559
    %v2750 = vadd.f32 %v2749, %v2563
    %v2751 = vadd.f32 %v2750, %v2567
    %v2752 = vadd.f32 %v2751, %v2571
    %v2753 = vadd.f32 %v2752, %v2575
    %v2754 = vadd.f32 %v2753, %v2579
    %v2755 = vadd.f32 %v2754, %v2583
    %v2756 = vadd.f32 %v2755, %v2587
    %v2757 = vadd.f32 %v2756, %v2591
    %v2758 = vadd.f32 %v2757, %v2595
    %v2759 = vadd.f32 %v2758, %v2599
    %v2760 = vadd.f32 %v2759, %v2603
    %v2761 = vadd.f32 %v2760, %v2607
    %v2762 = vadd.f32 %v2761, %v2611
    %v2763 = vadd.f32 %v2762, %v2615
    %v2764 = vadd.f32 %v2763, %v2619
    %v2765 = vadd.f32 %v2764, %v2623
    %v2766 = vrot.slane %v2765, 4
    %v2767 = vadd.f32 %v2765, %v2766
    %v2768 = vrot.slane %v2767, 2
    %v2769 = vadd.f32 %v2767, %v2768
    %v2770 = vrot.slane %v2769, 1
    %v2771 = vadd.f32 %v2769, %v2770
    %v2772 = vmul.f32 %v2660, 0.00390625
    %v2773 = vmul.f32 %v2697, 0.00390625
    %v2774 = vmul.f32 %v2734, 0.00390625
    %v2775 = vmul.f32 %v2771, 0.00390625
    %v2776 = vadd.f32 %v2772, 0.8
    %v2777 = vadd.f32 %v2773, 0.8
    %v2778 = vadd.f32 %v2774, 0.8
    %v2779 = vadd.f32 %v2775, 0.8
    %v2780 = vrsqrt.pop %v2776
    %v2781 = vrsqrt.pop %v2777
    %v2782 = vrsqrt.pop %v2778
    %v2783 = vrsqrt.pop %v2779
    %v2788 = vcombine.low %v2780, %v2781
    %v2789 = vcombine.low %v2782, %v2783
    %v2791 = vunpack.c.l.s4 1966171168
    %v2792 = vunpack.c.0.s8 %v2791
    %v2793 = vlaneseq
    %v2794 = vshrl.u32 %v2793, 7
    %v2795 = vsub.s32 %v2792, %v2794
    %v2796 = vrot.slane %v2788, %v2795
    %v2798 = vunpack.c.l.s4 1966171168
    %v2799 = vunpack.c.0.s8 %v2798
    %v2800 = vlaneseq
    %v2801 = vshrl.u32 %v2800, 7
    %v2802 = vsub.s32 %v2799, %v2801
    %v2803 = vrot.slane %v2789, %v2802
    %v2804 = vcombine.low %v2796, %v2803
    %v2806 = vunpack.c.l.s4 1966171168
    %v2807 = vunpack.c.0.s8 %v2806
    %v2808 = vlaneseq
    %v2809 = vshrl.u32 %v2808, 7
    %v2810 = vsub.s32 %v2807, %v2809
    %v2811 = vrot.slane %v2804, %v2810
    %v2813 = vmul.f32 %v2214, %v2811
    %v2815 = vlaneseq
    %v2816 = vshrl.u32 %v2815, 7
    %v2817 = vsub.s32 0, %v2816
    %v2818 = vrot.slane %v2813, %v2817
    %v2819 = vlaneseq
    %v2820 = vshrl.u32 %v2819, 7
    %v2821 = vsub.s32 1, %v2820
    %v2822 = vrot.slane %v2813, %v2821
    %v2823 = vlaneseq
    %v2824 = vshrl.u32 %v2823, 7
    %v2825 = vsub.s32 2, %v2824
    %v2826 = vrot.slane %v2813, %v2825
    %v2827 = vlaneseq
    %v2828 = vshrl.u32 %v2827, 7
    %v2829 = vsub.s32 3, %v2828
    %v2830 = vrot.slane %v2813, %v2829
    %v2835 = vmul.f32 %v2368, %v2818
    %v2836 = vmul.f32 %v2369, %v2822
    %v2837 = vmul.f32 %v2370, %v2826
    %v2838 = vmul.f32 %v2371, %v2830
    %v2839 = vmul.f32 %v2372, %v2818
    %v2840 = vmul.f32 %v2373, %v2822
    %v2841 = vmul.f32 %v2374, %v2826
    %v2842 = vmul.f32 %v2375, %v2830
    %v2843 = vmul.f32 %v2376, %v2818
    %v2844 = vmul.f32 %v2377, %v2822
    %v2845 = vmul.f32 %v2378, %v2826
    %v2846 = vmul.f32 %v2379, %v2830
    %v2847 = vmul.f32 %v2380, %v2818
    %v2848 = vmul.f32 %v2381, %v2822
    %v2849 = vmul.f32 %v2382, %v2826
    %v2850 = vmul.f32 %v2383, %v2830
    %v2851 = vmul.f32 %v2384, %v2818
    %v2852 = vmul.f32 %v2385, %v2822
    %v2853 = vmul.f32 %v2386, %v2826
    %v2854 = vmul.f32 %v2387, %v2830
    %v2855 = vmul.f32 %v2388, %v2818
    %v2856 = vmul.f32 %v2389, %v2822
    %v2857 = vmul.f32 %v2390, %v2826
    %v2858 = vmul.f32 %v2391, %v2830
    %v2859 = vmul.f32 %v2392, %v2818
    %v2860 = vmul.f32 %v2393, %v2822
    %v2861 = vmul.f32 %v2394, %v2826
    %v2862 = vmul.f32 %v2395, %v2830
    %v2863 = vmul.f32 %v2396, %v2818
    %v2864 = vmul.f32 %v2397, %v2822
    %v2865 = vmul.f32 %v2398, %v2826
    %v2866 = vmul.f32 %v2399, %v2830
    %v2867 = vmul.f32 %v2400, %v2818
    %v2868 = vmul.f32 %v2401, %v2822
    %v2869 = vmul.f32 %v2402, %v2826
    %v2870 = vmul.f32 %v2403, %v2830
    %v2871 = vmul.f32 %v2404, %v2818
    %v2872 = vmul.f32 %v2405, %v2822
    %v2873 = vmul.f32 %v2406, %v2826
    %v2874 = vmul.f32 %v2407, %v2830
    %v2875 = vmul.f32 %v2408, %v2818
    %v2876 = vmul.f32 %v2409, %v2822
    %v2877 = vmul.f32 %v2410, %v2826
    %v2878 = vmul.f32 %v2411, %v2830
    %v2879 = vmul.f32 %v2412, %v2818
    %v2880 = vmul.f32 %v2413, %v2822
    %v2881 = vmul.f32 %v2414, %v2826
    %v2882 = vmul.f32 %v2415, %v2830
    %v2883 = vmul.f32 %v2416, %v2818
    %v2884 = vmul.f32 %v2417, %v2822
    %v2885 = vmul.f32 %v2418, %v2826
    %v2886 = vmul.f32 %v2419, %v2830
    %v2887 = vmul.f32 %v2420, %v2818
    %v2888 = vmul.f32 %v2421, %v2822
    %v2889 = vmul.f32 %v2422, %v2826
    %v2890 = vmul.f32 %v2423, %v2830
    %v2891 = vmul.f32 %v2424, %v2818
    %v2892 = vmul.f32 %v2425, %v2822
    %v2893 = vmul.f32 %v2426, %v2826
    %v2894 = vmul.f32 %v2427, %v2830
    %v2895 = vmul.f32 %v2428, %v2818
    %v2896 = vmul.f32 %v2429, %v2822
    %v2897 = vmul.f32 %v2430, %v2826
    %v2898 = vmul.f32 %v2431, %v2830
    %v2899 = vmul.f32 %v2432, %v2818
    %v2900 = vmul.f32 %v2433, %v2822
    %v2901 = vmul.f32 %v2434, %v2826
    %v2902 = vmul.f32 %v2435, %v2830
    %v2903 = vmul.f32 %v2436, %v2818
    %v2904 = vmul.f32 %v2437, %v2822
    %v2905 = vmul.f32 %v2438, %v2826
    %v2906 = vmul.f32 %v2439, %v2830
    %v2907 = vmul.f32 %v2440, %v2818
    %v2908 = vmul.f32 %v2441, %v2822
    %v2909 = vmul.f32 %v2442, %v2826
    %v2910 = vmul.f32 %v2443, %v2830
    %v2911 = vmul.f32 %v2444, %v2818
    %v2912 = vmul.f32 %v2445, %v2822
    %v2913 = vmul.f32 %v2446, %v2826
    %v2914 = vmul.f32 %v2447, %v2830
    %v2915 = vmul.f32 %v2448, %v2818
    %v2916 = vmul.f32 %v2449, %v2822
    %v2917 = vmul.f32 %v2450, %v2826
    %v2918 = vmul.f32 %v2451, %v2830
    %v2919 = vmul.f32 %v2452, %v2818
    %v2920 = vmul.f32 %v2453, %v2822
    %v2921 = vmul.f32 %v2454, %v2826
    %v2922 = vmul.f32 %v2455, %v2830
    %v2923 = vmul.f32 %v2456, %v2818
    %v2924 = vmul.f32 %v2457, %v2822
    %v2925 = vmul.f32 %v2458, %v2826
    %v2926 = vmul.f32 %v2459, %v2830
    %v2927 = vmul.f32 %v2460, %v2818
    %v2928 = vmul.f32 %v2461, %v2822
    %v2929 = vmul.f32 %v2462, %v2826
    %v2930 = vmul.f32 %v2463, %v2830
    %v2931 = vmul.f32 %v2464, %v2818
    %v2932 = vmul.f32 %v2465, %v2822
    %v2933 = vmul.f32 %v2466, %v2826
    %v2934 = vmul.f32 %v2467, %v2830
    %v2935 = vmul.f32 %v2468, %v2818
    %v2936 = vmul.f32 %v2469, %v2822
    %v2937 = vmul.f32 %v2470, %v2826
    %v2938 = vmul.f32 %v2471, %v2830
    %v2939 = vmul.f32 %v2472, %v2818
    %v2940 = vmul.f32 %v2473, %v2822
    %v2941 = vmul.f32 %v2474, %v2826
    %v2942 = vmul.f32 %v2475, %v2830
    %v2943 = vmul.f32 %v2476, %v2818
    %v2944 = vmul.f32 %v2477, %v2822
    %v2945 = vmul.f32 %v2478, %v2826
    %v2946 = vmul.f32 %v2479, %v2830
    %v2947 = vmul.f32 %v2480, %v2818
    %v2948 = vmul.f32 %v2481, %v2822
    %v2949 = vmul.f32 %v2482, %v2826
    %v2950 = vmul.f32 %v2483, %v2830
    %v2951 = vmul.f32 %v2484, %v2818
    %v2952 = vmul.f32 %v2485, %v2822
    %v2953 = vmul.f32 %v2486, %v2826
    %v2954 = vmul.f32 %v2487, %v2830
    %v2955 = vmul.f32 %v2488, %v2818
    %v2956 = vmul.f32 %v2489, %v2822
    %v2957 = vmul.f32 %v2490, %v2826
    %v2958 = vmul.f32 %v2491, %v2830
    %v2959 = vmul.f32 %v2492, %v2818
    %v2960 = vmul.f32 %v2493, %v2822
    %v2961 = vmul.f32 %v2494, %v2826
    %v2962 = vmul.f32 %v2495, %v2830
    %v2964 = vlaneseq
    %v2965 = vshrl.u32 %v2964, 7
    %v2966 = vsub.s32 0, %v2965
    %v2967 = vrot.slane %v2215, %v2966
    %v2968 = vlaneseq
    %v2969 = vshrl.u32 %v2968, 7
    %v2970 = vsub.s32 1, %v2969
    %v2971 = vrot.slane %v2215, %v2970
    %v2972 = vlaneseq
    %v2973 = vshrl.u32 %v2972, 7
    %v2974 = vsub.s32 2, %v2973
    %v2975 = vrot.slane %v2215, %v2974
    %v2976 = vlaneseq
    %v2977 = vshrl.u32 %v2976, 7
    %v2978 = vsub.s32 3, %v2977
    %v2979 = vrot.slane %v2215, %v2978
    %v2984 = vadd.f32 %v2835, %v2967
    %v2985 = vadd.f32 %v2836, %v2971
    %v2986 = vadd.f32 %v2837, %v2975
    %v2987 = vadd.f32 %v2838, %v2979
    %v2988 = vadd.f32 %v2839, %v2967
    %v2989 = vadd.f32 %v2840, %v2971
    %v2990 = vadd.f32 %v2841, %v2975
    %v2991 = vadd.f32 %v2842, %v2979
    %v2992 = vadd.f32 %v2843, %v2967
    %v2993 = vadd.f32 %v2844, %v2971
    %v2994 = vadd.f32 %v2845, %v2975
    %v2995 = vadd.f32 %v2846, %v2979
    %v2996 = vadd.f32 %v2847, %v2967
    %v2997 = vadd.f32 %v2848, %v2971
    %v2998 = vadd.f32 %v2849, %v2975
    %v2999 = vadd.f32 %v2850, %v2979
    %v3000 = vadd.f32 %v2851, %v2967
    %v3001 = vadd.f32 %v2852, %v2971
    %v3002 = vadd.f32 %v2853, %v2975
    %v3003 = vadd.f32 %v2854, %v2979
    %v3004 = vadd.f32 %v2855, %v2967
    %v3005 = vadd.f32 %v2856, %v2971
    %v3006 = vadd.f32 %v2857, %v2975
    %v3007 = vadd.f32 %v2858, %v2979
    %v3008 = vadd.f32 %v2859, %v2967
    %v3009 = vadd.f32 %v2860, %v2971
    %v3010 = vadd.f32 %v2861, %v2975
    %v3011 = vadd.f32 %v2862, %v2979
    %v3012 = vadd.f32 %v2863, %v2967
    %v3013 = vadd.f32 %v2864, %v2971
    %v3014 = vadd.f32 %v2865, %v2975
    %v3015 = vadd.f32 %v2866, %v2979
    %v3016 = vadd.f32 %v2867, %v2967
    %v3017 = vadd.f32 %v2868, %v2971
    %v3018 = vadd.f32 %v2869, %v2975
    %v3019 = vadd.f32 %v2870, %v2979
    %v3020 = vadd.f32 %v2871, %v2967
    %v3021 = vadd.f32 %v2872, %v2971
    %v3022 = vadd.f32 %v2873, %v2975
    %v3023 = vadd.f32 %v2874, %v2979
    %v3024 = vadd.f32 %v2875, %v2967
    %v3025 = vadd.f32 %v2876, %v2971
    %v3026 = vadd.f32 %v2877, %v2975
    %v3027 = vadd.f32 %v2878, %v2979
    %v3028 = vadd.f32 %v2879, %v2967
    %v3029 = vadd.f32 %v2880, %v2971
    %v3030 = vadd.f32 %v2881, %v2975
    %v3031 = vadd.f32 %v2882, %v2979
    %v3032 = vadd.f32 %v2883, %v2967
    %v3033 = vadd.f32 %v2884, %v2971
    %v3034 = vadd.f32 %v2885, %v2975
    %v3035 = vadd.f32 %v2886, %v2979
    %v3036 = vadd.f32 %v2887, %v2967
    %v3037 = vadd.f32 %v2888, %v2971
    %v3038 = vadd.f32 %v2889, %v2975
    %v3039 = vadd.f32 %v2890, %v2979
    %v3040 = vadd.f32 %v2891, %v2967
    %v3041 = vadd.f32 %v2892, %v2971
    %v3042 = vadd.f32 %v2893, %v2975
    %v3043 = vadd.f32 %v2894, %v2979
    %v3044 = vadd.f32 %v2895, %v2967
    %v3045 = vadd.f32 %v2896, %v2971
    %v3046 = vadd.f32 %v2897, %v2975
    %v3047 = vadd.f32 %v2898, %v2979
    %v3048 = vadd.f32 %v2899, %v2967
    %v3049 = vadd.f32 %v2900, %v2971
    %v3050 = vadd.f32 %v2901, %v2975
    %v3051 = vadd.f32 %v2902, %v2979
    %v3052 = vadd.f32 %v2903, %v2967
    %v3053 = vadd.f32 %v2904, %v2971
    %v3054 = vadd.f32 %v2905, %v2975
    %v3055 = vadd.f32 %v2906, %v2979
    %v3056 = vadd.f32 %v2907, %v2967
    %v3057 = vadd.f32 %v2908, %v2971
    %v3058 = vadd.f32 %v2909, %v2975
    %v3059 = vadd.f32 %v2910, %v2979
    %v3060 = vadd.f32 %v2911, %v2967
    %v3061 = vadd.f32 %v2912, %v2971
    %v3062 = vadd.f32 %v2913, %v2975
    %v3063 = vadd.f32 %v2914, %v2979
    %v3064 = vadd.f32 %v2915, %v2967
    %v3065 = vadd.f32 %v2916, %v2971
    %v3066 = vadd.f32 %v2917, %v2975
    %v3067 = vadd.f32 %v2918, %v2979
    %v3068 = vadd.f32 %v2919, %v2967
    %v3069 = vadd.f32 %v2920, %v2971
    %v3070 = vadd.f32 %v2921, %v2975
    %v3071 = vadd.f32 %v2922, %v2979
    %v3072 = vadd.f32 %v2923, %v2967
    %v3073 = vadd.f32 %v2924, %v2971
    %v3074 = vadd.f32 %v2925, %v2975
    %v3075 = vadd.f32 %v2926, %v2979
    %v3076 = vadd.f32 %v2927, %v2967
    %v3077 = vadd.f32 %v2928, %v2971
    %v3078 = vadd.f32 %v2929, %v2975
    %v3079 = vadd.f32 %v2930, %v2979
    %v3080 = vadd.f32 %v2931, %v2967
    %v3081 = vadd.f32 %v2932, %v2971
    %v3082 = vadd.f32 %v2933, %v2975
    %v3083 = vadd.f32 %v2934, %v2979
    %v3084 = vadd.f32 %v2935, %v2967
    %v3085 = vadd.f32 %v2936, %v2971
    %v3086 = vadd.f32 %v2937, %v2975
    %v3087 = vadd.f32 %v2938, %v2979
    %v3088 = vadd.f32 %v2939, %v2967
    %v3089 = vadd.f32 %v2940, %v2971
    %v3090 = vadd.f32 %v2941, %v2975
    %v3091 = vadd.f32 %v2942, %v2979
    %v3092 = vadd.f32 %v2943, %v2967
    %v3093 = vadd.f32 %v2944, %v2971
    %v3094 = vadd.f32 %v2945, %v2975
    %v3095 = vadd.f32 %v2946, %v2979
    %v3096 = vadd.f32 %v2947, %v2967
    %v3097 = vadd.f32 %v2948, %v2971
    %v3098 = vadd.f32 %v2949, %v2975
    %v3099 = vadd.f32 %v2950, %v2979
    %v3100 = vadd.f32 %v2951, %v2967
    %v3101 = vadd.f32 %v2952, %v2971
    %v3102 = vadd.f32 %v2953, %v2975
    %v3103 = vadd.f32 %v2954, %v2979
    %v3104 = vadd.f32 %v2955, %v2967
    %v3105 = vadd.f32 %v2956, %v2971
    %v3106 = vadd.f32 %v2957, %v2975
    %v3107 = vadd.f32 %v2958, %v2979
    %v3108 = vadd.f32 %v2959, %v2967
    %v3109 = vadd.f32 %v2960, %v2971
    %v3110 = vadd.f32 %v2961, %v2975
    %v3111 = vadd.f32 %v2962, %v2979
    %v3112 = vmul.f32 %v2984, 0.2
    %v3113 = vmul.f32 %v2985, 0.2
    %v3114 = vmul.f32 %v2986, 0.2
    %v3115 = vmul.f32 %v2987, 0.2
    %v3116 = vmul.f32 %v2988, 0.2
    %v3117 = vmul.f32 %v2989, 0.2
    %v3118 = vmul.f32 %v2990, 0.2
    %v3119 = vmul.f32 %v2991, 0.2
    %v3120 = vmul.f32 %v2992, 0.2
    %v3121 = vmul.f32 %v2993, 0.2
    %v3122 = vmul.f32 %v2994, 0.2
    %v3123 = vmul.f32 %v2995, 0.2
    %v3124 = vmul.f32 %v2996, 0.2
    %v3125 = vmul.f32 %v2997, 0.2
    %v3126 = vmul.f32 %v2998, 0.2
    %v3127 = vmul.f32 %v2999, 0.2
    %v3128 = vmul.f32 %v3000, 0.2
    %v3129 = vmul.f32 %v3001, 0.2
    %v3130 = vmul.f32 %v3002, 0.2
    %v3131 = vmul.f32 %v3003, 0.2
    %v3132 = vmul.f32 %v3004, 0.2
    %v3133 = vmul.f32 %v3005, 0.2
    %v3134 = vmul.f32 %v3006, 0.2
    %v3135 = vmul.f32 %v3007, 0.2
    %v3136 = vmul.f32 %v3008, 0.2
    %v3137 = vmul.f32 %v3009, 0.2
    %v3138 = vmul.f32 %v3010, 0.2
    %v3139 = vmul.f32 %v3011, 0.2
    %v3140 = vmul.f32 %v3012, 0.2
    %v3141 = vmul.f32 %v3013, 0.2
    %v3142 = vmul.f32 %v3014, 0.2
    %v3143 = vmul.f32 %v3015, 0.2
    %v3144 = vmul.f32 %v3016, 0.2
    %v3145 = vmul.f32 %v3017, 0.2
    %v3146 = vmul.f32 %v3018, 0.2
    %v3147 = vmul.f32 %v3019, 0.2
    %v3148 = vmul.f32 %v3020, 0.2
    %v3149 = vmul.f32 %v3021, 0.2
    %v3150 = vmul.f32 %v3022, 0.2
    %v3151 = vmul.f32 %v3023, 0.2
    %v3152 = vmul.f32 %v3024, 0.2
    %v3153 = vmul.f32 %v3025, 0.2
    %v3154 = vmul.f32 %v3026, 0.2
    %v3155 = vmul.f32 %v3027, 0.2
    %v3156 = vmul.f32 %v3028, 0.2
    %v3157 = vmul.f32 %v3029, 0.2
    %v3158 = vmul.f32 %v3030, 0.2
    %v3159 = vmul.f32 %v3031, 0.2
    %v3160 = vmul.f32 %v3032, 0.2
    %v3161 = vmul.f32 %v3033, 0.2
    %v3162 = vmul.f32 %v3034, 0.2
    %v3163 = vmul.f32 %v3035, 0.2
    %v3164 = vmul.f32 %v3036, 0.2
    %v3165 = vmul.f32 %v3037, 0.2
    %v3166 = vmul.f32 %v3038, 0.2
    %v3167 = vmul.f32 %v3039, 0.2
    %v3168 = vmul.f32 %v3040, 0.2
    %v3169 = vmul.f32 %v3041, 0.2
    %v3170 = vmul.f32 %v3042, 0.2
    %v3171 = vmul.f32 %v3043, 0.2
    %v3172 = vmul.f32 %v3044, 0.2
    %v3173 = vmul.f32 %v3045, 0.2
    %v3174 = vmul.f32 %v3046, 0.2
    %v3175 = vmul.f32 %v3047, 0.2
    %v3176 = vmul.f32 %v3048, 0.2
    %v3177 = vmul.f32 %v3049, 0.2
    %v3178 = vmul.f32 %v3050, 0.2
    %v3179 = vmul.f32 %v3051, 0.2
    %v3180 = vmul.f32 %v3052, 0.2
    %v3181 = vmul.f32 %v3053, 0.2
    %v3182 = vmul.f32 %v3054, 0.2
    %v3183 = vmul.f32 %v3055, 0.2
    %v3184 = vmul.f32 %v3056, 0.2
    %v3185 = vmul.f32 %v3057, 0.2
    %v3186 = vmul.f32 %v3058, 0.2
    %v3187 = vmul.f32 %v3059, 0.2
    %v3188 = vmul.f32 %v3060, 0.2
    %v3189 = vmul.f32 %v3061, 0.2
    %v3190 = vmul.f32 %v3062, 0.2
    %v3191 = vmul.f32 %v3063, 0.2
    %v3192 = vmul.f32 %v3064, 0.2
    %v3193 = vmul.f32 %v3065, 0.2
    %v3194 = vmul.f32 %v3066, 0.2
    %v3195 = vmul.f32 %v3067, 0.2
    %v3196 = vmul.f32 %v3068, 0.2
    %v3197 = vmul.f32 %v3069, 0.2
    %v3198 = vmul.f32 %v3070, 0.2
    %v3199 = vmul.f32 %v3071, 0.2
    %v3200 = vmul.f32 %v3072, 0.2
    %v3201 = vmul.f32 %v3073, 0.2
    %v3202 = vmul.f32 %v3074, 0.2
    %v3203 = vmul.f32 %v3075, 0.2
    %v3204 = vmul.f32 %v3076, 0.2
    %v3205 = vmul.f32 %v3077, 0.2
    %v3206 = vmul.f32 %v3078, 0.2
    %v3207 = vmul.f32 %v3079, 0.2
    %v3208 = vmul.f32 %v3080, 0.2
    %v3209 = vmul.f32 %v3081, 0.2
    %v3210 = vmul.f32 %v3082, 0.2
    %v3211 = vmul.f32 %v3083, 0.2
    %v3212 = vmul.f32 %v3084, 0.2
    %v3213 = vmul.f32 %v3085, 0.2
    %v3214 = vmul.f32 %v3086, 0.2
    %v3215 = vmul.f32 %v3087, 0.2
    %v3216 = vmul.f32 %v3088, 0.2
    %v3217 = vmul.f32 %v3089, 0.2
    %v3218 = vmul.f32 %v3090, 0.2
    %v3219 = vmul.f32 %v3091, 0.2
    %v3220 = vmul.f32 %v3092, 0.2
    %v3221 = vmul.f32 %v3093, 0.2
    %v3222 = vmul.f32 %v3094, 0.2
    %v3223 = vmul.f32 %v3095, 0.2
    %v3224 = vmul.f32 %v3096, 0.2
    %v3225 = vmul.f32 %v3097, 0.2
    %v3226 = vmul.f32 %v3098, 0.2
    %v3227 = vmul.f32 %v3099, 0.2
    %v3228 = vmul.f32 %v3100, 0.2
    %v3229 = vmul.f32 %v3101, 0.2
    %v3230 = vmul.f32 %v3102, 0.2
    %v3231 = vmul.f32 %v3103, 0.2
    %v3232 = vmul.f32 %v3104, 0.2
    %v3233 = vmul.f32 %v3105, 0.2
    %v3234 = vmul.f32 %v3106, 0.2
    %v3235 = vmul.f32 %v3107, 0.2
    %v3236 = vmul.f32 %v3108, 0.2
    %v3237 = vmul.f32 %v3109, 0.2
    %v3238 = vmul.f32 %v3110, 0.2
    %v3239 = vmul.f32 %v3111, 0.2
    %v3240 = vmax.f32 %v2984, %v3112
    %v3241 = vmax.f32 %v2985, %v3113
    %v3242 = vmax.f32 %v2986, %v3114
    %v3243 = vmax.f32 %v2987, %v3115
    %v3244 = vmax.f32 %v2988, %v3116
    %v3245 = vmax.f32 %v2989, %v3117
    %v3246 = vmax.f32 %v2990, %v3118
    %v3247 = vmax.f32 %v2991, %v3119
    %v3248 = vmax.f32 %v2992, %v3120
    %v3249 = vmax.f32 %v2993, %v3121
    %v3250 = vmax.f32 %v2994, %v3122
    %v3251 = vmax.f32 %v2995, %v3123
    %v3252 = vmax.f32 %v2996, %v3124
    %v3253 = vmax.f32 %v2997, %v3125
    %v3254 = vmax.f32 %v2998, %v3126
    %v3255 = vmax.f32 %v2999, %v3127
    %v3256 = vmax.f32 %v3000, %v3128
    %v3257 = vmax.f32 %v3001, %v3129
    %v3258 = vmax.f32 %v3002, %v3130
    %v3259 = vmax.f32 %v3003, %v3131
    %v3260 = vmax.f32 %v3004, %v3132
    %v3261 = vmax.f32 %v3005, %v3133
    %v3262 = vmax.f32 %v3006, %v3134
    %v3263 = vmax.f32 %v3007, %v3135
    %v3264 = vmax.f32 %v3008, %v3136
    %v3265 = vmax.f32 %v3009, %v3137
    %v3266 = vmax.f32 %v3010, %v3138
    %v3267 = vmax.f32 %v3011, %v3139
    %v3268 = vmax.f32 %v3012, %v3140
    %v3269 = vmax.f32 %v3013, %v3141
    %v3270 = vmax.f32 %v3014, %v3142
    %v3271 = vmax.f32 %v3015, %v3143
    %v3272 = vmax.f32 %v3016, %v3144
    %v3273 = vmax.f32 %v3017, %v3145
    %v3274 = vmax.f32 %v3018, %v3146
    %v3275 = vmax.f32 %v3019, %v3147
    %v3276 = vmax.f32 %v3020, %v3148
    %v3277 = vmax.f32 %v3021, %v3149
    %v3278 = vmax.f32 %v3022, %v3150
    %v3279 = vmax.f32 %v3023, %v3151
    %v3280 = vmax.f32 %v3024, %v3152
    %v3281 = vmax.f32 %v3025, %v3153
    %v3282 = vmax.f32 %v3026, %v3154
    %v3283 = vmax.f32 %v3027, %v3155
    %v3284 = vmax.f32 %v3028, %v3156
    %v3285 = vmax.f32 %v3029, %v3157
    %v3286 = vmax.f32 %v3030, %v3158
    %v3287 = vmax.f32 %v3031, %v3159
    %v3288 = vmax.f32 %v3032, %v3160
    %v3289 = vmax.f32 %v3033, %v3161
    %v3290 = vmax.f32 %v3034, %v3162
    %v3291 = vmax.f32 %v3035, %v3163
    %v3292 = vmax.f32 %v3036, %v3164
    %v3293 = vmax.f32 %v3037, %v3165
    %v3294 = vmax.f32 %v3038, %v3166
    %v3295 = vmax.f32 %v3039, %v3167
    %v3296 = vmax.f32 %v3040, %v3168
    %v3297 = vmax.f32 %v3041, %v3169
    %v3298 = vmax.f32 %v3042, %v3170
    %v3299 = vmax.f32 %v3043, %v3171
    %v3300 = vmax.f32 %v3044, %v3172
    %v3301 = vmax.f32 %v3045, %v3173
    %v3302 = vmax.f32 %v3046, %v3174
    %v3303 = vmax.f32 %v3047, %v3175
    %v3304 = vmax.f32 %v3048, %v3176
    %v3305 = vmax.f32 %v3049, %v3177
    %v3306 = vmax.f32 %v3050, %v3178
    %v3307 = vmax.f32 %v3051, %v3179
    %v3308 = vmax.f32 %v3052, %v3180
    %v3309 = vmax.f32 %v3053, %v3181
    %v3310 = vmax.f32 %v3054, %v3182
    %v3311 = vmax.f32 %v3055, %v3183
    %v3312 = vmax.f32 %v3056, %v3184
    %v3313 = vmax.f32 %v3057, %v3185
    %v3314 = vmax.f32 %v3058, %v3186
    %v3315 = vmax.f32 %v3059, %v3187
    %v3316 = vmax.f32 %v3060, %v3188
    %v3317 = vmax.f32 %v3061, %v3189
    %v3318 = vmax.f32 %v3062, %v3190
    %v3319 = vmax.f32 %v3063, %v3191
    %v3320 = vmax.f32 %v3064, %v3192
    %v3321 = vmax.f32 %v3065, %v3193
    %v3322 = vmax.f32 %v3066, %v3194
    %v3323 = vmax.f32 %v3067, %v3195
    %v3324 = vmax.f32 %v3068, %v3196
    %v3325 = vmax.f32 %v3069, %v3197
    %v3326 = vmax.f32 %v3070, %v3198
    %v3327 = vmax.f32 %v3071, %v3199
    %v3328 = vmax.f32 %v3072, %v3200
    %v3329 = vmax.f32 %v3073, %v3201
    %v3330 = vmax.f32 %v3074, %v3202
    %v3331 = vmax.f32 %v3075, %v3203
    %v3332 = vmax.f32 %v3076, %v3204
    %v3333 = vmax.f32 %v3077, %v3205
    %v3334 = vmax.f32 %v3078, %v3206
    %v3335 = vmax.f32 %v3079, %v3207
    %v3336 = vmax.f32 %v3080, %v3208
    %v3337 = vmax.f32 %v3081, %v3209
    %v3338 = vmax.f32 %v3082, %v3210
    %v3339 = vmax.f32 %v3083, %v3211
    %v3340 = vmax.f32 %v3084, %v3212
    %v3341 = vmax.f32 %v3085, %v3213
    %v3342 = vmax.f32 %v3086, %v3214
    %v3343 = vmax.f32 %v3087, %v3215
    %v3344 = vmax.f32 %v3088, %v3216
    %v3345 = vmax.f32 %v3089, %v3217
    %v3346 = vmax.f32 %v3090, %v3218
    %v3347 = vmax.f32 %v3091, %v3219
    %v3348 = vmax.f32 %v3092, %v3220
    %v3349 = vmax.f32 %v3093, %v3221
    %v3350 = vmax.f32 %v3094, %v3222
    %v3351 = vmax.f32 %v3095, %v3223
    %v3352 = vmax.f32 %v3096, %v3224
    %v3353 = vmax.f32 %v3097, %v3225
    %v3354 = vmax.f32 %v3098, %v3226
    %v3355 = vmax.f32 %v3099, %v3227
    %v3356 = vmax.f32 %v3100, %v3228
    %v3357 = vmax.f32 %v3101, %v3229
    %v3358 = vmax.f32 %v3102, %v3230
    %v3359 = vmax.f32 %v3103, %v3231
    %v3360 = vmax.f32 %v3104, %v3232
    %v3361 = vmax.f32 %v3105, %v3233
    %v3362 = vmax.f32 %v3106, %v3234
    %v3363 = vmax.f32 %v3107, %v3235
    %v3364 = vmax.f32 %v3108, %v3236
    %v3365 = vmax.f32 %v3109, %v3237
    %v3366 = vmax.f32 %v3110, %v3238
    %v3367 = vmax.f32 %v3111, %v3239
    %v3368 = vpack.c.bf16 %v3244, %v3240
    %v3369 = vpack.c.bf16 %v3245, %v3241
    %v3370 = vpack.c.bf16 %v3246, %v3242
    %v3371 = vpack.c.bf16 %v3247, %v3243
    %v3372 = vpack.c.bf16 %v3252, %v3248
    %v3373 = vpack.c.bf16 %v3253, %v3249
    %v3374 = vpack.c.bf16 %v3254, %v3250
    %v3375 = vpack.c.bf16 %v3255, %v3251
    %v3376 = vpack.c.bf16 %v3260, %v3256
    %v3377 = vpack.c.bf16 %v3261, %v3257
    %v3378 = vpack.c.bf16 %v3262, %v3258
    %v3379 = vpack.c.bf16 %v3263, %v3259
    %v3380 = vpack.c.bf16 %v3268, %v3264
    %v3381 = vpack.c.bf16 %v3269, %v3265
    %v3382 = vpack.c.bf16 %v3270, %v3266
    %v3383 = vpack.c.bf16 %v3271, %v3267
    %v3384 = vpack.c.bf16 %v3276, %v3272
    %v3385 = vpack.c.bf16 %v3277, %v3273
    %v3386 = vpack.c.bf16 %v3278, %v3274
    %v3387 = vpack.c.bf16 %v3279, %v3275
    %v3388 = vpack.c.bf16 %v3284, %v3280
    %v3389 = vpack.c.bf16 %v3285, %v3281
    %v3390 = vpack.c.bf16 %v3286, %v3282
    %v3391 = vpack.c.bf16 %v3287, %v3283
    %v3392 = vpack.c.bf16 %v3292, %v3288
    %v3393 = vpack.c.bf16 %v3293, %v3289
    %v3394 = vpack.c.bf16 %v3294, %v3290
    %v3395 = vpack.c.bf16 %v3295, %v3291
    %v3396 = vpack.c.bf16 %v3300, %v3296
    %v3397 = vpack.c.bf16 %v3301, %v3297
    %v3398 = vpack.c.bf16 %v3302, %v3298
    %v3399 = vpack.c.bf16 %v3303, %v3299
    %v3400 = vpack.c.bf16 %v3308, %v3304
    %v3401 = vpack.c.bf16 %v3309, %v3305
    %v3402 = vpack.c.bf16 %v3310, %v3306
    %v3403 = vpack.c.bf16 %v3311, %v3307
    %v3404 = vpack.c.bf16 %v3316, %v3312
    %v3405 = vpack.c.bf16 %v3317, %v3313
    %v3406 = vpack.c.bf16 %v3318, %v3314
    %v3407 = vpack.c.bf16 %v3319, %v3315
    %v3408 = vpack.c.bf16 %v3324, %v3320
    %v3409 = vpack.c.bf16 %v3325, %v3321
    %v3410 = vpack.c.bf16 %v3326, %v3322
    %v3411 = vpack.c.bf16 %v3327, %v3323
    %v3412 = vpack.c.bf16 %v3332, %v3328
    %v3413 = vpack.c.bf16 %v3333, %v3329
    %v3414 = vpack.c.bf16 %v3334, %v3330
    %v3415 = vpack.c.bf16 %v3335, %v3331
    %v3416 = vpack.c.bf16 %v3340, %v3336
    %v3417 = vpack.c.bf16 %v3341, %v3337
    %v3418 = vpack.c.bf16 %v3342, %v3338
    %v3419 = vpack.c.bf16 %v3343, %v3339
    %v3420 = vpack.c.bf16 %v3348, %v3344
    %v3421 = vpack.c.bf16 %v3349, %v3345
    %v3422 = vpack.c.bf16 %v3350, %v3346
    %v3423 = vpack.c.bf16 %v3351, %v3347
    %v3424 = vpack.c.bf16 %v3356, %v3352
    %v3425 = vpack.c.bf16 %v3357, %v3353
    %v3426 = vpack.c.bf16 %v3358, %v3354
    %v3427 = vpack.c.bf16 %v3359, %v3355
    %v3428 = vpack.c.bf16 %v3364, %v3360
    %v3429 = vpack.c.bf16 %v3365, %v3361
    %v3430 = vpack.c.bf16 %v3366, %v3362
    %v3431 = vpack.c.bf16 %v3367, %v3363
    %v3432 = vld [vmem:[#allocation4] sm:$0xff]
    %v3433 = vld [vmem:[#allocation4 + $0x8] sm:$0xff]
    %v3434 = vld [vmem:[#allocation4 + $0x10] sm:$0xff]
    %v3435 = vld [vmem:[#allocation4 + $0x18] sm:$0xff]
    %v3436 = vld [vmem:[#allocation4 + $0x20] sm:$0xff]
    %v3437 = vld [vmem:[#allocation4 + $0x28] sm:$0xff]
    %v3438 = vld [vmem:[#allocation4 + $0x30] sm:$0xff]
    %v3439 = vld [vmem:[#allocation4 + $0x38] sm:$0xff]
    %v3440 = vld [vmem:[#allocation4 + $0x40] sm:$0xff]
    %v3441 = vld [vmem:[#allocation4 + $0x48] sm:$0xff]
    %v3442 = vld [vmem:[#allocation4 + $0x50] sm:$0xff]
    %v3443 = vld [vmem:[#allocation4 + $0x58] sm:$0xff]
    %v3444 = vld [vmem:[#allocation4 + $0x60] sm:$0xff]
    %v3445 = vld [vmem:[#allocation4 + $0x68] sm:$0xff]
    %v3446 = vld [vmem:[#allocation4 + $0x70] sm:$0xff]
    %v3447 = vld [vmem:[#allocation4 + $0x78] sm:$0xff]
    %v3448 = vld [vmem:[#allocation4 + $0x80] sm:$0xff]
    %v3449 = vld [vmem:[#allocation4 + $0x88] sm:$0xff]
    %v3450 = vld [vmem:[#allocation4 + $0x90] sm:$0xff]
    %v3451 = vld [vmem:[#allocation4 + $0x98] sm:$0xff]
    %v3452 = vld [vmem:[#allocation4 + $0xa0] sm:$0xff]
    %v3453 = vld [vmem:[#allocation4 + $0xa8] sm:$0xff]
    %v3454 = vld [vmem:[#allocation4 + $0xb0] sm:$0xff]
    %v3455 = vld [vmem:[#allocation4 + $0xb8] sm:$0xff]
    %v3456 = vld [vmem:[#allocation4 + $0xc0] sm:$0xff]
    %v3457 = vld [vmem:[#allocation4 + $0xc8] sm:$0xff]
    %v3458 = vld [vmem:[#allocation4 + $0xd0] sm:$0xff]
    %v3459 = vld [vmem:[#allocation4 + $0xd8] sm:$0xff]
    %v3460 = vld [vmem:[#allocation4 + $0xe0] sm:$0xff]
    %v3461 = vld [vmem:[#allocation4 + $0xe8] sm:$0xff]
    %v3462 = vld [vmem:[#allocation4 + $0xf0] sm:$0xff]
    %v3463 = vld [vmem:[#allocation4 + $0xf8] sm:$0xff]
    %v3464 = vld [vmem:[#allocation4 + $0x100] sm:$0xff]
    %v3465 = vld [vmem:[#allocation4 + $0x108] sm:$0xff]
    %v3466 = vld [vmem:[#allocation4 + $0x110] sm:$0xff]
    %v3467 = vld [vmem:[#allocation4 + $0x118] sm:$0xff]
    %v3468 = vld [vmem:[#allocation4 + $0x120] sm:$0xff]
    %v3469 = vld [vmem:[#allocation4 + $0x128] sm:$0xff]
    %v3470 = vld [vmem:[#allocation4 + $0x130] sm:$0xff]
    %v3471 = vld [vmem:[#allocation4 + $0x138] sm:$0xff]
    %v3472 = vld [vmem:[#allocation4 + $0x140] sm:$0xff]
    %v3473 = vld [vmem:[#allocation4 + $0x148] sm:$0xff]
    %v3474 = vld [vmem:[#allocation4 + $0x150] sm:$0xff]
    %v3475 = vld [vmem:[#allocation4 + $0x158] sm:$0xff]
    %v3476 = vld [vmem:[#allocation4 + $0x160] sm:$0xff]
    %v3477 = vld [vmem:[#allocation4 + $0x168] sm:$0xff]
    %v3478 = vld [vmem:[#allocation4 + $0x170] sm:$0xff]
    %v3479 = vld [vmem:[#allocation4 + $0x178] sm:$0xff]
    %v3480 = vld [vmem:[#allocation4 + $0x180] sm:$0xff]
    %v3481 = vld [vmem:[#allocation4 + $0x188] sm:$0xff]
    %v3482 = vld [vmem:[#allocation4 + $0x190] sm:$0xff]
    %v3483 = vld [vmem:[#allocation4 + $0x198] sm:$0xff]
    %v3484 = vld [vmem:[#allocation4 + $0x1a0] sm:$0xff]
    %v3485 = vld [vmem:[#allocation4 + $0x1a8] sm:$0xff]
    %v3486 = vld [vmem:[#allocation4 + $0x1b0] sm:$0xff]
    %v3487 = vld [vmem:[#allocation4 + $0x1b8] sm:$0xff]
    %v3488 = vld [vmem:[#allocation4 + $0x1c0] sm:$0xff]
    %v3489 = vld [vmem:[#allocation4 + $0x1c8] sm:$0xff]
    %v3490 = vld [vmem:[#allocation4 + $0x1d0] sm:$0xff]
    %v3491 = vld [vmem:[#allocation4 + $0x1d8] sm:$0xff]
    %v3492 = vld [vmem:[#allocation4 + $0x1e0] sm:$0xff]
    %v3493 = vld [vmem:[#allocation4 + $0x1e8] sm:$0xff]
    %v3494 = vld [vmem:[#allocation4 + $0x1f0] sm:$0xff]
    %v3495 = vld [vmem:[#allocation4 + $0x1f8] sm:$0xff]
    %v3496 = vld [vmem:[%s12] sm:$0x3]
    %v3498 = vlaneseq
    %v3499 = vshrl.u32 %v3498, 7
    %v3500 = vsub.s32 0, %v3499
    %v3501 = vrot.slane %v3496, %v3500
    %v3502 = vlaneseq
    %v3503 = vshrl.u32 %v3502, 7
    %v3504 = vsub.s32 1, %v3503
    %v3505 = vrot.slane %v3496, %v3504
    %v3572 = vunpack.c.l.b16 %v3432
    %v3573 = vunpack.c.h.b16 %v3432
    %v3574 = vunpack.c.l.b16 %v3433
    %v3575 = vunpack.c.h.b16 %v3433
    %v3576 = vunpack.c.l.b16 %v3434
    %v3577 = vunpack.c.h.b16 %v3434
    %v3578 = vunpack.c.l.b16 %v3435
    %v3579 = vunpack.c.h.b16 %v3435
    %v3580 = vunpack.c.l.b16 %v3436
    %v3581 = vunpack.c.h.b16 %v3436
    %v3582 = vunpack.c.l.b16 %v3437
    %v3583 = vunpack.c.h.b16 %v3437
    %v3584 = vunpack.c.l.b16 %v3438
    %v3585 = vunpack.c.h.b16 %v3438
    %v3586 = vunpack.c.l.b16 %v3439
    %v3587 = vunpack.c.h.b16 %v3439
    %v3588 = vunpack.c.l.b16 %v3440
    %v3589 = vunpack.c.h.b16 %v3440
    %v3590 = vunpack.c.l.b16 %v3441
    %v3591 = vunpack.c.h.b16 %v3441
    %v3592 = vunpack.c.l.b16 %v3442
    %v3593 = vunpack.c.h.b16 %v3442
    %v3594 = vunpack.c.l.b16 %v3443
    %v3595 = vunpack.c.h.b16 %v3443
    %v3596 = vunpack.c.l.b16 %v3444
    %v3597 = vunpack.c.h.b16 %v3444
    %v3598 = vunpack.c.l.b16 %v3445
    %v3599 = vunpack.c.h.b16 %v3445
    %v3600 = vunpack.c.l.b16 %v3446
    %v3601 = vunpack.c.h.b16 %v3446
    %v3602 = vunpack.c.l.b16 %v3447
    %v3603 = vunpack.c.h.b16 %v3447
    %v3604 = vunpack.c.l.b16 %v3448
    %v3605 = vunpack.c.h.b16 %v3448
    %v3606 = vunpack.c.l.b16 %v3449
    %v3607 = vunpack.c.h.b16 %v3449
    %v3608 = vunpack.c.l.b16 %v3450
    %v3609 = vunpack.c.h.b16 %v3450
    %v3610 = vunpack.c.l.b16 %v3451
    %v3611 = vunpack.c.h.b16 %v3451
    %v3612 = vunpack.c.l.b16 %v3452
    %v3613 = vunpack.c.h.b16 %v3452
    %v3614 = vunpack.c.l.b16 %v3453
    %v3615 = vunpack.c.h.b16 %v3453
    %v3616 = vunpack.c.l.b16 %v3454
    %v3617 = vunpack.c.h.b16 %v3454
    %v3618 = vunpack.c.l.b16 %v3455
    %v3619 = vunpack.c.h.b16 %v3455
    %v3620 = vunpack.c.l.b16 %v3456
    %v3621 = vunpack.c.h.b16 %v3456
    %v3622 = vunpack.c.l.b16 %v3457
    %v3623 = vunpack.c.h.b16 %v3457
    %v3624 = vunpack.c.l.b16 %v3458
    %v3625 = vunpack.c.h.b16 %v3458
    %v3626 = vunpack.c.l.b16 %v3459
    %v3627 = vunpack.c.h.b16 %v3459
    %v3628 = vunpack.c.l.b16 %v3460
    %v3629 = vunpack.c.h.b16 %v3460
    %v3630 = vunpack.c.l.b16 %v3461
    %v3631 = vunpack.c.h.b16 %v3461
    %v3632 = vunpack.c.l.b16 %v3462
    %v3633 = vunpack.c.h.b16 %v3462
    %v3634 = vunpack.c.l.b16 %v3463
    %v3635 = vunpack.c.h.b16 %v3463
    %v3636 = vunpack.c.l.b16 %v3464
    %v3637 = vunpack.c.h.b16 %v3464
    %v3638 = vunpack.c.l.b16 %v3465
    %v3639 = vunpack.c.h.b16 %v3465
    %v3640 = vunpack.c.l.b16 %v3466
    %v3641 = vunpack.c.h.b16 %v3466
    %v3642 = vunpack.c.l.b16 %v3467
    %v3643 = vunpack.c.h.b16 %v3467
    %v3644 = vunpack.c.l.b16 %v3468
    %v3645 = vunpack.c.h.b16 %v3468
    %v3646 = vunpack.c.l.b16 %v3469
    %v3647 = vunpack.c.h.b16 %v3469
    %v3648 = vunpack.c.l.b16 %v3470
    %v3649 = vunpack.c.h.b16 %v3470
    %v3650 = vunpack.c.l.b16 %v3471
    %v3651 = vunpack.c.h.b16 %v3471
    %v3652 = vunpack.c.l.b16 %v3472
    %v3653 = vunpack.c.h.b16 %v3472
    %v3654 = vunpack.c.l.b16 %v3473
    %v3655 = vunpack.c.h.b16 %v3473
    %v3656 = vunpack.c.l.b16 %v3474
    %v3657 = vunpack.c.h.b16 %v3474
    %v3658 = vunpack.c.l.b16 %v3475
    %v3659 = vunpack.c.h.b16 %v3475
    %v3660 = vunpack.c.l.b16 %v3476
    %v3661 = vunpack.c.h.b16 %v3476
    %v3662 = vunpack.c.l.b16 %v3477
    %v3663 = vunpack.c.h.b16 %v3477
    %v3664 = vunpack.c.l.b16 %v3478
    %v3665 = vunpack.c.h.b16 %v3478
    %v3666 = vunpack.c.l.b16 %v3479
    %v3667 = vunpack.c.h.b16 %v3479
    %v3668 = vunpack.c.l.b16 %v3480
    %v3669 = vunpack.c.h.b16 %v3480
    %v3670 = vunpack.c.l.b16 %v3481
    %v3671 = vunpack.c.h.b16 %v3481
    %v3672 = vunpack.c.l.b16 %v3482
    %v3673 = vunpack.c.h.b16 %v3482
    %v3674 = vunpack.c.l.b16 %v3483
    %v3675 = vunpack.c.h.b16 %v3483
    %v3676 = vunpack.c.l.b16 %v3484
    %v3677 = vunpack.c.h.b16 %v3484
    %v3678 = vunpack.c.l.b16 %v3485
    %v3679 = vunpack.c.h.b16 %v3485
    %v3680 = vunpack.c.l.b16 %v3486
    %v3681 = vunpack.c.h.b16 %v3486
    %v3682 = vunpack.c.l.b16 %v3487
    %v3683 = vunpack.c.h.b16 %v3487
    %v3684 = vunpack.c.l.b16 %v3488
    %v3685 = vunpack.c.h.b16 %v3488
    %v3686 = vunpack.c.l.b16 %v3489
    %v3687 = vunpack.c.h.b16 %v3489
    %v3688 = vunpack.c.l.b16 %v3490
    %v3689 = vunpack.c.h.b16 %v3490
    %v3690 = vunpack.c.l.b16 %v3491
    %v3691 = vunpack.c.h.b16 %v3491
    %v3692 = vunpack.c.l.b16 %v3492
    %v3693 = vunpack.c.h.b16 %v3492
    %v3694 = vunpack.c.l.b16 %v3493
    %v3695 = vunpack.c.h.b16 %v3493
    %v3696 = vunpack.c.l.b16 %v3494
    %v3697 = vunpack.c.h.b16 %v3494
    %v3698 = vunpack.c.l.b16 %v3495
    %v3699 = vunpack.c.h.b16 %v3495
    %v3700 = vpack.c.b16 %v3574, %v3572
    %v3701 = vpack.c.b16 %v3575, %v3573
    %v3702 = vpack.c.b16 %v3578, %v3576
    %v3703 = vpack.c.b16 %v3579, %v3577
    %v3704 = vpack.c.b16 %v3582, %v3580
    %v3705 = vpack.c.b16 %v3583, %v3581
    %v3706 = vpack.c.b16 %v3586, %v3584
    %v3707 = vpack.c.b16 %v3587, %v3585
    %v3708 = vpack.c.b16 %v3590, %v3588
    %v3709 = vpack.c.b16 %v3591, %v3589
    %v3710 = vpack.c.b16 %v3594, %v3592
    %v3711 = vpack.c.b16 %v3595, %v3593
    %v3712 = vpack.c.b16 %v3598, %v3596
    %v3713 = vpack.c.b16 %v3599, %v3597
    %v3714 = vpack.c.b16 %v3602, %v3600
    %v3715 = vpack.c.b16 %v3603, %v3601
    %v3716 = vpack.c.b16 %v3606, %v3604
    %v3717 = vpack.c.b16 %v3607, %v3605
    %v3718 = vpack.c.b16 %v3610, %v3608
    %v3719 = vpack.c.b16 %v3611, %v3609
    %v3720 = vpack.c.b16 %v3614, %v3612
    %v3721 = vpack.c.b16 %v3615, %v3613
    %v3722 = vpack.c.b16 %v3618, %v3616
    %v3723 = vpack.c.b16 %v3619, %v3617
    %v3724 = vpack.c.b16 %v3622, %v3620
    %v3725 = vpack.c.b16 %v3623, %v3621
    %v3726 = vpack.c.b16 %v3626, %v3624
    %v3727 = vpack.c.b16 %v3627, %v3625
    %v3728 = vpack.c.b16 %v3630, %v3628
    %v3729 = vpack.c.b16 %v3631, %v3629
    %v3730 = vpack.c.b16 %v3634, %v3632
    %v3731 = vpack.c.b16 %v3635, %v3633
    %v3732 = vpack.c.b16 %v3638, %v3636
    %v3733 = vpack.c.b16 %v3639, %v3637
    %v3734 = vpack.c.b16 %v3642, %v3640
    %v3735 = vpack.c.b16 %v3643, %v3641
    %v3736 = vpack.c.b16 %v3646, %v3644
    %v3737 = vpack.c.b16 %v3647, %v3645
    %v3738 = vpack.c.b16 %v3650, %v3648
    %v3739 = vpack.c.b16 %v3651, %v3649
    %v3740 = vpack.c.b16 %v3654, %v3652
    %v3741 = vpack.c.b16 %v3655, %v3653
    %v3742 = vpack.c.b16 %v3658, %v3656
    %v3743 = vpack.c.b16 %v3659, %v3657
    %v3744 = vpack.c.b16 %v3662, %v3660
    %v3745 = vpack.c.b16 %v3663, %v3661
    %v3746 = vpack.c.b16 %v3666, %v3664
    %v3747 = vpack.c.b16 %v3667, %v3665
    %v3748 = vpack.c.b16 %v3670, %v3668
    %v3749 = vpack.c.b16 %v3671, %v3669
    %v3750 = vpack.c.b16 %v3674, %v3672
    %v3751 = vpack.c.b16 %v3675, %v3673
    %v3752 = vpack.c.b16 %v3678, %v3676
    %v3753 = vpack.c.b16 %v3679, %v3677
    %v3754 = vpack.c.b16 %v3682, %v3680
    %v3755 = vpack.c.b16 %v3683, %v3681
    %v3756 = vpack.c.b16 %v3686, %v3684
    %v3757 = vpack.c.b16 %v3687, %v3685
    %v3758 = vpack.c.b16 %v3690, %v3688
    %v3759 = vpack.c.b16 %v3691, %v3689
    %v3760 = vpack.c.b16 %v3694, %v3692
    %v3761 = vpack.c.b16 %v3695, %v3693
    %v3762 = vpack.c.b16 %v3698, %v3696
    %v3763 = vpack.c.b16 %v3699, %v3697
    %3828 = vmatprep.subr.bf16.mxu0 %v3701
    %3829 = vmatpush1.bf16.msra.mxu0 %v3700
    %3830 = vmatprep.subr.bf16.mxu0 %v3703
    %3831 = vmatpush1.bf16.msra.mxu0 %v3702
    %3832 = vmatprep.subr.bf16.mxu0 %v3705
    %3833 = vmatpush1.bf16.msra.mxu0 %v3704
    %3834 = vmatprep.subr.bf16.mxu0 %v3707
    %3835 = vmatpush1.bf16.msra.mxu0 %v3706
    %3836 = vmatprep.subr.bf16.mxu0 %v3709
    %3837 = vmatpush1.bf16.msra.mxu0 %v3708
    %3838 = vmatprep.subr.bf16.mxu0 %v3711
    %3839 = vmatpush1.bf16.msra.mxu0 %v3710
    %3840 = vmatprep.subr.bf16.mxu0 %v3713
    %3841 = vmatpush1.bf16.msra.mxu0 %v3712
    %3842 = vmatprep.subr.bf16.mxu0 %v3715
    %3843 = vmatpush1.bf16.msra.mxu0 %v3714
    %3844 = vmatprep.subr.bf16.mxu0 %v3717
    %3845 = vmatpush1.bf16.msra.mxu0 %v3716
    %3846 = vmatprep.subr.bf16.mxu0 %v3719
    %3847 = vmatpush1.bf16.msra.mxu0 %v3718
    %3848 = vmatprep.subr.bf16.mxu0 %v3721
    %3849 = vmatpush1.bf16.msra.mxu0 %v3720
    %3850 = vmatprep.subr.bf16.mxu0 %v3723
    %3851 = vmatpush1.bf16.msra.mxu0 %v3722
    %3852 = vmatprep.subr.bf16.mxu0 %v3725
    %3853 = vmatpush1.bf16.msra.mxu0 %v3724
    %3854 = vmatprep.subr.bf16.mxu0 %v3727
    %3855 = vmatpush1.bf16.msra.mxu0 %v3726
    %3856 = vmatprep.subr.bf16.mxu0 %v3729
    %3857 = vmatpush1.bf16.msra.mxu0 %v3728
    %3858 = vmatprep.subr.bf16.mxu0 %v3731
    %3859 = vmatpush1.bf16.msra.mxu0 %v3730
    %3860 = vmatprep.mubr.bf16.mxu0 %v3369
    %3861 = vmatmul.mubr.bf16.gmra.mrb[0].mxu0 %v3368
    %v3862 = vpop.f32.mrb[0].mxu0
    %v3863 = vadd.f32 %v3501, %v3862
    %v3864 = vpop.f32.mrb[0].mxu0
    %v3865 = vadd.f32 %v3505, %v3864
    %v3866 = vpop.f32.mrb[0].mxu0
    %v3867 = vadd.f32 %v3501, %v3866
    %v3868 = vpop.f32.mrb[0].mxu0
    %v3869 = vadd.f32 %v3505, %v3868
    %3870 = vmatprep.mubr.bf16.mxu0 %v3373
    %3871 = vmatmul.mubr.bf16.gmra.mrb[0].mxu0 %v3372
    %v3872 = vpop.f32.mrb[0].mxu0
    %v3873 = vadd.f32 %v3501, %v3872
    %v3874 = vpop.f32.mrb[0].mxu0
    %v3875 = vadd.f32 %v3505, %v3874
    %v3876 = vpop.f32.mrb[0].mxu0
    %v3877 = vadd.f32 %v3501, %v3876
    %v3878 = vpop.f32.mrb[0].mxu0
    %v3879 = vadd.f32 %v3505, %v3878
    %3880 = vmatprep.mubr.bf16.mxu0 %v3377
    %3881 = vmatmul.mubr.bf16.gmra.mrb[0].mxu0 %v3376
    %v3882 = vpop.f32.mrb[0].mxu0
    %v3883 = vadd.f32 %v3501, %v3882
    %v3884 = vpop.f32.mrb[0].mxu0
    %v3885 = vadd.f32 %v3505, %v3884
    %v3886 = vpop.f32.mrb[0].mxu0
    %v3887 = vadd.f32 %v3501, %v3886
    %v3888 = vpop.f32.mrb[0].mxu0
    %v3889 = vadd.f32 %v3505, %v3888
    %3890 = vmatprep.mubr.bf16.mxu0 %v3381
    %3891 = vmatmul.mubr.bf16.gmra.mrb[0].mxu0 %v3380
    %v3892 = vpop.f32.mrb[0].mxu0
    %v3893 = vadd.f32 %v3501, %v3892
    %v3894 = vpop.f32.mrb[0].mxu0
    %v3895 = vadd.f32 %v3505, %v3894
    %v3896 = vpop.f32.mrb[0].mxu0
    %v3897 = vadd.f32 %v3501, %v3896
    %v3898 = vpop.f32.mrb[0].mxu0
    %v3899 = vadd.f32 %v3505, %v3898
    %3900 = vmatprep.mubr.bf16.mxu0 %v3385
    %3901 = vmatmul.mubr.bf16.gmra.mrb[0].mxu0 %v3384
    %v3902 = vpop.f32.mrb[0].mxu0
    %v3903 = vadd.f32 %v3501, %v3902
    %v3904 = vpop.f32.mrb[0].mxu0
    %v3905 = vadd.f32 %v3505, %v3904
    %v3906 = vpop.f32.mrb[0].mxu0
    %v3907 = vadd.f32 %v3501, %v3906
    %v3908 = vpop.f32.mrb[0].mxu0
    %v3909 = vadd.f32 %v3505, %v3908
    %3910 = vmatprep.mubr.bf16.mxu0 %v3389
    %3911 = vmatmul.mubr.bf16.gmra.mrb[0].mxu0 %v3388
    %v3912 = vpop.f32.mrb[0].mxu0
    %v3913 = vadd.f32 %v3501, %v3912
    %v3914 = vpop.f32.mrb[0].mxu0
    %v3915 = vadd.f32 %v3505, %v3914
    %v3916 = vpop.f32.mrb[0].mxu0
    %v3917 = vadd.f32 %v3501, %v3916
    %v3918 = vpop.f32.mrb[0].mxu0
    %v3919 = vadd.f32 %v3505, %v3918
    %3920 = vmatprep.mubr.bf16.mxu0 %v3393
    %3921 = vmatmul.mubr.bf16.gmra.mrb[0].mxu0 %v3392
    %v3922 = vpop.f32.mrb[0].mxu0
    %v3923 = vadd.f32 %v3501, %v3922
    %v3924 = vpop.f32.mrb[0].mxu0
    %v3925 = vadd.f32 %v3505, %v3924
    %v3926 = vpop.f32.mrb[0].mxu0
    %v3927 = vadd.f32 %v3501, %v3926
    %v3928 = vpop.f32.mrb[0].mxu0
    %v3929 = vadd.f32 %v3505, %v3928
    %3930 = vmatprep.mubr.bf16.mxu0 %v3397
    %3931 = vmatmul.mubr.bf16.gmra.mrb[0].mxu0 %v3396
    %v3932 = vpop.f32.mrb[0].mxu0
    %v3933 = vadd.f32 %v3501, %v3932
    %v3934 = vpop.f32.mrb[0].mxu0
    %v3935 = vadd.f32 %v3505, %v3934
    %v3936 = vpop.f32.mrb[0].mxu0
    %v3937 = vadd.f32 %v3501, %v3936
    %v3938 = vpop.f32.mrb[0].mxu0
    %v3939 = vadd.f32 %v3505, %v3938
    %3940 = vmatprep.mubr.bf16.mxu0 %v3401
    %3941 = vmatmul.mubr.bf16.gmra.mrb[0].mxu0 %v3400
    %v3942 = vpop.f32.mrb[0].mxu0
    %v3943 = vadd.f32 %v3501, %v3942
    %v3944 = vpop.f32.mrb[0].mxu0
    %v3945 = vadd.f32 %v3505, %v3944
    %v3946 = vpop.f32.mrb[0].mxu0
    %v3947 = vadd.f32 %v3501, %v3946
    %v3948 = vpop.f32.mrb[0].mxu0
    %v3949 = vadd.f32 %v3505, %v3948
    %3950 = vmatprep.mubr.bf16.mxu0 %v3405
    %3951 = vmatmul.mubr.bf16.gmra.mrb[0].mxu0 %v3404
    %v3952 = vpop.f32.mrb[0].mxu0
    %v3953 = vadd.f32 %v3501, %v3952
    %v3954 = vpop.f32.mrb[0].mxu0
    %v3955 = vadd.f32 %v3505, %v3954
    %v3956 = vpop.f32.mrb[0].mxu0
    %v3957 = vadd.f32 %v3501, %v3956
    %v3958 = vpop.f32.mrb[0].mxu0
    %v3959 = vadd.f32 %v3505, %v3958
    %3960 = vmatprep.mubr.bf16.mxu0 %v3409
    %3961 = vmatmul.mubr.bf16.gmra.mrb[0].mxu0 %v3408
    %v3962 = vpop.f32.mrb[0].mxu0
    %v3963 = vadd.f32 %v3501, %v3962
    %v3964 = vpop.f32.mrb[0].mxu0
    %v3965 = vadd.f32 %v3505, %v3964
    %v3966 = vpop.f32.mrb[0].mxu0
    %v3967 = vadd.f32 %v3501, %v3966
    %v3968 = vpop.f32.mrb[0].mxu0
    %v3969 = vadd.f32 %v3505, %v3968
    %3970 = vmatprep.mubr.bf16.mxu0 %v3413
    %3971 = vmatmul.mubr.bf16.gmra.mrb[0].mxu0 %v3412
    %v3972 = vpop.f32.mrb[0].mxu0
    %v3973 = vadd.f32 %v3501, %v3972
    %v3974 = vpop.f32.mrb[0].mxu0
    %v3975 = vadd.f32 %v3505, %v3974
    %v3976 = vpop.f32.mrb[0].mxu0
    %v3977 = vadd.f32 %v3501, %v3976
    %v3978 = vpop.f32.mrb[0].mxu0
    %v3979 = vadd.f32 %v3505, %v3978
    %3980 = vmatprep.mubr.bf16.mxu0 %v3417
    %3981 = vmatmul.mubr.bf16.gmra.mrb[0].mxu0 %v3416
    %v3982 = vpop.f32.mrb[0].mxu0
    %v3983 = vadd.f32 %v3501, %v3982
    %v3984 = vpop.f32.mrb[0].mxu0
    %v3985 = vadd.f32 %v3505, %v3984
    %v3986 = vpop.f32.mrb[0].mxu0
    %v3987 = vadd.f32 %v3501, %v3986
    %v3988 = vpop.f32.mrb[0].mxu0
    %v3989 = vadd.f32 %v3505, %v3988
    %3990 = vmatprep.mubr.bf16.mxu0 %v3421
    %3991 = vmatmul.mubr.bf16.gmra.mrb[0].mxu0 %v3420
    %v3992 = vpop.f32.mrb[0].mxu0
    %v3993 = vadd.f32 %v3501, %v3992
    %v3994 = vpop.f32.mrb[0].mxu0
    %v3995 = vadd.f32 %v3505, %v3994
    %v3996 = vpop.f32.mrb[0].mxu0
    %v3997 = vadd.f32 %v3501, %v3996
    %v3998 = vpop.f32.mrb[0].mxu0
    %v3999 = vadd.f32 %v3505, %v3998
    %4000 = vmatprep.mubr.bf16.mxu0 %v3425
    %4001 = vmatmul.mubr.bf16.gmra.mrb[0].mxu0 %v3424
    %v4002 = vpop.f32.mrb[0].mxu0
    %v4003 = vadd.f32 %v3501, %v4002
    %v4004 = vpop.f32.mrb[0].mxu0
    %v4005 = vadd.f32 %v3505, %v4004
    %v4006 = vpop.f32.mrb[0].mxu0
    %v4007 = vadd.f32 %v3501, %v4006
    %v4008 = vpop.f32.mrb[0].mxu0
    %v4009 = vadd.f32 %v3505, %v4008
    %4010 = vmatprep.mubr.bf16.mxu0 %v3429
    %4011 = vmatmul.mubr.bf16.gmra.mrb[0].mxu0 %v3428
    %v4012 = vpop.f32.mrb[0].mxu0
    %v4013 = vadd.f32 %v3501, %v4012
    %v4014 = vpop.f32.mrb[0].mxu0
    %v4015 = vadd.f32 %v3505, %v4014
    %v4016 = vpop.f32.mrb[0].mxu0
    %v4017 = vadd.f32 %v3501, %v4016
    %v4018 = vpop.f32.mrb[0].mxu0
    %v4019 = vadd.f32 %v3505, %v4018
    %4020 = vdwg.mxu0
    %4021 = vmatprep.subr.bf16.mxu0 %v3733
    %4022 = vmatpush1.bf16.msra.mxu0 %v3732
    %4023 = vmatprep.subr.bf16.mxu0 %v3735
    %4024 = vmatpush1.bf16.msra.mxu0 %v3734
    %4025 = vmatprep.subr.bf16.mxu0 %v3737
    %4026 = vmatpush1.bf16.msra.mxu0 %v3736
    %4027 = vmatprep.subr.bf16.mxu0 %v3739
    %4028 = vmatpush1.bf16.msra.mxu0 %v3738
    %4029 = vmatprep.subr.bf16.mxu0 %v3741
    %4030 = vmatpush1.bf16.msra.mxu0 %v3740
    %4031 = vmatprep.subr.bf16.mxu0 %v3743
    %4032 = vmatpush1.bf16.msra.mxu0 %v3742
    %4033 = vmatprep.subr.bf16.mxu0 %v3745
    %4034 = vmatpush1.bf16.msra.mxu0 %v3744
    %4035 = vmatprep.subr.bf16.mxu0 %v3747
    %4036 = vmatpush1.bf16.msra.mxu0 %v3746
    %4037 = vmatprep.subr.bf16.mxu0 %v3749
    %4038 = vmatpush1.bf16.msra.mxu0 %v3748
    %4039 = vmatprep.subr.bf16.mxu0 %v3751
    %4040 = vmatpush1.bf16.msra.mxu0 %v3750
    %4041 = vmatprep.subr.bf16.mxu0 %v3753
    %4042 = vmatpush1.bf16.msra.mxu0 %v3752
    %4043 = vmatprep.subr.bf16.mxu0 %v3755
    %4044 = vmatpush1.bf16.msra.mxu0 %v3754
    %4045 = vmatprep.subr.bf16.mxu0 %v3757
    %4046 = vmatpush1.bf16.msra.mxu0 %v3756
    %4047 = vmatprep.subr.bf16.mxu0 %v3759
    %4048 = vmatpush1.bf16.msra.mxu0 %v3758
    %4049 = vmatprep.subr.bf16.mxu0 %v3761
    %4050 = vmatpush1.bf16.msra.mxu0 %v3760
    %4051 = vmatprep.subr.bf16.mxu0 %v3763
    %4052 = vmatpush1.bf16.msra.mxu0 %v3762
    %4053 = vmatprep.mubr.bf16.mxu0 %v3371
    %4054 = vmatmul.mubr.bf16.gmra.mrb[0].mxu0 %v3370
    %v4055 = vpop.f32.mrb[0].mxu0
    %v4056 = vadd.f32 %v3863, %v4055
    %v4057 = vpop.f32.mrb[0].mxu0
    %v4058 = vadd.f32 %v3865, %v4057
    %v4059 = vpop.f32.mrb[0].mxu0
    %v4060 = vadd.f32 %v3867, %v4059
    %v4061 = vpop.f32.mrb[0].mxu0
    %v4062 = vadd.f32 %v3869, %v4061
    %4063 = vmatprep.mubr.bf16.mxu0 %v3375
    %4064 = vmatmul.mubr.bf16.gmra.mrb[0].mxu0 %v3374
    %v4065 = vpop.f32.mrb[0].mxu0
    %v4066 = vadd.f32 %v3873, %v4065
    %v4067 = vpop.f32.mrb[0].mxu0
    %v4068 = vadd.f32 %v3875, %v4067
    %v4069 = vpop.f32.mrb[0].mxu0
    %v4070 = vadd.f32 %v3877, %v4069
    %v4071 = vpop.f32.mrb[0].mxu0
    %v4072 = vadd.f32 %v3879, %v4071
    %4073 = vmatprep.mubr.bf16.mxu0 %v3379
    %4074 = vmatmul.mubr.bf16.gmra.mrb[0].mxu0 %v3378
    %v4075 = vpop.f32.mrb[0].mxu0
    %v4076 = vadd.f32 %v3883, %v4075
    %v4077 = vpop.f32.mrb[0].mxu0
    %v4078 = vadd.f32 %v3885, %v4077
    %v4079 = vpop.f32.mrb[0].mxu0
    %v4080 = vadd.f32 %v3887, %v4079
    %v4081 = vpop.f32.mrb[0].mxu0
    %v4082 = vadd.f32 %v3889, %v4081
    %4083 = vmatprep.mubr.bf16.mxu0 %v3383
    %4084 = vmatmul.mubr.bf16.gmra.mrb[0].mxu0 %v3382
    %v4085 = vpop.f32.mrb[0].mxu0
    %v4086 = vadd.f32 %v3893, %v4085
    %v4087 = vpop.f32.mrb[0].mxu0
    %v4088 = vadd.f32 %v3895, %v4087
    %v4089 = vpop.f32.mrb[0].mxu0
    %v4090 = vadd.f32 %v3897, %v4089
    %v4091 = vpop.f32.mrb[0].mxu0
    %v4092 = vadd.f32 %v3899, %v4091
    %4093 = vmatprep.mubr.bf16.mxu0 %v3387
    %4094 = vmatmul.mubr.bf16.gmra.mrb[0].mxu0 %v3386
    %v4095 = vpop.f32.mrb[0].mxu0
    %v4096 = vadd.f32 %v3903, %v4095
    %v4097 = vpop.f32.mrb[0].mxu0
    %v4098 = vadd.f32 %v3905, %v4097
    %v4099 = vpop.f32.mrb[0].mxu0
    %v4100 = vadd.f32 %v3907, %v4099
    %v4101 = vpop.f32.mrb[0].mxu0
    %v4102 = vadd.f32 %v3909, %v4101
    %4103 = vmatprep.mubr.bf16.mxu0 %v3391
    %4104 = vmatmul.mubr.bf16.gmra.mrb[0].mxu0 %v3390
    %v4105 = vpop.f32.mrb[0].mxu0
    %v4106 = vadd.f32 %v3913, %v4105
    %v4107 = vpop.f32.mrb[0].mxu0
    %v4108 = vadd.f32 %v3915, %v4107
    %v4109 = vpop.f32.mrb[0].mxu0
    %v4110 = vadd.f32 %v3917, %v4109
    %v4111 = vpop.f32.mrb[0].mxu0
    %v4112 = vadd.f32 %v3919, %v4111
    %4113 = vmatprep.mubr.bf16.mxu0 %v3395
    %4114 = vmatmul.mubr.bf16.gmra.mrb[0].mxu0 %v3394
    %v4115 = vpop.f32.mrb[0].mxu0
    %v4116 = vadd.f32 %v3923, %v4115
    %v4117 = vpop.f32.mrb[0].mxu0
    %v4118 = vadd.f32 %v3925, %v4117
    %v4119 = vpop.f32.mrb[0].mxu0
    %v4120 = vadd.f32 %v3927, %v4119
    %v4121 = vpop.f32.mrb[0].mxu0
    %v4122 = vadd.f32 %v3929, %v4121
    %4123 = vmatprep.mubr.bf16.mxu0 %v3399
    %4124 = vmatmul.mubr.bf16.gmra.mrb[0].mxu0 %v3398
    %v4125 = vpop.f32.mrb[0].mxu0
    %v4126 = vadd.f32 %v3933, %v4125
    %v4127 = vpop.f32.mrb[0].mxu0
    %v4128 = vadd.f32 %v3935, %v4127
    %v4129 = vpop.f32.mrb[0].mxu0
    %v4130 = vadd.f32 %v3937, %v4129
    %v4131 = vpop.f32.mrb[0].mxu0
    %v4132 = vadd.f32 %v3939, %v4131
    %4133 = vmatprep.mubr.bf16.mxu0 %v3403
    %4134 = vmatmul.mubr.bf16.gmra.mrb[0].mxu0 %v3402
    %v4135 = vpop.f32.mrb[0].mxu0
    %v4136 = vadd.f32 %v3943, %v4135
    %v4137 = vpop.f32.mrb[0].mxu0
    %v4138 = vadd.f32 %v3945, %v4137
    %v4139 = vpop.f32.mrb[0].mxu0
    %v4140 = vadd.f32 %v3947, %v4139
    %v4141 = vpop.f32.mrb[0].mxu0
    %v4142 = vadd.f32 %v3949, %v4141
    %4143 = vmatprep.mubr.bf16.mxu0 %v3407
    %4144 = vmatmul.mubr.bf16.gmra.mrb[0].mxu0 %v3406
    %v4145 = vpop.f32.mrb[0].mxu0
    %v4146 = vadd.f32 %v3953, %v4145
    %v4147 = vpop.f32.mrb[0].mxu0
    %v4148 = vadd.f32 %v3955, %v4147
    %v4149 = vpop.f32.mrb[0].mxu0
    %v4150 = vadd.f32 %v3957, %v4149
    %v4151 = vpop.f32.mrb[0].mxu0
    %v4152 = vadd.f32 %v3959, %v4151
    %4153 = vmatprep.mubr.bf16.mxu0 %v3411
    %4154 = vmatmul.mubr.bf16.gmra.mrb[0].mxu0 %v3410
    %v4155 = vpop.f32.mrb[0].mxu0
    %v4156 = vadd.f32 %v3963, %v4155
    %v4157 = vpop.f32.mrb[0].mxu0
    %v4158 = vadd.f32 %v3965, %v4157
    %v4159 = vpop.f32.mrb[0].mxu0
    %v4160 = vadd.f32 %v3967, %v4159
    %v4161 = vpop.f32.mrb[0].mxu0
    %v4162 = vadd.f32 %v3969, %v4161
    %4163 = vmatprep.mubr.bf16.mxu0 %v3415
    %4164 = vmatmul.mubr.bf16.gmra.mrb[0].mxu0 %v3414
    %v4165 = vpop.f32.mrb[0].mxu0
    %v4166 = vadd.f32 %v3973, %v4165
    %v4167 = vpop.f32.mrb[0].mxu0
    %v4168 = vadd.f32 %v3975, %v4167
    %v4169 = vpop.f32.mrb[0].mxu0
    %v4170 = vadd.f32 %v3977, %v4169
    %v4171 = vpop.f32.mrb[0].mxu0
    %v4172 = vadd.f32 %v3979, %v4171
    %4173 = vmatprep.mubr.bf16.mxu0 %v3419
    %4174 = vmatmul.mubr.bf16.gmra.mrb[0].mxu0 %v3418
    %v4175 = vpop.f32.mrb[0].mxu0
    %v4176 = vadd.f32 %v3983, %v4175
    %v4177 = vpop.f32.mrb[0].mxu0
    %v4178 = vadd.f32 %v3985, %v4177
    %v4179 = vpop.f32.mrb[0].mxu0
    %v4180 = vadd.f32 %v3987, %v4179
    %v4181 = vpop.f32.mrb[0].mxu0
    %v4182 = vadd.f32 %v3989, %v4181
    %4183 = vmatprep.mubr.bf16.mxu0 %v3423
    %4184 = vmatmul.mubr.bf16.gmra.mrb[0].mxu0 %v3422
    %v4185 = vpop.f32.mrb[0].mxu0
    %v4186 = vadd.f32 %v3993, %v4185
    %v4187 = vpop.f32.mrb[0].mxu0
    %v4188 = vadd.f32 %v3995, %v4187
    %v4189 = vpop.f32.mrb[0].mxu0
    %v4190 = vadd.f32 %v3997, %v4189
    %v4191 = vpop.f32.mrb[0].mxu0
    %v4192 = vadd.f32 %v3999, %v4191
    %4193 = vmatprep.mubr.bf16.mxu0 %v3427
    %4194 = vmatmul.mubr.bf16.gmra.mrb[0].mxu0 %v3426
    %v4195 = vpop.f32.mrb[0].mxu0
    %v4196 = vadd.f32 %v4003, %v4195
    %v4197 = vpop.f32.mrb[0].mxu0
    %v4198 = vadd.f32 %v4005, %v4197
    %v4199 = vpop.f32.mrb[0].mxu0
    %v4200 = vadd.f32 %v4007, %v4199
    %v4201 = vpop.f32.mrb[0].mxu0
    %v4202 = vadd.f32 %v4009, %v4201
    %4203 = vmatprep.mubr.bf16.mxu0 %v3431
    %4204 = vmatmul.mubr.bf16.gmra.mrb[0].mxu0 %v3430
    %v4205 = vpop.f32.mrb[0].mxu0
    %v4206 = vadd.f32 %v4013, %v4205
    %v4207 = vpop.f32.mrb[0].mxu0
    %v4208 = vadd.f32 %v4015, %v4207
    %v4209 = vpop.f32.mrb[0].mxu0
    %v4210 = vadd.f32 %v4017, %v4209
    %v4211 = vpop.f32.mrb[0].mxu0
    %v4212 = vadd.f32 %v4019, %v4211
    %4213 = vdwg.mxu0
    %v4214 = vtanh.pop %v4056
    %v4215 = vtanh.pop %v4058
    %v4216 = vtanh.pop %v4060
    %v4217 = vtanh.pop %v4062
    %v4218 = vtanh.pop %v4066
    %v4219 = vtanh.pop %v4068
    %v4220 = vtanh.pop %v4070
    %v4221 = vtanh.pop %v4072
    %v4222 = vtanh.pop %v4076
    %v4223 = vtanh.pop %v4078
    %v4224 = vtanh.pop %v4080
    %v4225 = vtanh.pop %v4082
    %v4226 = vtanh.pop %v4086
    %v4227 = vtanh.pop %v4088
    %v4228 = vtanh.pop %v4090
    %v4229 = vtanh.pop %v4092
    %v4230 = vtanh.pop %v4096
    %v4231 = vtanh.pop %v4098
    %v4232 = vtanh.pop %v4100
    %v4233 = vtanh.pop %v4102
    %v4234 = vtanh.pop %v4106
    %v4235 = vtanh.pop %v4108
    %v4236 = vtanh.pop %v4110
    %v4237 = vtanh.pop %v4112
    %v4238 = vtanh.pop %v4116
    %v4239 = vtanh.pop %v4118
    %v4240 = vtanh.pop %v4120
    %v4241 = vtanh.pop %v4122
    %v4242 = vtanh.pop %v4126
    %v4243 = vtanh.pop %v4128
    %v4244 = vtanh.pop %v4130
    %v4245 = vtanh.pop %v4132
    %v4246 = vtanh.pop %v4136
    %v4247 = vtanh.pop %v4138
    %v4248 = vtanh.pop %v4140
    %v4249 = vtanh.pop %v4142
    %v4250 = vtanh.pop %v4146
    %v4251 = vtanh.pop %v4148
    %v4252 = vtanh.pop %v4150
    %v4253 = vtanh.pop %v4152
    %v4254 = vtanh.pop %v4156
    %v4255 = vtanh.pop %v4158
    %v4256 = vtanh.pop %v4160
    %v4257 = vtanh.pop %v4162
    %v4258 = vtanh.pop %v4166
    %v4259 = vtanh.pop %v4168
    %v4260 = vtanh.pop %v4170
    %v4261 = vtanh.pop %v4172
    %v4262 = vtanh.pop %v4176
    %v4263 = vtanh.pop %v4178
    %v4264 = vtanh.pop %v4180
    %v4265 = vtanh.pop %v4182
    %v4266 = vtanh.pop %v4186
    %v4267 = vtanh.pop %v4188
    %v4268 = vtanh.pop %v4190
    %v4269 = vtanh.pop %v4192
    %v4270 = vtanh.pop %v4196
    %v4271 = vtanh.pop %v4198
    %v4272 = vtanh.pop %v4200
    %v4273 = vtanh.pop %v4202
    %v4274 = vtanh.pop %v4206
    %v4275 = vtanh.pop %v4208
    %v4276 = vtanh.pop %v4210
    %v4277 = vtanh.pop %v4212
    %v4278 = vpack.c.bf16 %v4216, %v4214
    %v4279 = vpack.c.bf16 %v4217, %v4215
    %v4280 = vpack.c.bf16 %v4220, %v4218
    %v4281 = vpack.c.bf16 %v4221, %v4219
    %v4282 = vpack.c.bf16 %v4224, %v4222
    %v4283 = vpack.c.bf16 %v4225, %v4223
    %v4284 = vpack.c.bf16 %v4228, %v4226
    %v4285 = vpack.c.bf16 %v4229, %v4227
    %v4286 = vpack.c.bf16 %v4232, %v4230
    %v4287 = vpack.c.bf16 %v4233, %v4231
    %v4288 = vpack.c.bf16 %v4236, %v4234
    %v4289 = vpack.c.bf16 %v4237, %v4235
    %v4290 = vpack.c.bf16 %v4240, %v4238
    %v4291 = vpack.c.bf16 %v4241, %v4239
    %v4292 = vpack.c.bf16 %v4244, %v4242
    %v4293 = vpack.c.bf16 %v4245, %v4243
    %v4294 = vpack.c.bf16 %v4248, %v4246
    %v4295 = vpack.c.bf16 %v4249, %v4247
    %v4296 = vpack.c.bf16 %v4252, %v4250
    %v4297 = vpack.c.bf16 %v4253, %v4251
    %v4298 = vpack.c.bf16 %v4256, %v4254
    %v4299 = vpack.c.bf16 %v4257, %v4255
    %v4300 = vpack.c.bf16 %v4260, %v4258
    %v4301 = vpack.c.bf16 %v4261, %v4259
    %v4302 = vpack.c.bf16 %v4264, %v4262
    %v4303 = vpack.c.bf16 %v4265, %v4263
    %v4304 = vpack.c.bf16 %v4268, %v4266
    %v4305 = vpack.c.bf16 %v4269, %v4267
    %v4306 = vpack.c.bf16 %v4272, %v4270
    %v4307 = vpack.c.bf16 %v4273, %v4271
    %v4308 = vpack.c.bf16 %v4276, %v4274
    %v4309 = vpack.c.bf16 %v4277, %v4275
    %v4342 = vunpack.c.l.b16 %v4278
    %v4343 = vunpack.c.l.b16 %v4279
    %v4344 = vunpack.c.h.b16 %v4278
    %v4345 = vunpack.c.h.b16 %v4279
    %v4346 = vunpack.c.l.b16 %v4280
    %v4347 = vunpack.c.l.b16 %v4281
    %v4348 = vunpack.c.h.b16 %v4280
    %v4349 = vunpack.c.h.b16 %v4281
    %v4350 = vunpack.c.l.b16 %v4282
    %v4351 = vunpack.c.l.b16 %v4283
    %v4352 = vunpack.c.h.b16 %v4282
    %v4353 = vunpack.c.h.b16 %v4283
    %v4354 = vunpack.c.l.b16 %v4284
    %v4355 = vunpack.c.l.b16 %v4285
    %v4356 = vunpack.c.h.b16 %v4284
    %v4357 = vunpack.c.h.b16 %v4285
    %v4358 = vunpack.c.l.b16 %v4286
    %v4359 = vunpack.c.l.b16 %v4287
    %v4360 = vunpack.c.h.b16 %v4286
    %v4361 = vunpack.c.h.b16 %v4287
    %v4362 = vunpack.c.l.b16 %v4288
    %v4363 = vunpack.c.l.b16 %v4289
    %v4364 = vunpack.c.h.b16 %v4288
    %v4365 = vunpack.c.h.b16 %v4289
    %v4366 = vunpack.c.l.b16 %v4290
    %v4367 = vunpack.c.l.b16 %v4291
    %v4368 = vunpack.c.h.b16 %v4290
    %v4369 = vunpack.c.h.b16 %v4291
    %v4370 = vunpack.c.l.b16 %v4292
    %v4371 = vunpack.c.l.b16 %v4293
    %v4372 = vunpack.c.h.b16 %v4292
    %v4373 = vunpack.c.h.b16 %v4293
    %v4374 = vunpack.c.l.b16 %v4294
    %v4375 = vunpack.c.l.b16 %v4295
    %v4376 = vunpack.c.h.b16 %v4294
    %v4377 = vunpack.c.h.b16 %v4295
    %v4378 = vunpack.c.l.b16 %v4296
    %v4379 = vunpack.c.l.b16 %v4297
    %v4380 = vunpack.c.h.b16 %v4296
    %v4381 = vunpack.c.h.b16 %v4297
    %v4382 = vunpack.c.l.b16 %v4298
    %v4383 = vunpack.c.l.b16 %v4299
    %v4384 = vunpack.c.h.b16 %v4298
    %v4385 = vunpack.c.h.b16 %v4299
    %v4386 = vunpack.c.l.b16 %v4300
    %v4387 = vunpack.c.l.b16 %v4301
    %v4388 = vunpack.c.h.b16 %v4300
    %v4389 = vunpack.c.h.b16 %v4301
    %v4390 = vunpack.c.l.b16 %v4302
    %v4391 = vunpack.c.l.b16 %v4303
    %v4392 = vunpack.c.h.b16 %v4302
    %v4393 = vunpack.c.h.b16 %v4303
    %v4394 = vunpack.c.l.b16 %v4304
    %v4395 = vunpack.c.l.b16 %v4305
    %v4396 = vunpack.c.h.b16 %v4304
    %v4397 = vunpack.c.h.b16 %v4305
    %v4398 = vunpack.c.l.b16 %v4306
    %v4399 = vunpack.c.l.b16 %v4307
    %v4400 = vunpack.c.h.b16 %v4306
    %v4401 = vunpack.c.h.b16 %v4307
    %v4402 = vunpack.c.l.b16 %v4308
    %v4403 = vunpack.c.l.b16 %v4309
    %v4404 = vunpack.c.h.b16 %v4308
    %v4405 = vunpack.c.h.b16 %v4309
    %v4406 = vpack.c.b16 %v4343, %v4342
    %v4407 = vpack.c.b16 %v4345, %v4344
    %v4408 = vpack.c.b16 %v4347, %v4346
    %v4409 = vpack.c.b16 %v4349, %v4348
    %v4410 = vpack.c.b16 %v4351, %v4350
    %v4411 = vpack.c.b16 %v4353, %v4352
    %v4412 = vpack.c.b16 %v4355, %v4354
    %v4413 = vpack.c.b16 %v4357, %v4356
    %v4414 = vpack.c.b16 %v4359, %v4358
    %v4415 = vpack.c.b16 %v4361, %v4360
    %v4416 = vpack.c.b16 %v4363, %v4362
    %v4417 = vpack.c.b16 %v4365, %v4364
    %v4418 = vpack.c.b16 %v4367, %v4366
    %v4419 = vpack.c.b16 %v4369, %v4368
    %v4420 = vpack.c.b16 %v4371, %v4370
    %v4421 = vpack.c.b16 %v4373, %v4372
    %v4422 = vpack.c.b16 %v4375, %v4374
    %v4423 = vpack.c.b16 %v4377, %v4376
    %v4424 = vpack.c.b16 %v4379, %v4378
    %v4425 = vpack.c.b16 %v4381, %v4380
    %v4426 = vpack.c.b16 %v4383, %v4382
    %v4427 = vpack.c.b16 %v4385, %v4384
    %v4428 = vpack.c.b16 %v4387, %v4386
    %v4429 = vpack.c.b16 %v4389, %v4388
    %v4430 = vpack.c.b16 %v4391, %v4390
    %v4431 = vpack.c.b16 %v4393, %v4392
    %v4432 = vpack.c.b16 %v4395, %v4394
    %v4433 = vpack.c.b16 %v4397, %v4396
    %v4434 = vpack.c.b16 %v4399, %v4398
    %v4435 = vpack.c.b16 %v4401, %v4400
    %v4436 = vpack.c.b16 %v4403, %v4402
    %v4437 = vpack.c.b16 %v4405, %v4404
    %4470 = vst [vmem:[%s13] sm:$0xff] %v4406
    %4471 = vst [vmem:[%s13 + $0x8] sm:$0xff] %v4407
    %4472 = vst [vmem:[%s13 + $0x10] sm:$0xff] %v4408
    %4473 = vst [vmem:[%s13 + $0x18] sm:$0xff] %v4409
    %4474 = vst [vmem:[%s13 + $0x20] sm:$0xff] %v4410
    %4475 = vst [vmem:[%s13 + $0x28] sm:$0xff] %v4411
    %4476 = vst [vmem:[%s13 + $0x30] sm:$0xff] %v4412
    %4477 = vst [vmem:[%s13 + $0x38] sm:$0xff] %v4413
    %4478 = vst [vmem:[%s13 + $0x40] sm:$0xff] %v4414
    %4479 = vst [vmem:[%s13 + $0x48] sm:$0xff] %v4415
    %4480 = vst [vmem:[%s13 + $0x50] sm:$0xff] %v4416
    %4481 = vst [vmem:[%s13 + $0x58] sm:$0xff] %v4417
    %4482 = vst [vmem:[%s13 + $0x60] sm:$0xff] %v4418
    %4483 = vst [vmem:[%s13 + $0x68] sm:$0xff] %v4419
    %4484 = vst [vmem:[%s13 + $0x70] sm:$0xff] %v4420
    %4485 = vst [vmem:[%s13 + $0x78] sm:$0xff] %v4421
    %4486 = vst [vmem:[%s13 + $0x80] sm:$0xff] %v4422
    %4487 = vst [vmem:[%s13 + $0x88] sm:$0xff] %v4423
    %4488 = vst [vmem:[%s13 + $0x90] sm:$0xff] %v4424
    %4489 = vst [vmem:[%s13 + $0x98] sm:$0xff] %v4425
    %4490 = vst [vmem:[%s13 + $0xa0] sm:$0xff] %v4426
    %4491 = vst [vmem:[%s13 + $0xa8] sm:$0xff] %v4427
    %4492 = vst [vmem:[%s13 + $0xb0] sm:$0xff] %v4428
    %4493 = vst [vmem:[%s13 + $0xb8] sm:$0xff] %v4429
    %4494 = vst [vmem:[%s13 + $0xc0] sm:$0xff] %v4430
    %4495 = vst [vmem:[%s13 + $0xc8] sm:$0xff] %v4431
    %4496 = vst [vmem:[%s13 + $0xd0] sm:$0xff] %v4432
    %4497 = vst [vmem:[%s13 + $0xd8] sm:$0xff] %v4433
    %4498 = vst [vmem:[%s13 + $0xe0] sm:$0xff] %v4434
    %4499 = vst [vmem:[%s13 + $0xe8] sm:$0xff] %v4435
    %4500 = vst [vmem:[%s13 + $0xf0] sm:$0xff] %v4436
    %4501 = vst [vmem:[%s13 + $0xf8] sm:$0xff] %v4437
    // Predicated region
    $region62: #{generator_forward.1} parent=1 // pred_check
      _
    $region63: #{generator_forward.1} parent=1 // pred_check_branch
      %4503 = sbr.rel (0) target = $region65
    $region64: #{generator_forward.1} parent=1 // pred_region
      _
    $region65: #{generator_forward.1} parent=1 // pred_fallthru
      _
    // Predicated region
    $region66: #{generator_forward.1} parent=1 // pred_check
      _
    $region67: #{generator_forward.1} parent=1 // pred_check_branch
      %4505 = sbr.rel (0) target = $region69
    $region68: #{generator_forward.1} parent=1 // pred_region
      _
    $region69: #{generator_forward.1} parent=1 // pred_fallthru
      _
    %4506 = vsyncpa [#allocation3], 1
    %4507 = vsyncpa [#allocation5], 1

</llo_original>
